<compile_context>
chip_gen: v7x
topology: tpu7x:2x2x1
jax: 0.10.0
libtpu: 0.0.40
codegen_flags: <defaults>
</compile_context>

<pallas_src>
import functools
import math

import jax
import jax.numpy as jnp
from jax.experimental import pallas as pl
from jax.experimental.pallas import tpu as pltpu


def _encoder_layer_kernel(x_ref, wqkv_ref, mcw_ref, mcb_ref,
                          g1_ref, be1_ref, w1_ref, b1_ref, w2_ref, b2_ref,
                          g2_ref, be2_ref, out_ref, *, head_num, eps):
    Bb, P, E = x_ref.shape
    HD = mcw_ref.shape[0]
    H = head_num
    D = HD // H
    N = Bb * P
    f32, bf16 = jnp.float32, jnp.bfloat16

    x = x_ref[...]                                   # (Bb, P, E) f32 residual
    x2 = x.reshape(N, E)                             # leading-dim merge (free)
    xb = x2.astype(bf16)

    # ---- fused Q|K|V projection: one lane-dense (N,E)@(E,3*HD) MXU matmul ----
    # (1/sqrt(D) is already folded into the Wq columns by the wrapper.)
    qkv = jnp.dot(xb, wqkv_ref[...], preferred_element_type=f32)  # (N, 3*HD)

    def split_heads(t):                              # (N, H*D) -> (H*Bb, P, D)
        # Pure layout work done once per tensor: static D-wide lane slices of
        # the fused projection, stacked on a new leading (batch) axis.  All the
        # matmuls stay fused / head-batched.
        parts = [t[:, h * D:(h + 1) * D] for h in range(H)]
        th = jnp.stack(parts, axis=0)                # (H, N, D)
        return th.reshape(H * Bb, P, D).astype(bf16)

    qh = split_heads(qkv[:, 0:HD])
    kh = split_heads(qkv[:, HD:2 * HD])
    vh = split_heads(qkv[:, 2 * HD:3 * HD])

    # ---- scaled dot-product attention, batched over (head, batch-elem) ----
    # TODO(synk): for very large problem sizes tile the key axis with an
    # online-softmax accumulator so the (H*Bb, P, P) f32 scores stay inside
    # VMEM (v7x: 64 MiB); for now the wrapper scales Bb down with P instead.
    s = jax.lax.dot_general(qh, kh, (((2,), (2,)), ((0,), (0,))),
                            preferred_element_type=f32)          # (H*Bb, P, P)
    m = jnp.max(s, axis=-1, keepdims=True)
    p = jnp.exp(s - m)
    l = jnp.sum(p, axis=-1, keepdims=True)                       # (H*Bb, P, 1)
    o = jax.lax.dot_general(p.astype(bf16), vh, (((2,), (1,)), ((0,), (0,))),
                            preferred_element_type=f32)          # (H*Bb, P, D)
    # Deferred softmax normalisation: divide the D-wide output, not the P-wide
    # probability tensor.
    o = o * (1.0 / l)

    # ---- multi_head_combine: ONE lane-dense (N, H*D)@(H*D, E) matmul ----
    o = o.reshape(H, N, D)
    o_cat = jnp.concatenate([o[h] for h in range(H)], axis=1).astype(bf16)  # (N, HD)
    mh = jnp.dot(o_cat, mcw_ref[...], preferred_element_type=f32) + mcb_ref[...]

    # ---- Add & InstanceNorm1d (per batch element, over the problem axis) ----
    # TODO(synk): only the 'instance' norm variant is implemented in-kernel;
    # 'batch'/'batch_no_track'/'rezero' need cross-batch statistics / other math.
    def add_instance_norm(a, b, gamma, beta):
        y = (a + b).reshape(Bb, P, E)
        mu = jnp.mean(y, axis=1, keepdims=True)
        var = jnp.mean(jnp.square(y - mu), axis=1, keepdims=True)
        return (y - mu) * jax.lax.rsqrt(var + eps) * gamma + beta

    out1 = add_instance_norm(x2, mh, g1_ref[...], be1_ref[...])   # (Bb, P, E)
    o1 = out1.reshape(N, E)

    # ---- FeedForward: Linear -> ReLU -> Linear ----
    h1 = jnp.dot(o1.astype(bf16), w1_ref[...], preferred_element_type=f32) + b1_ref[...]
    h1 = jnp.maximum(h1, 0.0)
    ff = jnp.dot(h1.astype(bf16), w2_ref[...], preferred_element_type=f32) + b2_ref[...]

    out3 = add_instance_norm(o1, ff, g2_ref[...], be2_ref[...])   # (Bb, P, E)
    out_ref[...] = out3.astype(out_ref.dtype)


def _pick_batch_block(B, P, head_num, *, target_rows=512, score_budget=12 << 20):
    """Batch block: enough rows per MXU pass, scores within a VMEM budget, and
    >= 2 grid steps so v7x megacore can split the (parallel) batch axis."""
    bb_rows = max(1, target_rows // max(P, 1))
    bb_vmem = max(1, score_budget // (3 * 4 * head_num * P * P))
    bb = max(1, min(B, bb_rows, bb_vmem))
    if B >= 2:
        bb = min(bb, max(1, B // 2))
    return bb


def encoder_layer_forward(x, params, *, head_num, eps=1e-5, batch_block=None):
    """Fused EncoderLayer forward. `params` uses PyTorch nn.Linear layouts
    (weight = (out_features, in_features)); the wrapper repacks them."""
    B, P, E = x.shape
    HD = params["Wq"].shape[0]
    D = HD // head_num
    ffh = params["w1"].shape[0]
    f32, bf16 = jnp.float32, jnp.bfloat16

    # --- repack weights: x @ W form, fused Q|K|V, 1/sqrt(D) folded into Wq ---
    scale = 1.0 / math.sqrt(float(D))
    wqkv = jnp.concatenate(
        [params["Wq"].astype(f32).T * scale,
         params["Wk"].astype(f32).T,
         params["Wv"].astype(f32).T], axis=1).astype(bf16)        # (E, 3*HD)
    mcw = params["mhc_w"].astype(f32).T.astype(bf16)              # (HD, E)
    w1t = params["w1"].astype(f32).T.astype(bf16)                 # (E, ffh)
    w2t = params["w2"].astype(f32).T.astype(bf16)                 # (ffh, E)
    row = lambda v: jnp.asarray(v, f32).reshape(1, -1)
    weights = [wqkv, mcw, row(params["mhc_b"]),
               row(params["gamma1"]), row(params["beta1"]),
               w1t, row(params["b1"]), w2t, row(params["b2"]),
               row(params["gamma2"]), row(params["beta2"])]

    # --- batch block / padding (no divisibility requirement on B) ---
    Bb = batch_block if batch_block is not None else _pick_batch_block(B, P, head_num)
    Bb = max(1, min(Bb, B))
    n_steps = int(pl.cdiv(B, Bb))
    B_pad = n_steps * Bb
    x_in = x
    if B_pad != B:
        x_in = jnp.concatenate([x, jnp.zeros((B_pad - B, P, E), x.dtype)], axis=0)

    # --- VMEM limit sized to the working set (never below the scoped default,
    #     capped under v7x's 64 MiB physical VMEM) ---
    score_bytes = 4 * head_num * Bb * P * P
    block_bytes = 2 * 2 * 4 * Bb * P * E                # in+out, double-buffered
    weight_bytes = 2 * sum(int(w.size) * w.dtype.itemsize for w in weights)
    ffn_bytes = 2 * 4 * Bb * P * ffh
    est = 4 * score_bytes + block_bytes + weight_bytes + ffn_bytes + (8 << 20)
    vmem_limit = int(min(max(est, 32 << 20), 60 << 20))

    # Weight blocks are replicated across grid steps (constant index_map); they
    # total well under 1 MiB here, so the default buffering is kept for maximum
    # lowering portability instead of forcing single-buffering.
    def w_spec(w):
        return pl.BlockSpec(w.shape, lambda b: (0, 0))

    out = pl.pallas_call(
        functools.partial(_encoder_layer_kernel, head_num=head_num, eps=eps),
        out_shape=jax.ShapeDtypeStruct((B_pad, P, E), x.dtype),
        grid=(n_steps,),
        in_specs=[pl.BlockSpec((Bb, P, E), lambda b: (b, 0, 0))]
                 + [w_spec(w) for w in weights],
        out_specs=pl.BlockSpec((Bb, P, E), lambda b: (b, 0, 0)),
        compiler_params=pltpu.CompilerParams(
            dimension_semantics=("parallel",),        # batch axis -> v7x megacore
            vmem_limit_bytes=vmem_limit),
    )(x_in, *weights)
    return out[:B]


def _reference_forward(x, params, *, head_num, eps=1e-5):
    """Pure-JAX mirror of the PyTorch EncoderLayer forward (norm='instance'),
    using the same bf16-operand / f32-accumulate recipe as the kernel."""
    f32, bf16 = jnp.float32, jnp.bfloat16
    B, P, E = x.shape
    HD = params["Wq"].shape[0]
    D = HD // head_num
    xb = x.astype(bf16)

    def proj(w):   # nn.Linear (weight (HD,E), no bias) then reshape_by_heads
        y = jnp.einsum("bpe,fe->bpf", xb, w.astype(bf16),
                       preferred_element_type=f32)
        return y.reshape(B, P, head_num, D).transpose(0, 2, 1, 3)   # (B,H,P,D)

    q, k, v = proj(params["Wq"]), proj(params["Wk"]), proj(params["Wv"])
    s = jnp.einsum("bhnd,bhmd->bhnm", q.astype(bf16), k.astype(bf16),
                   preferred_element_type=f32) / math.sqrt(float(D))
    m = jnp.max(s, axis=-1, keepdims=True)
    p = jnp.exp(s - m)
    # softmax(s) @ v, written with deferred normalisation (same math).
    o = jnp.einsum("bhnm,bhmd->bhnd", p.astype(bf16), v.astype(bf16),
                   preferred_element_type=f32) / jnp.sum(p, axis=-1, keepdims=True)
    o_cat = o.transpose(0, 2, 1, 3).reshape(B, P, HD)
    mh = jnp.einsum("bpf,ef->bpe", o_cat.astype(bf16),
                    params["mhc_w"].astype(bf16),
                    preferred_element_type=f32) + params["mhc_b"]

    def add_instance_norm(a, b, gamma, beta):
        y = a + b
        mu = jnp.mean(y, axis=1, keepdims=True)
        var = jnp.mean(jnp.square(y - mu), axis=1, keepdims=True)
        return (y - mu) * jax.lax.rsqrt(var + eps) * gamma + beta

    out1 = add_instance_norm(x, mh, params["gamma1"], params["beta1"])
    h1 = jnp.einsum("bpe,fe->bpf", out1.astype(bf16), params["w1"].astype(bf16),
                    preferred_element_type=f32) + params["b1"]
    h1 = jnp.maximum(h1, 0.0)
    ff = jnp.einsum("bpf,ef->bpe", h1.astype(bf16), params["w2"].astype(bf16),
                    preferred_element_type=f32) + params["b2"]
    return add_instance_norm(out1, ff, params["gamma2"], params["beta2"])


if __name__ == "__main__":
    # Model hyper-params (small, TPU-layout friendly: E = head_num*qkv_dim = 128).
    embedding_dim, head_num, qkv_dim, ff_hidden_dim = 128, 8, 16, 512
    B, problem = 4, 32
    HD = head_num * qkv_dim

    key = jax.random.PRNGKey(0)
    ks = jax.random.split(key, 14)
    sc = 0.08
    f32 = jnp.float32
    params = {
        # PyTorch nn.Linear layouts: weight = (out_features, in_features).
        "Wq": sc * jax.random.normal(ks[0], (HD, embedding_dim), f32),
        "Wk": sc * jax.random.normal(ks[1], (HD, embedding_dim), f32),
        "Wv": sc * jax.random.normal(ks[2], (HD, embedding_dim), f32),
        "mhc_w": sc * jax.random.normal(ks[3], (embedding_dim, HD), f32),
        "mhc_b": sc * jax.random.normal(ks[4], (embedding_dim,), f32),
        "gamma1": 1.0 + 0.1 * jax.random.normal(ks[5], (embedding_dim,), f32),
        "beta1": 0.1 * jax.random.normal(ks[6], (embedding_dim,), f32),
        "w1": sc * jax.random.normal(ks[7], (ff_hidden_dim, embedding_dim), f32),
        "b1": sc * jax.random.normal(ks[8], (ff_hidden_dim,), f32),
        "w2": sc * jax.random.normal(ks[9], (embedding_dim, ff_hidden_dim), f32),
        "b2": sc * jax.random.normal(ks[10], (embedding_dim,), f32),
        "gamma2": 1.0 + 0.1 * jax.random.normal(ks[11], (embedding_dim,), f32),
        "beta2": 0.1 * jax.random.normal(ks[12], (embedding_dim,), f32),
    }
    x = jax.random.normal(ks[13], (B, problem, embedding_dim), f32)

    ref = jax.block_until_ready(_reference_forward(x, params, head_num=head_num))

    # Default path: heuristic batch block (Bb=2 -> grid=(2,): >=2 parallel steps).
    out = jax.block_until_ready(encoder_layer_forward(x, params, head_num=head_num))
    assert out.shape == (B, problem, embedding_dim)
    assert bool(jnp.isfinite(out).all()), "non-finite output"
    max_err = float(jnp.max(jnp.abs(out - ref)))
    mean_err = float(jnp.mean(jnp.abs(out - ref)))
    # bf16 MXU operands + transcendental approximations legitimately give ~1e-2
    # disagreement on O(1) instance-normalised outputs; real bugs are O(1).
    assert max_err < 5e-2 and mean_err < 1e-2, \
        f"mismatch vs reference: max {max_err}, mean {mean_err}"

    # Non-divisible batch block -> exercises the padding path (B=4, Bb=3).
    out_pad = jax.block_until_ready(
        encoder_layer_forward(x, params, head_num=head_num, batch_block=3))
    max_err_pad = float(jnp.max(jnp.abs(out_pad - ref)))
    assert max_err_pad < 5e-2, f"padded-path mismatch vs reference: max {max_err_pad}"

    print("KERNEL_OK")
</pallas_src>

<mosaic_0001>
module attributes {stable_mosaic.version = 11 : i64} {
  func.func @_encoder_layer_kernel(%arg0: i32, %arg1: memref<2x32x128xf32, #tpu.memory_space<vmem>>, %arg2: memref<128x384xbf16, #tpu.memory_space<vmem>>, %arg3: memref<128x128xbf16, #tpu.memory_space<vmem>>, %arg4: memref<1x128xf32, #tpu.memory_space<vmem>>, %arg5: memref<1x128xf32, #tpu.memory_space<vmem>>, %arg6: memref<1x128xf32, #tpu.memory_space<vmem>>, %arg7: memref<128x512xbf16, #tpu.memory_space<vmem>>, %arg8: memref<1x512xf32, #tpu.memory_space<vmem>>, %arg9: memref<512x128xbf16, #tpu.memory_space<vmem>>, %arg10: memref<1x128xf32, #tpu.memory_space<vmem>>, %arg11: memref<1x128xf32, #tpu.memory_space<vmem>>, %arg12: memref<1x128xf32, #tpu.memory_space<vmem>>, %arg13: memref<2x32x128xf32, #tpu.memory_space<vmem>>) attributes {dimension_semantics = [#tpu.dimension_semantics<parallel>], iteration_bounds = array<i64: 2>, scalar_prefetch = 0 : i64, scratch_operands = 0 : i64, tpu.core_type = #tpu.core_type<tc>, window_params = [{transform_indices = @transform_0, window_bounds = array<i64: 2, 32, 128>}, {pipeline_mode = #tpu.pipeline_mode<synchronous>, transform_indices = @transform_1, window_bounds = array<i64: 128, 384>}, {pipeline_mode = #tpu.pipeline_mode<synchronous>, transform_indices = @transform_2, window_bounds = array<i64: 128, 128>}, {pipeline_mode = #tpu.pipeline_mode<synchronous>, transform_indices = @transform_3, window_bounds = array<i64: 1, 128>}, {pipeline_mode = #tpu.pipeline_mode<synchronous>, transform_indices = @transform_4, window_bounds = array<i64: 1, 128>}, {pipeline_mode = #tpu.pipeline_mode<synchronous>, transform_indices = @transform_5, window_bounds = array<i64: 1, 128>}, {pipeline_mode = #tpu.pipeline_mode<synchronous>, transform_indices = @transform_6, window_bounds = array<i64: 128, 512>}, {pipeline_mode = #tpu.pipeline_mode<synchronous>, transform_indices = @transform_7, window_bounds = array<i64: 1, 512>}, {pipeline_mode = #tpu.pipeline_mode<synchronous>, transform_indices = @transform_8, window_bounds = array<i64: 512, 128>}, {pipeline_mode = #tpu.pipeline_mode<synchronous>, transform_indices = @transform_9, window_bounds = array<i64: 1, 128>}, {pipeline_mode = #tpu.pipeline_mode<synchronous>, transform_indices = @transform_10, window_bounds = array<i64: 1, 128>}, {pipeline_mode = #tpu.pipeline_mode<synchronous>, transform_indices = @transform_11, window_bounds = array<i64: 1, 128>}, {transform_indices = @transform_12, window_bounds = array<i64: 2, 32, 128>}]} {
    %c0 = arith.constant 0 : index
    %c0_0 = arith.constant 0 : index
    %c0_1 = arith.constant 0 : index
    %0 = vector.load %arg1[%c0, %c0_0, %c0_1] : memref<2x32x128xf32, #tpu.memory_space<vmem>>, vector<2x32x128xf32>
    %1 = vector.shape_cast %0 : vector<2x32x128xf32> to vector<64x128xf32>
    %2 = arith.truncf %1 : vector<64x128xf32> to vector<64x128xbf16>
    %c0_2 = arith.constant 0 : index
    %c0_3 = arith.constant 0 : index
    %3 = vector.load %arg2[%c0_2, %c0_3] : memref<128x384xbf16, #tpu.memory_space<vmem>>, vector<128x384xbf16>
    %cst = arith.constant dense<0.000000e+00> : vector<64x384xf32>
    %4 = tpu.matmul %2, %3, %cst {dimension_numbers = #tpu.dot_dimension_numbers<[1], [0], [0], [1], [0, 0, 1, 1], [], []>} : vector<64x128xbf16>, vector<128x384xbf16>, vector<64x384xf32> -> vector<64x384xf32>
    %5 = vector.extract_strided_slice %4 {offsets = [0, 0], sizes = [64, 128], strides = [1, 1]} : vector<64x384xf32> to vector<64x128xf32>
    %6 = vector.extract_strided_slice %5 {offsets = [0, 0], sizes = [64, 16], strides = [1, 1]} : vector<64x128xf32> to vector<64x16xf32>
    %7 = vector.extract_strided_slice %5 {offsets = [0, 16], sizes = [64, 16], strides = [1, 1]} : vector<64x128xf32> to vector<64x16xf32>
    %8 = vector.extract_strided_slice %5 {offsets = [0, 32], sizes = [64, 16], strides = [1, 1]} : vector<64x128xf32> to vector<64x16xf32>
    %9 = vector.extract_strided_slice %5 {offsets = [0, 48], sizes = [64, 16], strides = [1, 1]} : vector<64x128xf32> to vector<64x16xf32>
    %10 = vector.extract_strided_slice %5 {offsets = [0, 64], sizes = [64, 16], strides = [1, 1]} : vector<64x128xf32> to vector<64x16xf32>
    %11 = vector.extract_strided_slice %5 {offsets = [0, 80], sizes = [64, 16], strides = [1, 1]} : vector<64x128xf32> to vector<64x16xf32>
    %12 = vector.extract_strided_slice %5 {offsets = [0, 96], sizes = [64, 16], strides = [1, 1]} : vector<64x128xf32> to vector<64x16xf32>
    %13 = vector.extract_strided_slice %5 {offsets = [0, 112], sizes = [64, 16], strides = [1, 1]} : vector<64x128xf32> to vector<64x16xf32>
    %14 = vector.shape_cast %6 : vector<64x16xf32> to vector<1x64x16xf32>
    %15 = vector.shape_cast %7 : vector<64x16xf32> to vector<1x64x16xf32>
    %16 = vector.shape_cast %8 : vector<64x16xf32> to vector<1x64x16xf32>
    %17 = vector.shape_cast %9 : vector<64x16xf32> to vector<1x64x16xf32>
    %18 = vector.shape_cast %10 : vector<64x16xf32> to vector<1x64x16xf32>
    %19 = vector.shape_cast %11 : vector<64x16xf32> to vector<1x64x16xf32>
    %20 = vector.shape_cast %12 : vector<64x16xf32> to vector<1x64x16xf32>
    %21 = vector.shape_cast %13 : vector<64x16xf32> to vector<1x64x16xf32>
    %22 = tpu.concatenate %14, %15, %16, %17, %18, %19, %20, %21 in 0 : vector<1x64x16xf32>, vector<1x64x16xf32>, vector<1x64x16xf32>, vector<1x64x16xf32>, vector<1x64x16xf32>, vector<1x64x16xf32>, vector<1x64x16xf32>, vector<1x64x16xf32> -> vector<8x64x16xf32>
    %23 = vector.shape_cast %22 : vector<8x64x16xf32> to vector<16x32x16xf32>
    %24 = arith.truncf %23 : vector<16x32x16xf32> to vector<16x32x16xbf16>
    %25 = vector.extract_strided_slice %4 {offsets = [0, 128], sizes = [64, 128], strides = [1, 1]} : vector<64x384xf32> to vector<64x128xf32>
    %26 = vector.extract_strided_slice %25 {offsets = [0, 0], sizes = [64, 16], strides = [1, 1]} : vector<64x128xf32> to vector<64x16xf32>
    %27 = vector.extract_strided_slice %25 {offsets = [0, 16], sizes = [64, 16], strides = [1, 1]} : vector<64x128xf32> to vector<64x16xf32>
    %28 = vector.extract_strided_slice %25 {offsets = [0, 32], sizes = [64, 16], strides = [1, 1]} : vector<64x128xf32> to vector<64x16xf32>
    %29 = vector.extract_strided_slice %25 {offsets = [0, 48], sizes = [64, 16], strides = [1, 1]} : vector<64x128xf32> to vector<64x16xf32>
    %30 = vector.extract_strided_slice %25 {offsets = [0, 64], sizes = [64, 16], strides = [1, 1]} : vector<64x128xf32> to vector<64x16xf32>
    %31 = vector.extract_strided_slice %25 {offsets = [0, 80], sizes = [64, 16], strides = [1, 1]} : vector<64x128xf32> to vector<64x16xf32>
    %32 = vector.extract_strided_slice %25 {offsets = [0, 96], sizes = [64, 16], strides = [1, 1]} : vector<64x128xf32> to vector<64x16xf32>
    %33 = vector.extract_strided_slice %25 {offsets = [0, 112], sizes = [64, 16], strides = [1, 1]} : vector<64x128xf32> to vector<64x16xf32>
    %34 = vector.shape_cast %26 : vector<64x16xf32> to vector<1x64x16xf32>
    %35 = vector.shape_cast %27 : vector<64x16xf32> to vector<1x64x16xf32>
    %36 = vector.shape_cast %28 : vector<64x16xf32> to vector<1x64x16xf32>
    %37 = vector.shape_cast %29 : vector<64x16xf32> to vector<1x64x16xf32>
    %38 = vector.shape_cast %30 : vector<64x16xf32> to vector<1x64x16xf32>
    %39 = vector.shape_cast %31 : vector<64x16xf32> to vector<1x64x16xf32>
    %40 = vector.shape_cast %32 : vector<64x16xf32> to vector<1x64x16xf32>
    %41 = vector.shape_cast %33 : vector<64x16xf32> to vector<1x64x16xf32>
    %42 = tpu.concatenate %34, %35, %36, %37, %38, %39, %40, %41 in 0 : vector<1x64x16xf32>, vector<1x64x16xf32>, vector<1x64x16xf32>, vector<1x64x16xf32>, vector<1x64x16xf32>, vector<1x64x16xf32>, vector<1x64x16xf32>, vector<1x64x16xf32> -> vector<8x64x16xf32>
    %43 = vector.shape_cast %42 : vector<8x64x16xf32> to vector<16x32x16xf32>
    %44 = arith.truncf %43 : vector<16x32x16xf32> to vector<16x32x16xbf16>
    %45 = vector.extract_strided_slice %4 {offsets = [0, 256], sizes = [64, 128], strides = [1, 1]} : vector<64x384xf32> to vector<64x128xf32>
    %46 = vector.extract_strided_slice %45 {offsets = [0, 0], sizes = [64, 16], strides = [1, 1]} : vector<64x128xf32> to vector<64x16xf32>
    %47 = vector.extract_strided_slice %45 {offsets = [0, 16], sizes = [64, 16], strides = [1, 1]} : vector<64x128xf32> to vector<64x16xf32>
    %48 = vector.extract_strided_slice %45 {offsets = [0, 32], sizes = [64, 16], strides = [1, 1]} : vector<64x128xf32> to vector<64x16xf32>
    %49 = vector.extract_strided_slice %45 {offsets = [0, 48], sizes = [64, 16], strides = [1, 1]} : vector<64x128xf32> to vector<64x16xf32>
    %50 = vector.extract_strided_slice %45 {offsets = [0, 64], sizes = [64, 16], strides = [1, 1]} : vector<64x128xf32> to vector<64x16xf32>
    %51 = vector.extract_strided_slice %45 {offsets = [0, 80], sizes = [64, 16], strides = [1, 1]} : vector<64x128xf32> to vector<64x16xf32>
    %52 = vector.extract_strided_slice %45 {offsets = [0, 96], sizes = [64, 16], strides = [1, 1]} : vector<64x128xf32> to vector<64x16xf32>
    %53 = vector.extract_strided_slice %45 {offsets = [0, 112], sizes = [64, 16], strides = [1, 1]} : vector<64x128xf32> to vector<64x16xf32>
    %54 = vector.shape_cast %46 : vector<64x16xf32> to vector<1x64x16xf32>
    %55 = vector.shape_cast %47 : vector<64x16xf32> to vector<1x64x16xf32>
    %56 = vector.shape_cast %48 : vector<64x16xf32> to vector<1x64x16xf32>
    %57 = vector.shape_cast %49 : vector<64x16xf32> to vector<1x64x16xf32>
    %58 = vector.shape_cast %50 : vector<64x16xf32> to vector<1x64x16xf32>
    %59 = vector.shape_cast %51 : vector<64x16xf32> to vector<1x64x16xf32>
    %60 = vector.shape_cast %52 : vector<64x16xf32> to vector<1x64x16xf32>
    %61 = vector.shape_cast %53 : vector<64x16xf32> to vector<1x64x16xf32>
    %62 = tpu.concatenate %54, %55, %56, %57, %58, %59, %60, %61 in 0 : vector<1x64x16xf32>, vector<1x64x16xf32>, vector<1x64x16xf32>, vector<1x64x16xf32>, vector<1x64x16xf32>, vector<1x64x16xf32>, vector<1x64x16xf32>, vector<1x64x16xf32> -> vector<8x64x16xf32>
    %63 = vector.shape_cast %62 : vector<8x64x16xf32> to vector<16x32x16xf32>
    %64 = arith.truncf %63 : vector<16x32x16xf32> to vector<16x32x16xbf16>
    %cst_4 = arith.constant dense<0.000000e+00> : vector<16x32x32xf32>
    %65 = tpu.matmul %24, %44, %cst_4 {dimension_numbers = #tpu.dot_dimension_numbers<[2], [2], [1], [1], [0, 0, 0, 1, 1, 1], [0], [0]>} : vector<16x32x16xbf16>, vector<16x32x16xbf16>, vector<16x32x32xf32> -> vector<16x32x32xf32>
    %cst_5 = arith.constant dense<0xFF800000> : vector<16x32xf32>
    %66 = vector.multi_reduction <maximumf>, %65, %cst_5 [2] : vector<16x32x32xf32> to vector<16x32xf32>
    %67 = vector.shape_cast %66 : vector<16x32xf32> to vector<16x32x1xf32>
    %68 = vector.broadcast %67 : vector<16x32x1xf32> to vector<16x32x32xf32>
    %69 = arith.subf %65, %68 : vector<16x32x32xf32>
    %70 = math.exp %69 : vector<16x32x32xf32>
    %cst_6 = arith.constant dense<0.000000e+00> : vector<16x32xf32>
    %71 = vector.multi_reduction <add>, %70, %cst_6 [2] : vector<16x32x32xf32> to vector<16x32xf32>
    %72 = vector.shape_cast %71 : vector<16x32xf32> to vector<16x32x1xf32>
    %73 = arith.truncf %70 : vector<16x32x32xf32> to vector<16x32x32xbf16>
    %cst_7 = arith.constant dense<0.000000e+00> : vector<16x32x16xf32>
    %74 = tpu.matmul %73, %64, %cst_7 {dimension_numbers = #tpu.dot_dimension_numbers<[2], [1], [1], [2], [0, 0, 0, 1, 1, 2], [0], [0]>} : vector<16x32x32xbf16>, vector<16x32x16xbf16>, vector<16x32x16xf32> -> vector<16x32x16xf32>
    %cst_8 = arith.constant 1.000000e+00 : f32
    %75 = vector.broadcast %cst_8 : f32 to vector<16x32x1xf32>
    %76 = arith.divf %75, %72 : vector<16x32x1xf32>
    %77 = vector.broadcast %76 : vector<16x32x1xf32> to vector<16x32x16xf32>
    %78 = arith.mulf %74, %77 : vector<16x32x16xf32>
    %79 = vector.shape_cast %78 : vector<16x32x16xf32> to vector<8x64x16xf32>
    %80 = vector.extract_strided_slice %79 {offsets = [0, 0, 0], sizes = [1, 64, 16], strides = [1, 1, 1]} : vector<8x64x16xf32> to vector<1x64x16xf32>
    %81 = vector.shape_cast %80 : vector<1x64x16xf32> to vector<64x16xf32>
    %82 = vector.extract_strided_slice %79 {offsets = [1, 0, 0], sizes = [1, 64, 16], strides = [1, 1, 1]} : vector<8x64x16xf32> to vector<1x64x16xf32>
    %83 = vector.shape_cast %82 : vector<1x64x16xf32> to vector<64x16xf32>
    %84 = vector.extract_strided_slice %79 {offsets = [2, 0, 0], sizes = [1, 64, 16], strides = [1, 1, 1]} : vector<8x64x16xf32> to vector<1x64x16xf32>
    %85 = vector.shape_cast %84 : vector<1x64x16xf32> to vector<64x16xf32>
    %86 = vector.extract_strided_slice %79 {offsets = [3, 0, 0], sizes = [1, 64, 16], strides = [1, 1, 1]} : vector<8x64x16xf32> to vector<1x64x16xf32>
    %87 = vector.shape_cast %86 : vector<1x64x16xf32> to vector<64x16xf32>
    %88 = vector.extract_strided_slice %79 {offsets = [4, 0, 0], sizes = [1, 64, 16], strides = [1, 1, 1]} : vector<8x64x16xf32> to vector<1x64x16xf32>
    %89 = vector.shape_cast %88 : vector<1x64x16xf32> to vector<64x16xf32>
    %90 = vector.extract_strided_slice %79 {offsets = [5, 0, 0], sizes = [1, 64, 16], strides = [1, 1, 1]} : vector<8x64x16xf32> to vector<1x64x16xf32>
    %91 = vector.shape_cast %90 : vector<1x64x16xf32> to vector<64x16xf32>
    %92 = vector.extract_strided_slice %79 {offsets = [6, 0, 0], sizes = [1, 64, 16], strides = [1, 1, 1]} : vector<8x64x16xf32> to vector<1x64x16xf32>
    %93 = vector.shape_cast %92 : vector<1x64x16xf32> to vector<64x16xf32>
    %94 = vector.extract_strided_slice %79 {offsets = [7, 0, 0], sizes = [1, 64, 16], strides = [1, 1, 1]} : vector<8x64x16xf32> to vector<1x64x16xf32>
    %95 = vector.shape_cast %94 : vector<1x64x16xf32> to vector<64x16xf32>
    %96 = tpu.concatenate %81, %83, %85, %87, %89, %91, %93, %95 in 1 : vector<64x16xf32>, vector<64x16xf32>, vector<64x16xf32>, vector<64x16xf32>, vector<64x16xf32>, vector<64x16xf32>, vector<64x16xf32>, vector<64x16xf32> -> vector<64x128xf32>
    %97 = arith.truncf %96 : vector<64x128xf32> to vector<64x128xbf16>
    %c0_9 = arith.constant 0 : index
    %c0_10 = arith.constant 0 : index
    %98 = vector.load %arg3[%c0_9, %c0_10] : memref<128x128xbf16, #tpu.memory_space<vmem>>, vector<128x128xbf16>
    %cst_11 = arith.constant dense<0.000000e+00> : vector<64x128xf32>
    %99 = tpu.matmul %97, %98, %cst_11 {dimension_numbers = #tpu.dot_dimension_numbers<[1], [0], [0], [1], [0, 0, 1, 1], [], []>} : vector<64x128xbf16>, vector<128x128xbf16>, vector<64x128xf32> -> vector<64x128xf32>
    %c0_12 = arith.constant 0 : index
    %c0_13 = arith.constant 0 : index
    %100 = vector.load %arg4[%c0_12, %c0_13] : memref<1x128xf32, #tpu.memory_space<vmem>>, vector<1x128xf32>
    %101 = vector.broadcast %100 : vector<1x128xf32> to vector<64x128xf32>
    %102 = arith.addf %99, %101 : vector<64x128xf32>
    %c0_14 = arith.constant 0 : index
    %c0_15 = arith.constant 0 : index
    %103 = vector.load %arg5[%c0_14, %c0_15] : memref<1x128xf32, #tpu.memory_space<vmem>>, vector<1x128xf32>
    %c0_16 = arith.constant 0 : index
    %c0_17 = arith.constant 0 : index
    %104 = vector.load %arg6[%c0_16, %c0_17] : memref<1x128xf32, #tpu.memory_space<vmem>>, vector<1x128xf32>
    %105 = arith.addf %1, %102 : vector<64x128xf32>
    %106 = vector.shape_cast %105 : vector<64x128xf32> to vector<2x32x128xf32>
    %cst_18 = arith.constant dense<0.000000e+00> : vector<2x128xf32>
    %107 = vector.multi_reduction <add>, %106, %cst_18 [1] : vector<2x32x128xf32> to vector<2x128xf32>
    %108 = vector.shape_cast %107 : vector<2x128xf32> to vector<2x1x128xf32>
    %cst_19 = arith.constant 3.200000e+01 : f32
    %109 = vector.broadcast %cst_19 : f32 to vector<2x1x128xf32>
    %110 = arith.divf %108, %109 : vector<2x1x128xf32>
    %111 = vector.broadcast %110 : vector<2x1x128xf32> to vector<2x32x128xf32>
    %112 = arith.subf %106, %111 : vector<2x32x128xf32>
    %113 = arith.mulf %112, %112 : vector<2x32x128xf32>
    %cst_20 = arith.constant dense<0.000000e+00> : vector<2x128xf32>
    %114 = vector.multi_reduction <add>, %113, %cst_20 [1] : vector<2x32x128xf32> to vector<2x128xf32>
    %115 = vector.shape_cast %114 : vector<2x128xf32> to vector<2x1x128xf32>
    %cst_21 = arith.constant 3.200000e+01 : f32
    %116 = vector.broadcast %cst_21 : f32 to vector<2x1x128xf32>
    %117 = arith.divf %115, %116 : vector<2x1x128xf32>
    %118 = vector.broadcast %110 : vector<2x1x128xf32> to vector<2x32x128xf32>
    %119 = arith.subf %106, %118 : vector<2x32x128xf32>
    %cst_22 = arith.constant 9.99999974E-6 : f32
    %120 = vector.broadcast %cst_22 : f32 to vector<2x1x128xf32>
    %121 = arith.addf %117, %120 : vector<2x1x128xf32>
    %122 = math.rsqrt %121 : vector<2x1x128xf32>
    %123 = vector.broadcast %122 : vector<2x1x128xf32> to vector<2x32x128xf32>
    %124 = arith.mulf %119, %123 : vector<2x32x128xf32>
    %125 = vector.shape_cast %103 : vector<1x128xf32> to vector<1x1x128xf32>
    %126 = vector.broadcast %125 : vector<1x1x128xf32> to vector<2x32x128xf32>
    %127 = arith.mulf %124, %126 : vector<2x32x128xf32>
    %128 = vector.shape_cast %104 : vector<1x128xf32> to vector<1x1x128xf32>
    %129 = vector.broadcast %128 : vector<1x1x128xf32> to vector<2x32x128xf32>
    %130 = arith.addf %127, %129 : vector<2x32x128xf32>
    %131 = vector.shape_cast %130 : vector<2x32x128xf32> to vector<64x128xf32>
    %132 = arith.truncf %131 : vector<64x128xf32> to vector<64x128xbf16>
    %c0_23 = arith.constant 0 : index
    %c0_24 = arith.constant 0 : index
    %133 = vector.load %arg7[%c0_23, %c0_24] : memref<128x512xbf16, #tpu.memory_space<vmem>>, vector<128x512xbf16>
    %cst_25 = arith.constant dense<0.000000e+00> : vector<64x512xf32>
    %134 = tpu.matmul %132, %133, %cst_25 {dimension_numbers = #tpu.dot_dimension_numbers<[1], [0], [0], [1], [0, 0, 1, 1], [], []>} : vector<64x128xbf16>, vector<128x512xbf16>, vector<64x512xf32> -> vector<64x512xf32>
    %c0_26 = arith.constant 0 : index
    %c0_27 = arith.constant 0 : index
    %135 = vector.load %arg8[%c0_26, %c0_27] : memref<1x512xf32, #tpu.memory_space<vmem>>, vector<1x512xf32>
    %136 = vector.broadcast %135 : vector<1x512xf32> to vector<64x512xf32>
    %137 = arith.addf %134, %136 : vector<64x512xf32>
    %cst_28 = arith.constant 0.000000e+00 : f32
    %138 = vector.broadcast %cst_28 : f32 to vector<64x512xf32>
    %139 = arith.maximumf %137, %138 : vector<64x512xf32>
    %140 = arith.truncf %139 : vector<64x512xf32> to vector<64x512xbf16>
    %c0_29 = arith.constant 0 : index
    %c0_30 = arith.constant 0 : index
    %141 = vector.load %arg9[%c0_29, %c0_30] : memref<512x128xbf16, #tpu.memory_space<vmem>>, vector<512x128xbf16>
    %cst_31 = arith.constant dense<0.000000e+00> : vector<64x128xf32>
    %142 = tpu.matmul %140, %141, %cst_31 {dimension_numbers = #tpu.dot_dimension_numbers<[1], [0], [0], [1], [0, 0, 1, 1], [], []>} : vector<64x512xbf16>, vector<512x128xbf16>, vector<64x128xf32> -> vector<64x128xf32>
    %c0_32 = arith.constant 0 : index
    %c0_33 = arith.constant 0 : index
    %143 = vector.load %arg10[%c0_32, %c0_33] : memref<1x128xf32, #tpu.memory_space<vmem>>, vector<1x128xf32>
    %144 = vector.broadcast %143 : vector<1x128xf32> to vector<64x128xf32>
    %145 = arith.addf %142, %144 : vector<64x128xf32>
    %c0_34 = arith.constant 0 : index
    %c0_35 = arith.constant 0 : index
    %146 = vector.load %arg11[%c0_34, %c0_35] : memref<1x128xf32, #tpu.memory_space<vmem>>, vector<1x128xf32>
    %c0_36 = arith.constant 0 : index
    %c0_37 = arith.constant 0 : index
    %147 = vector.load %arg12[%c0_36, %c0_37] : memref<1x128xf32, #tpu.memory_space<vmem>>, vector<1x128xf32>
    %148 = arith.addf %131, %145 : vector<64x128xf32>
    %149 = vector.shape_cast %148 : vector<64x128xf32> to vector<2x32x128xf32>
    %cst_38 = arith.constant dense<0.000000e+00> : vector<2x128xf32>
    %150 = vector.multi_reduction <add>, %149, %cst_38 [1] : vector<2x32x128xf32> to vector<2x128xf32>
    %151 = vector.shape_cast %150 : vector<2x128xf32> to vector<2x1x128xf32>
    %cst_39 = arith.constant 3.200000e+01 : f32
    %152 = vector.broadcast %cst_39 : f32 to vector<2x1x128xf32>
    %153 = arith.divf %151, %152 : vector<2x1x128xf32>
    %154 = vector.broadcast %153 : vector<2x1x128xf32> to vector<2x32x128xf32>
    %155 = arith.subf %149, %154 : vector<2x32x128xf32>
    %156 = arith.mulf %155, %155 : vector<2x32x128xf32>
    %cst_40 = arith.constant dense<0.000000e+00> : vector<2x128xf32>
    %157 = vector.multi_reduction <add>, %156, %cst_40 [1] : vector<2x32x128xf32> to vector<2x128xf32>
    %158 = vector.shape_cast %157 : vector<2x128xf32> to vector<2x1x128xf32>
    %cst_41 = arith.constant 3.200000e+01 : f32
    %159 = vector.broadcast %cst_41 : f32 to vector<2x1x128xf32>
    %160 = arith.divf %158, %159 : vector<2x1x128xf32>
    %161 = vector.broadcast %153 : vector<2x1x128xf32> to vector<2x32x128xf32>
    %162 = arith.subf %149, %161 : vector<2x32x128xf32>
    %cst_42 = arith.constant 9.99999974E-6 : f32
    %163 = vector.broadcast %cst_42 : f32 to vector<2x1x128xf32>
    %164 = arith.addf %160, %163 : vector<2x1x128xf32>
    %165 = math.rsqrt %164 : vector<2x1x128xf32>
    %166 = vector.broadcast %165 : vector<2x1x128xf32> to vector<2x32x128xf32>
    %167 = arith.mulf %162, %166 : vector<2x32x128xf32>
    %168 = vector.shape_cast %146 : vector<1x128xf32> to vector<1x1x128xf32>
    %169 = vector.broadcast %168 : vector<1x1x128xf32> to vector<2x32x128xf32>
    %170 = arith.mulf %167, %169 : vector<2x32x128xf32>
    %171 = vector.shape_cast %147 : vector<1x128xf32> to vector<1x1x128xf32>
    %172 = vector.broadcast %171 : vector<1x1x128xf32> to vector<2x32x128xf32>
    %173 = arith.addf %170, %172 : vector<2x32x128xf32>
    %c0_43 = arith.constant 0 : index
    %c0_44 = arith.constant 0 : index
    %c0_45 = arith.constant 0 : index
    %174 = vector.load %arg13[%c0_43, %c0_44, %c0_45] : memref<2x32x128xf32, #tpu.memory_space<vmem>>, vector<2x32x128xf32>
    tpu.vector_store %arg13[%c0_43, %c0_44, %c0_45], %173 {strides = array<i32>} : memref<2x32x128xf32, #tpu.memory_space<vmem>>, vector<2x32x128xf32>,
    return
  }
  func.func @transform_0(%arg0: i32) -> (i32, i32, i32) {
    %c0_i32 = arith.constant 0 : i32
    %c0_i32_0 = arith.constant 0 : i32
    %c0_i32_1 = arith.constant 0 : i32
    return %arg0, %c0_i32, %c0_i32_0 : i32, i32, i32
  }
  func.func @transform_1(%arg0: i32) -> (i32, i32) {
    %c0_i32 = arith.constant 0 : i32
    %c0_i32_0 = arith.constant 0 : i32
    %c0_i32_1 = arith.constant 0 : i32
    return %c0_i32, %c0_i32_0 : i32, i32
  }
  func.func @transform_2(%arg0: i32) -> (i32, i32) {
    %c0_i32 = arith.constant 0 : i32
    %c0_i32_0 = arith.constant 0 : i32
    %c0_i32_1 = arith.constant 0 : i32
    return %c0_i32, %c0_i32_0 : i32, i32
  }
  func.func @transform_3(%arg0: i32) -> (i32, i32) {
    %c0_i32 = arith.constant 0 : i32
    %c0_i32_0 = arith.constant 0 : i32
    %c0_i32_1 = arith.constant 0 : i32
    return %c0_i32, %c0_i32_0 : i32, i32
  }
  func.func @transform_4(%arg0: i32) -> (i32, i32) {
    %c0_i32 = arith.constant 0 : i32
    %c0_i32_0 = arith.constant 0 : i32
    %c0_i32_1 = arith.constant 0 : i32
    return %c0_i32, %c0_i32_0 : i32, i32
  }
  func.func @transform_5(%arg0: i32) -> (i32, i32) {
    %c0_i32 = arith.constant 0 : i32
    %c0_i32_0 = arith.constant 0 : i32
    %c0_i32_1 = arith.constant 0 : i32
    return %c0_i32, %c0_i32_0 : i32, i32
  }
  func.func @transform_6(%arg0: i32) -> (i32, i32) {
    %c0_i32 = arith.constant 0 : i32
    %c0_i32_0 = arith.constant 0 : i32
    %c0_i32_1 = arith.constant 0 : i32
    return %c0_i32, %c0_i32_0 : i32, i32
  }
  func.func @transform_7(%arg0: i32) -> (i32, i32) {
    %c0_i32 = arith.constant 0 : i32
    %c0_i32_0 = arith.constant 0 : i32
    %c0_i32_1 = arith.constant 0 : i32
    return %c0_i32, %c0_i32_0 : i32, i32
  }
  func.func @transform_8(%arg0: i32) -> (i32, i32) {
    %c0_i32 = arith.constant 0 : i32
    %c0_i32_0 = arith.constant 0 : i32
    %c0_i32_1 = arith.constant 0 : i32
    return %c0_i32, %c0_i32_0 : i32, i32
  }
  func.func @transform_9(%arg0: i32) -> (i32, i32) {
    %c0_i32 = arith.constant 0 : i32
    %c0_i32_0 = arith.constant 0 : i32
    %c0_i32_1 = arith.constant 0 : i32
    return %c0_i32, %c0_i32_0 : i32, i32
  }
  func.func @transform_10(%arg0: i32) -> (i32, i32) {
    %c0_i32 = arith.constant 0 : i32
    %c0_i32_0 = arith.constant 0 : i32
    %c0_i32_1 = arith.constant 0 : i32
    return %c0_i32, %c0_i32_0 : i32, i32
  }
  func.func @transform_11(%arg0: i32) -> (i32, i32) {
    %c0_i32 = arith.constant 0 : i32
    %c0_i32_0 = arith.constant 0 : i32
    %c0_i32_1 = arith.constant 0 : i32
    return %c0_i32, %c0_i32_0 : i32, i32
  }
  func.func @transform_12(%arg0: i32) -> (i32, i32, i32) {
    %c0_i32 = arith.constant 0 : i32
    %c0_i32_0 = arith.constant 0 : i32
    %c0_i32_1 = arith.constant 0 : i32
    return %arg0, %c0_i32, %c0_i32_0 : i32, i32, i32
  }
}

</mosaic_0001>

<llo_original>
// kernel: tpu_custom_call.1
$region0: #{tpu_custom_call.1}
  #allocation0 [shape = 'u32[]', space=smem, size = 0x4, offset = 0x4, fixed_abs, tag = 'smem constant byte address 0x4 - core index']
  #allocation1 [shape = 'u32[144,128]{1,0:T(1,128)}', space=vmem, size = 0x12000, scoped, tag = 'internal scratch']
  %s0 = inlined_call_operand.hbm [shape: f32[4,32,128], index: 0, kind: input, shape index: {}]
  %s1 = inlined_call_operand.hbm [shape: bf16[128,384], index: 1, kind: input, shape index: {}]
  %s2 = inlined_call_operand.hbm [shape: bf16[128,128], index: 2, kind: input, shape index: {}]
  %s3 = inlined_call_operand.vmem [shape: f32[1,128], index: 3, kind: input, shape index: {}]
  %s4 = inlined_call_operand.vmem [shape: f32[1,128], index: 4, kind: input, shape index: {}]
  %s5 = inlined_call_operand.vmem [shape: f32[1,128], index: 5, kind: input, shape index: {}]
  %s6 = inlined_call_operand.hbm [shape: bf16[128,512], index: 6, kind: input, shape index: {}]
  %s7 = inlined_call_operand.vmem [shape: f32[1,512], index: 7, kind: input, shape index: {}]
  %s8 = inlined_call_operand.hbm [shape: bf16[512,128], index: 8, kind: input, shape index: {}]
  %s9 = inlined_call_operand.vmem [shape: f32[1,128], index: 9, kind: input, shape index: {}]
  %s10 = inlined_call_operand.vmem [shape: f32[1,128], index: 10, kind: input, shape index: {}]
  %s11 = inlined_call_operand.vmem [shape: f32[1,128], index: 11, kind: input, shape index: {}]
  %s12 = inlined_call_operand.hbm [shape: f32[4,32,128], index: 12, kind: output, shape index: {}]
  %s13 = sld [smem:[#allocation0]]
  $region101: #{tpu_custom_call.1} parent=0
    _
  %s15 = ssub.s32 1, %s13
  %s16 = scalar_select 0, %s15, %s13
  $region1: #{tpu_custom_call.1} parent=0
    #allocation2 [shape = 'u8[65536]{0}', space=vmem, size = 0x10000, scoped, tag = 'input window, operand 0']
    #allocation3 [shape = 's32[2]{0}', space=sflag, size = 0x8, scoped, tag = 'scoped memory for tpu_custom_call.1']
    #allocation4 [shape = 's32[2]{0}', space=sflag, size = 0x8, scoped, tag = 'scoped memory for tpu_custom_call.1']
    #allocation5 [shape = 'u8[98304]{0}', space=vmem, size = 0x18000, scoped, tag = 'input window, operand 1, single buffered']
    #allocation6 [shape = 's32[1]{0}', space=sflag, size = 0x4, scoped, tag = 'scoped memory for tpu_custom_call.1']
    #allocation7 [shape = 'u8[32768]{0}', space=vmem, size = 0x8000, scoped, tag = 'input window, operand 2, single buffered']
    #allocation8 [shape = 'u8[131072]{0}', space=vmem, size = 0x20000, scoped, tag = 'input window, operand 6, single buffered']
    #allocation9 [shape = 's32[1]{0}', space=sflag, size = 0x4, scoped, tag = 'scoped memory for tpu_custom_call.1']
    #allocation10 [shape = 'u8[131072]{0}', space=vmem, size = 0x20000, scoped, tag = 'input window, operand 8, single buffered']
    #allocation11 [shape = 'u8[65536]{0}', space=vmem, size = 0x10000, scoped, tag = 'output window, operand 0']
    %17 = vsyncpa [#allocation3], 0
    %s18 = scalar_lea.sflag [#allocation3], 1
    %19 = vsyncpa %s18, 0
    %20 = vsyncpa [#allocation6], 0
    %21 = vsyncpa [#allocation9], 0
    %22 = vsyncpa [#allocation4], 0
    %s23 = scalar_lea.sflag [#allocation4], 1
    %24 = vsyncpa %s23, 0
    loop: start=0, step=1, limit=4
    $region2: #{tpu_custom_call.1} parent=1 // loop_pre_header
      _
    $region3: #{tpu_custom_call.1} parent=1 // loop_header
      %s26 = sphi 0, %s30
      %p27 = scmp.ge.s32.totalorder %s26, 4
      %s36 = sphi 0, %s38
      %s39 = sphi 0, %s36
      %s40 = sphi 0, %s39
      %s56 = sphi 0, %s40
      %s60 = sphi 0, %s60
      %s62 = sphi 0, %s60
      %s63 = sphi 0, %s62
      %s77 = sphi 0, %s63
      %s81 = sphi 0, %s81
      %s83 = sphi 0, %s81
      %s84 = sphi 0, %s83
      %s98 = sphi 0, %s84
      %s102 = sphi 0, %s102
      %s104 = sphi 0, %s102
      %s105 = sphi 0, %s104
      %s119 = sphi 0, %s105
      %s123 = sphi 0, %s123
      %s125 = sphi 0, %s123
      %s126 = sphi 0, %s125
      %s140 = sphi 0, %s126
      %s144 = sphi 0, %s144
      %s146 = sphi 0, %s144
      %s147 = sphi 0, %s146
      %s161 = sphi 0, %s147
      %s165 = sphi 0, %s165
      %s167 = sphi 0, %s165
      %s168 = sphi 0, %s167
      %s182 = sphi 0, %s168
      %s186 = sphi 0, %s186
      %s188 = sphi 0, %s186
      %s189 = sphi 0, %s188
      %s203 = sphi 0, %s189
      %s207 = sphi 0, %s207
      %s209 = sphi 0, %s207
      %s210 = sphi 0, %s209
      %s224 = sphi 0, %s210
      %s228 = sphi 0, %s228
      %s230 = sphi 0, %s228
      %s231 = sphi 0, %s230
      %s245 = sphi 0, %s231
      %s249 = sphi 0, %s249
      %s251 = sphi 0, %s249
      %s252 = sphi 0, %s251
      %s266 = sphi 0, %s252
      %s270 = sphi 0, %s270
      %s272 = sphi 0, %s270
      %s273 = sphi 0, %s272
      %s287 = sphi 0, %s273
      %s293 = sphi 0, %s295
      %s296 = sphi 0, %s293
      %s297 = sphi 0, %s296
      %s313 = sphi 0, %s297
    $region4: #{tpu_custom_call.1} parent=1 // loop_header_branch
      %29 = sbr.rel (%p27) target = $region8
    $region5: #{tpu_custom_call.1} parent=1 // loop_body
      %s31 = ssub.s32 %s26, 1
      %s32 = ssub.s32 %s26, 2
      %s33 = sadd.s32 %s26, 1
      %s34 = ssub.s32 %s26, %s33
      %p35 = scmp.eq.s32.totalorder %s34, 0
      %s37 = sadd.s32 %s36, 1
      %s38 = scalar_select %p35, %s36, %s37
      %p41 = pneg %p35
      %p42 = scmp.eq.s32.totalorder %s26, 1
      %p43 = por %p41, %p42
      %p44 = scmp.ne.s32.totalorder %s36, %s39
      %p45 = scmp.eq.s32.totalorder %s26, 0
      %p46 = por %p44, %p45
      %p47 = scmp.ne.s32.totalorder %s36, %s39
      %p48 = scmp.eq.s32.totalorder %s31, 1
      %p49 = por %p47, %p48
      %p50 = scmp.ne.s32.totalorder %s39, %s40
      %p51 = scmp.eq.s32.totalorder %s31, 0
      %p52 = por %p50, %p51
      %p53 = scmp.ne.s32.totalorder %s39, %s40
      %p54 = scmp.eq.s32.totalorder %s32, 1
      %p55 = por %p53, %p54
      %p57 = scmp.ne.s32.totalorder %s40, %s56
      %p58 = scmp.eq.s32.totalorder %s32, 0
      %p59 = por %p57, %p58
      %s61 = sadd.s32 %s60, 1
      %p64 = scmp.eq.s32.totalorder %s26, 1
      %p65 = scmp.ne.s32.totalorder %s60, %s62
      %p66 = scmp.eq.s32.totalorder %s26, 0
      %p67 = por %p65, %p66
      %p68 = scmp.ne.s32.totalorder %s60, %s62
      %p69 = scmp.eq.s32.totalorder %s31, 1
      %p70 = por %p68, %p69
      %p71 = scmp.ne.s32.totalorder %s62, %s63
      %p72 = scmp.eq.s32.totalorder %s31, 0
      %p73 = por %p71, %p72
      %p74 = scmp.ne.s32.totalorder %s62, %s63
      %p75 = scmp.eq.s32.totalorder %s32, 1
      %p76 = por %p74, %p75
      %p78 = scmp.ne.s32.totalorder %s63, %s77
      %p79 = scmp.eq.s32.totalorder %s32, 0
      %p80 = por %p78, %p79
      %s82 = sadd.s32 %s81, 1
      %p85 = scmp.eq.s32.totalorder %s26, 1
      %p86 = scmp.ne.s32.totalorder %s81, %s83
      %p87 = scmp.eq.s32.totalorder %s26, 0
      %p88 = por %p86, %p87
      %p89 = scmp.ne.s32.totalorder %s81, %s83
      %p90 = scmp.eq.s32.totalorder %s31, 1
      %p91 = por %p89, %p90
      %p92 = scmp.ne.s32.totalorder %s83, %s84
      %p93 = scmp.eq.s32.totalorder %s31, 0
      %p94 = por %p92, %p93
      %p95 = scmp.ne.s32.totalorder %s83, %s84
      %p96 = scmp.eq.s32.totalorder %s32, 1
      %p97 = por %p95, %p96
      %p99 = scmp.ne.s32.totalorder %s84, %s98
      %p100 = scmp.eq.s32.totalorder %s32, 0
      %p101 = por %p99, %p100
      %s103 = sadd.s32 %s102, 1
      %p106 = scmp.eq.s32.totalorder %s26, 1
      %p107 = scmp.ne.s32.totalorder %s102, %s104
      %p108 = scmp.eq.s32.totalorder %s26, 0
      %p109 = por %p107, %p108
      %p110 = scmp.ne.s32.totalorder %s102, %s104
      %p111 = scmp.eq.s32.totalorder %s31, 1
      %p112 = por %p110, %p111
      %p113 = scmp.ne.s32.totalorder %s104, %s105
      %p114 = scmp.eq.s32.totalorder %s31, 0
      %p115 = por %p113, %p114
      %p116 = scmp.ne.s32.totalorder %s104, %s105
      %p117 = scmp.eq.s32.totalorder %s32, 1
      %p118 = por %p116, %p117
      %p120 = scmp.ne.s32.totalorder %s105, %s119
      %p121 = scmp.eq.s32.totalorder %s32, 0
      %p122 = por %p120, %p121
      %s124 = sadd.s32 %s123, 1
      %p127 = scmp.eq.s32.totalorder %s26, 1
      %p128 = scmp.ne.s32.totalorder %s123, %s125
      %p129 = scmp.eq.s32.totalorder %s26, 0
      %p130 = por %p128, %p129
      %p131 = scmp.ne.s32.totalorder %s123, %s125
      %p132 = scmp.eq.s32.totalorder %s31, 1
      %p133 = por %p131, %p132
      %p134 = scmp.ne.s32.totalorder %s125, %s126
      %p135 = scmp.eq.s32.totalorder %s31, 0
      %p136 = por %p134, %p135
      %p137 = scmp.ne.s32.totalorder %s125, %s126
      %p138 = scmp.eq.s32.totalorder %s32, 1
      %p139 = por %p137, %p138
      %p141 = scmp.ne.s32.totalorder %s126, %s140
      %p142 = scmp.eq.s32.totalorder %s32, 0
      %p143 = por %p141, %p142
      %s145 = sadd.s32 %s144, 1
      %p148 = scmp.eq.s32.totalorder %s26, 1
      %p149 = scmp.ne.s32.totalorder %s144, %s146
      %p150 = scmp.eq.s32.totalorder %s26, 0
      %p151 = por %p149, %p150
      %p152 = scmp.ne.s32.totalorder %s144, %s146
      %p153 = scmp.eq.s32.totalorder %s31, 1
      %p154 = por %p152, %p153
      %p155 = scmp.ne.s32.totalorder %s146, %s147
      %p156 = scmp.eq.s32.totalorder %s31, 0
      %p157 = por %p155, %p156
      %p158 = scmp.ne.s32.totalorder %s146, %s147
      %p159 = scmp.eq.s32.totalorder %s32, 1
      %p160 = por %p158, %p159
      %p162 = scmp.ne.s32.totalorder %s147, %s161
      %p163 = scmp.eq.s32.totalorder %s32, 0
      %p164 = por %p162, %p163
      %s166 = sadd.s32 %s165, 1
      %p169 = scmp.eq.s32.totalorder %s26, 1
      %p170 = scmp.ne.s32.totalorder %s165, %s167
      %p171 = scmp.eq.s32.totalorder %s26, 0
      %p172 = por %p170, %p171
      %p173 = scmp.ne.s32.totalorder %s165, %s167
      %p174 = scmp.eq.s32.totalorder %s31, 1
      %p175 = por %p173, %p174
      %p176 = scmp.ne.s32.totalorder %s167, %s168
      %p177 = scmp.eq.s32.totalorder %s31, 0
      %p178 = por %p176, %p177
      %p179 = scmp.ne.s32.totalorder %s167, %s168
      %p180 = scmp.eq.s32.totalorder %s32, 1
      %p181 = por %p179, %p180
      %p183 = scmp.ne.s32.totalorder %s168, %s182
      %p184 = scmp.eq.s32.totalorder %s32, 0
      %p185 = por %p183, %p184
      %s187 = sadd.s32 %s186, 1
      %p190 = scmp.eq.s32.totalorder %s26, 1
      %p191 = scmp.ne.s32.totalorder %s186, %s188
      %p192 = scmp.eq.s32.totalorder %s26, 0
      %p193 = por %p191, %p192
      %p194 = scmp.ne.s32.totalorder %s186, %s188
      %p195 = scmp.eq.s32.totalorder %s31, 1
      %p196 = por %p194, %p195
      %p197 = scmp.ne.s32.totalorder %s188, %s189
      %p198 = scmp.eq.s32.totalorder %s31, 0
      %p199 = por %p197, %p198
      %p200 = scmp.ne.s32.totalorder %s188, %s189
      %p201 = scmp.eq.s32.totalorder %s32, 1
      %p202 = por %p200, %p201
      %p204 = scmp.ne.s32.totalorder %s189, %s203
      %p205 = scmp.eq.s32.totalorder %s32, 0
      %p206 = por %p204, %p205
      %s208 = sadd.s32 %s207, 1
      %p211 = scmp.eq.s32.totalorder %s26, 1
      %p212 = scmp.ne.s32.totalorder %s207, %s209
      %p213 = scmp.eq.s32.totalorder %s26, 0
      %p214 = por %p212, %p213
      %p215 = scmp.ne.s32.totalorder %s207, %s209
      %p216 = scmp.eq.s32.totalorder %s31, 1
      %p217 = por %p215, %p216
      %p218 = scmp.ne.s32.totalorder %s209, %s210
      %p219 = scmp.eq.s32.totalorder %s31, 0
      %p220 = por %p218, %p219
      %p221 = scmp.ne.s32.totalorder %s209, %s210
      %p222 = scmp.eq.s32.totalorder %s32, 1
      %p223 = por %p221, %p222
      %p225 = scmp.ne.s32.totalorder %s210, %s224
      %p226 = scmp.eq.s32.totalorder %s32, 0
      %p227 = por %p225, %p226
      %s229 = sadd.s32 %s228, 1
      %p232 = scmp.eq.s32.totalorder %s26, 1
      %p233 = scmp.ne.s32.totalorder %s228, %s230
      %p234 = scmp.eq.s32.totalorder %s26, 0
      %p235 = por %p233, %p234
      %p236 = scmp.ne.s32.totalorder %s228, %s230
      %p237 = scmp.eq.s32.totalorder %s31, 1
      %p238 = por %p236, %p237
      %p239 = scmp.ne.s32.totalorder %s230, %s231
      %p240 = scmp.eq.s32.totalorder %s31, 0
      %p241 = por %p239, %p240
      %p242 = scmp.ne.s32.totalorder %s230, %s231
      %p243 = scmp.eq.s32.totalorder %s32, 1
      %p244 = por %p242, %p243
      %p246 = scmp.ne.s32.totalorder %s231, %s245
      %p247 = scmp.eq.s32.totalorder %s32, 0
      %p248 = por %p246, %p247
      %s250 = sadd.s32 %s249, 1
      %p253 = scmp.eq.s32.totalorder %s26, 1
      %p254 = scmp.ne.s32.totalorder %s249, %s251
      %p255 = scmp.eq.s32.totalorder %s26, 0
      %p256 = por %p254, %p255
      %p257 = scmp.ne.s32.totalorder %s249, %s251
      %p258 = scmp.eq.s32.totalorder %s31, 1
      %p259 = por %p257, %p258
      %p260 = scmp.ne.s32.totalorder %s251, %s252
      %p261 = scmp.eq.s32.totalorder %s31, 0
      %p262 = por %p260, %p261
      %p263 = scmp.ne.s32.totalorder %s251, %s252
      %p264 = scmp.eq.s32.totalorder %s32, 1
      %p265 = por %p263, %p264
      %p267 = scmp.ne.s32.totalorder %s252, %s266
      %p268 = scmp.eq.s32.totalorder %s32, 0
      %p269 = por %p267, %p268
      %s271 = sadd.s32 %s270, 1
      %p274 = scmp.eq.s32.totalorder %s26, 1
      %p275 = scmp.ne.s32.totalorder %s270, %s272
      %p276 = scmp.eq.s32.totalorder %s26, 0
      %p277 = por %p275, %p276
      %p278 = scmp.ne.s32.totalorder %s270, %s272
      %p279 = scmp.eq.s32.totalorder %s31, 1
      %p280 = por %p278, %p279
      %p281 = scmp.ne.s32.totalorder %s272, %s273
      %p282 = scmp.eq.s32.totalorder %s31, 0
      %p283 = por %p281, %p282
      %p284 = scmp.ne.s32.totalorder %s272, %s273
      %p285 = scmp.eq.s32.totalorder %s32, 1
      %p286 = por %p284, %p285
      %p288 = scmp.ne.s32.totalorder %s273, %s287
      %p289 = scmp.eq.s32.totalorder %s32, 0
      %p290 = por %p288, %p289
      %s291 = ssub.s32 %s26, %s33
      %p292 = scmp.eq.s32.totalorder %s291, 0
      %s294 = sadd.s32 %s293, 1
      %s295 = scalar_select %p292, %s293, %s294
      %p298 = pneg %p292
      %p299 = scmp.eq.s32.totalorder %s26, 1
      %p300 = por %p298, %p299
      %p301 = scmp.ne.s32.totalorder %s293, %s296
      %p302 = scmp.eq.s32.totalorder %s26, 0
      %p303 = por %p301, %p302
      %p304 = scmp.ne.s32.totalorder %s293, %s296
      %p305 = scmp.eq.s32.totalorder %s31, 1
      %p306 = por %p304, %p305
      %p307 = scmp.ne.s32.totalorder %s296, %s297
      %p308 = scmp.eq.s32.totalorder %s31, 0
      %p309 = por %p307, %p308
      %p310 = scmp.ne.s32.totalorder %s296, %s297
      %p311 = scmp.eq.s32.totalorder %s32, 1
      %p312 = por %p310, %p311
      %p314 = scmp.ne.s32.totalorder %s297, %s313
      %p315 = scmp.eq.s32.totalorder %s32, 0
      %p316 = por %p314, %p315
      %p317 = scmp.le.s32.totalorder 1, %s26
      %p318 = scmp.lt.s32.totalorder %s26, 3
      %p319 = pnand %p317, %p318
      %p320 = pneg %p319
      // Predicated region
      $region9: #{tpu_custom_call.1} parent=5 // pred_check
        _
      $region10: #{tpu_custom_call.1} parent=5 // pred_check_branch
        %322 = sbr.rel (%p319) target = $region12
      $region11: #{tpu_custom_call.1} parent=5 // pred_region
        %s323 = ssub.s32 %s26, 1
        // Predicated region
        $region13: #{tpu_custom_call.1} parent=11 // pred_check
          %p324 = pneg %p73
        $region14: #{tpu_custom_call.1} parent=11 // pred_check_branch
          %326 = sbr.rel (%p324) target = $region16
        $region15: #{tpu_custom_call.1} parent=11 // pred_region
          %s328 = ssub.s32 3072, 3072
          %329 = vsyncadd [#allocation6], %s328
          %s330 = sshll.u32 [#allocation5], 4
          %s331 = int_to_ptr.vmem [resolvable:$true] %s330
          %336 = dma.hbm_to_vmem [thread:$0]  %s1, 3072, %s331, [#allocation6], 192, 192, 12
        $region16: #{tpu_custom_call.1} parent=11 // pred_fallthru
          _
        // Predicated region
        $region17: #{tpu_custom_call.1} parent=11 // pred_check
          %p337 = pneg %p94
        $region18: #{tpu_custom_call.1} parent=11 // pred_check_branch
          %339 = sbr.rel (%p337) target = $region20
        $region19: #{tpu_custom_call.1} parent=11 // pred_region
          %s341 = ssub.s32 1024, 1024
          %342 = vsyncadd [#allocation6], %s341
          %s343 = sshll.u32 [#allocation7], 4
          %s344 = int_to_ptr.vmem [resolvable:$true] %s343
          %349 = dma.hbm_to_vmem [thread:$0]  %s2, 1024, %s344, [#allocation6], 64, 64, 4
        $region20: #{tpu_custom_call.1} parent=11 // pred_fallthru
          _
        // Predicated region
        $region21: #{tpu_custom_call.1} parent=11 // pred_check
          %p350 = pneg %p115
        $region22: #{tpu_custom_call.1} parent=11 // pred_check_branch
          %352 = sbr.rel (%p350) target = $region24
        $region23: #{tpu_custom_call.1} parent=11 // pred_region
          _
        $region24: #{tpu_custom_call.1} parent=11 // pred_fallthru
          _
        // Predicated region
        $region25: #{tpu_custom_call.1} parent=11 // pred_check
          %p353 = pneg %p136
        $region26: #{tpu_custom_call.1} parent=11 // pred_check_branch
          %355 = sbr.rel (%p353) target = $region28
        $region27: #{tpu_custom_call.1} parent=11 // pred_region
          _
        $region28: #{tpu_custom_call.1} parent=11 // pred_fallthru
          _
        // Predicated region
        $region29: #{tpu_custom_call.1} parent=11 // pred_check
          %p356 = pneg %p157
        $region30: #{tpu_custom_call.1} parent=11 // pred_check_branch
          %358 = sbr.rel (%p356) target = $region32
        $region31: #{tpu_custom_call.1} parent=11 // pred_region
          _
        $region32: #{tpu_custom_call.1} parent=11 // pred_fallthru
          _
        // Predicated region
        $region33: #{tpu_custom_call.1} parent=11 // pred_check
          %p359 = pneg %p178
        $region34: #{tpu_custom_call.1} parent=11 // pred_check_branch
          %361 = sbr.rel (%p359) target = $region36
        $region35: #{tpu_custom_call.1} parent=11 // pred_region
          %s363 = ssub.s32 4096, 4096
          %364 = vsyncadd [#allocation9], %s363
          %s365 = sshll.u32 [#allocation8], 4
          %s366 = int_to_ptr.vmem [resolvable:$true] %s365
          %371 = dma.hbm_to_vmem [thread:$0]  %s6, 4096, %s366, [#allocation9], 256, 256, 16
        $region36: #{tpu_custom_call.1} parent=11 // pred_fallthru
          _
        // Predicated region
        $region37: #{tpu_custom_call.1} parent=11 // pred_check
          %p372 = pneg %p199
        $region38: #{tpu_custom_call.1} parent=11 // pred_check_branch
          %374 = sbr.rel (%p372) target = $region40
        $region39: #{tpu_custom_call.1} parent=11 // pred_region
          _
        $region40: #{tpu_custom_call.1} parent=11 // pred_fallthru
          _
        // Predicated region
        $region41: #{tpu_custom_call.1} parent=11 // pred_check
          %p375 = pneg %p220
        $region42: #{tpu_custom_call.1} parent=11 // pred_check_branch
          %377 = sbr.rel (%p375) target = $region44
        $region43: #{tpu_custom_call.1} parent=11 // pred_region
          %s379 = ssub.s32 4096, 4096
          %380 = vsyncadd [#allocation9], %s379
          %s381 = sshll.u32 [#allocation10], 4
          %s382 = int_to_ptr.vmem [resolvable:$true] %s381
          %387 = dma.hbm_to_vmem [thread:$0]  %s8, 4096, %s382, [#allocation9], 64, 64, 4
        $region44: #{tpu_custom_call.1} parent=11 // pred_fallthru
          _
        // Predicated region
        $region45: #{tpu_custom_call.1} parent=11 // pred_check
          %p388 = pneg %p241
        $region46: #{tpu_custom_call.1} parent=11 // pred_check_branch
          %390 = sbr.rel (%p388) target = $region48
        $region47: #{tpu_custom_call.1} parent=11 // pred_region
          _
        $region48: #{tpu_custom_call.1} parent=11 // pred_fallthru
          _
        // Predicated region
        $region49: #{tpu_custom_call.1} parent=11 // pred_check
          %p391 = pneg %p262
        $region50: #{tpu_custom_call.1} parent=11 // pred_check_branch
          %393 = sbr.rel (%p391) target = $region52
        $region51: #{tpu_custom_call.1} parent=11 // pred_region
          _
        $region52: #{tpu_custom_call.1} parent=11 // pred_fallthru
          _
        // Predicated region
        $region53: #{tpu_custom_call.1} parent=11 // pred_check
          %p394 = pneg %p283
        $region54: #{tpu_custom_call.1} parent=11 // pred_check_branch
          %396 = sbr.rel (%p394) target = $region56
        $region55: #{tpu_custom_call.1} parent=11 // pred_region
          _
        $region56: #{tpu_custom_call.1} parent=11 // pred_fallthru
          _
      $region12: #{tpu_custom_call.1} parent=5 // pred_fallthru
        _
      %p397 = scmp.lt.s32.totalorder %s26, 2
      // Predicated region
      $region57: #{tpu_custom_call.1} parent=5 // pred_check
        %p398 = pneg %p397
      $region58: #{tpu_custom_call.1} parent=5 // pred_check_branch
        %400 = sbr.rel (%p398) target = $region60
      $region59: #{tpu_custom_call.1} parent=5 // pred_region
        // Predicated region
        $region61: #{tpu_custom_call.1} parent=59 // pred_check
          %p401 = pneg %p46
        $region62: #{tpu_custom_call.1} parent=59 // pred_check_branch
          %403 = sbr.rel (%p401) target = $region64
        $region63: #{tpu_custom_call.1} parent=59 // pred_region
          %s404 = sand.u32 %s36, 1
          %s405 = scalar_lea.sflag [#allocation3], %s404
          %s406 = sand.u32 %s36, 1
          %s407 = smul.addr %s406, 64
          %s408 = scalar_lea.vmem [#allocation2], %s407
          %s409 = smul.u32 2, %s26
          %s411 = ssub.s32 1024, 1024
          %412 = vsyncadd %s405, %s411
          %s413 = smul.addr %s409, 4
          %s414 = smul.addr %s413, 128
          %s415 = scalar_lea.hbm %s0, %s414
          %s416 = sshll.u32 %s408, 4
          %s417 = int_to_ptr.vmem [resolvable:$true] %s416
          %422 = dma.hbm_to_vmem [thread:$0]  %s415, 1024, %s417, %s405, 128, 128, 8
        $region64: #{tpu_custom_call.1} parent=59 // pred_fallthru
          _
      $region60: #{tpu_custom_call.1} parent=5 // pred_fallthru
        _
      %p423 = scmp.le.s32.totalorder 1, %s26
      %p424 = scmp.lt.s32.totalorder %s26, 3
      %p425 = pnand %p423, %p424
      %p426 = pneg %p425
      // Predicated region
      $region65: #{tpu_custom_call.1} parent=5 // pred_check
        _
      $region66: #{tpu_custom_call.1} parent=5 // pred_check_branch
        %428 = sbr.rel (%p425) target = $region68
      $region67: #{tpu_custom_call.1} parent=5 // pred_region
        %s429 = ssub.s32 %s26, 1
        %s430 = sand.u32 %s39, 1
        %s431 = scalar_lea.sflag [#allocation3], %s430
        %s432 = sand.u32 %s39, 1
        %s433 = smul.addr %s432, 64
        %s434 = scalar_lea.vmem [#allocation2], %s433
        // Predicated region
        $region69: #{tpu_custom_call.1} parent=67 // pred_check
          %p435 = pneg %p52
        $region70: #{tpu_custom_call.1} parent=67 // pred_check_branch
          %437 = sbr.rel (%p435) target = $region72
        $region71: #{tpu_custom_call.1} parent=67 // pred_region
          %438 = dma.done %s431, 1024
        $region72: #{tpu_custom_call.1} parent=67 // pred_fallthru
          _
        // Predicated region
        $region73: #{tpu_custom_call.1} parent=67 // pred_check
          %p439 = pneg %p73
        $region74: #{tpu_custom_call.1} parent=67 // pred_check_branch
          %441 = sbr.rel (%p439) target = $region76
        $region75: #{tpu_custom_call.1} parent=67 // pred_region
          %442 = dma.done [#allocation6], 3072
        $region76: #{tpu_custom_call.1} parent=67 // pred_fallthru
          _
        // Predicated region
        $region77: #{tpu_custom_call.1} parent=67 // pred_check
          %p443 = pneg %p94
        $region78: #{tpu_custom_call.1} parent=67 // pred_check_branch
          %445 = sbr.rel (%p443) target = $region80
        $region79: #{tpu_custom_call.1} parent=67 // pred_region
          %446 = dma.done [#allocation6], 1024
        $region80: #{tpu_custom_call.1} parent=67 // pred_fallthru
          _
        // Predicated region
        $region81: #{tpu_custom_call.1} parent=67 // pred_check
          %p447 = pneg %p178
        $region82: #{tpu_custom_call.1} parent=67 // pred_check_branch
          %449 = sbr.rel (%p447) target = $region84
        $region83: #{tpu_custom_call.1} parent=67 // pred_region
          %450 = dma.done [#allocation9], 4096
        $region84: #{tpu_custom_call.1} parent=67 // pred_fallthru
          _
        // Predicated region
        $region85: #{tpu_custom_call.1} parent=67 // pred_check
          %p451 = pneg %p220
        $region86: #{tpu_custom_call.1} parent=67 // pred_check_branch
          %453 = sbr.rel (%p451) target = $region88
        $region87: #{tpu_custom_call.1} parent=67 // pred_region
          %454 = dma.done [#allocation9], 4096
        $region88: #{tpu_custom_call.1} parent=67 // pred_fallthru
          _
        %s455 = sand.u32 %s39, 1
        %s456 = scalar_lea.sflag [#allocation3], %s455
        %s457 = sand.u32 %s39, 1
        %s458 = smul.addr %s457, 64
        %s459 = scalar_lea.vmem [#allocation2], %s458
        %p460 = pneg %p52
        %p461 = pneg %p49
        %p462 = pneg %p73
        %p463 = pneg %p70
        %p464 = pneg %p94
        %p465 = pneg %p91
        %p466 = pneg %p115
        %p467 = pneg %p112
        %p468 = pneg %p136
        %p469 = pneg %p133
        %p470 = pneg %p157
        %p471 = pneg %p154
        %p472 = pneg %p178
        %p473 = pneg %p175
        %p474 = pneg %p199
        %p475 = pneg %p196
        %p476 = pneg %p220
        %p477 = pneg %p217
        %p478 = pneg %p241
        %p479 = pneg %p238
        %p480 = pneg %p262
        %p481 = pneg %p259
        %p482 = pneg %p283
        %p483 = pneg %p280
        %p484 = pneg %p309
        %p485 = pneg %p306
        %s486 = sand.u32 %s296, 1
        %s487 = scalar_lea.sflag [#allocation4], %s486
        %s488 = sand.u32 %s296, 1
        %s489 = smul.addr %s488, 64
        %s490 = scalar_lea.vmem [#allocation11], %s489
        %s491 = smul.u32 2, %s31
        %s492 = smul.u32 2, %s31
        %v494 = vld [vmem:[%s434] sm:$0xff]
        %v495 = vld [vmem:[%s434 + $0x8] sm:$0xff]
        %v496 = vld [vmem:[%s434 + $0x10] sm:$0xff]
        %v497 = vld [vmem:[%s434 + $0x18] sm:$0xff]
        %v498 = vld [vmem:[%s434 + $0x20] sm:$0xff]
        %v499 = vld [vmem:[%s434 + $0x28] sm:$0xff]
        %v500 = vld [vmem:[%s434 + $0x30] sm:$0xff]
        %v501 = vld [vmem:[%s434 + $0x38] sm:$0xff]
        %v502 = vpack.c.bf16 %v495, %v494
        %v503 = vpack.c.bf16 %v497, %v496
        %v504 = vpack.c.bf16 %v499, %v498
        %v505 = vpack.c.bf16 %v501, %v500
        %v506 = vld [vmem:[#allocation5] sm:$0xff]
        %v507 = vld [vmem:[#allocation5 + $0x8] sm:$0xf]
        %v508 = vld [vmem:[#allocation5 + $0xc] sm:$0xff]
        %v509 = vld [vmem:[#allocation5 + $0x14] sm:$0xf]
        %v510 = vld [vmem:[#allocation5 + $0x18] sm:$0xff]
        %v511 = vld [vmem:[#allocation5 + $0x20] sm:$0xf]
        %v512 = vld [vmem:[#allocation5 + $0x24] sm:$0xff]
        %v513 = vld [vmem:[#allocation5 + $0x2c] sm:$0xf]
        %v514 = vld [vmem:[#allocation5 + $0x30] sm:$0xff]
        %v515 = vld [vmem:[#allocation5 + $0x38] sm:$0xf]
        %v516 = vld [vmem:[#allocation5 + $0x3c] sm:$0xff]
        %v517 = vld [vmem:[#allocation5 + $0x44] sm:$0xf]
        %v518 = vld [vmem:[#allocation5 + $0x48] sm:$0xff]
        %v519 = vld [vmem:[#allocation5 + $0x50] sm:$0xf]
        %v520 = vld [vmem:[#allocation5 + $0x54] sm:$0xff]
        %v521 = vld [vmem:[#allocation5 + $0x5c] sm:$0xf]
        %v522 = vld [vmem:[#allocation5 + $0x60] sm:$0xff]
        %v523 = vld [vmem:[#allocation5 + $0x68] sm:$0xf]
        %v524 = vld [vmem:[#allocation5 + $0x6c] sm:$0xff]
        %v525 = vld [vmem:[#allocation5 + $0x74] sm:$0xf]
        %v526 = vld [vmem:[#allocation5 + $0x78] sm:$0xff]
        %v527 = vld [vmem:[#allocation5 + $0x80] sm:$0xf]
        %v528 = vld [vmem:[#allocation5 + $0x84] sm:$0xff]
        %v529 = vld [vmem:[#allocation5 + $0x8c] sm:$0xf]
        %v530 = vld [vmem:[#allocation5 + $0x90] sm:$0xff]
        %v531 = vld [vmem:[#allocation5 + $0x98] sm:$0xf]
        %v532 = vld [vmem:[#allocation5 + $0x9c] sm:$0xff]
        %v533 = vld [vmem:[#allocation5 + $0xa4] sm:$0xf]
        %v534 = vld [vmem:[#allocation5 + $0xa8] sm:$0xff]
        %v535 = vld [vmem:[#allocation5 + $0xb0] sm:$0xf]
        %v536 = vld [vmem:[#allocation5 + $0xb4] sm:$0xff]
        %v537 = vld [vmem:[#allocation5 + $0xbc] sm:$0xf]
        %v570 = vunpack.c.l.b16 %v506
        %v571 = vunpack.c.h.b16 %v506
        %v572 = vunpack.c.l.b16 %v507
        %v573 = vunpack.c.l.b16 %v508
        %v574 = vunpack.c.h.b16 %v508
        %v575 = vunpack.c.l.b16 %v509
        %v576 = vunpack.c.l.b16 %v510
        %v577 = vunpack.c.h.b16 %v510
        %v578 = vunpack.c.l.b16 %v511
        %v579 = vunpack.c.l.b16 %v512
        %v580 = vunpack.c.h.b16 %v512
        %v581 = vunpack.c.l.b16 %v513
        %v582 = vunpack.c.l.b16 %v514
        %v583 = vunpack.c.h.b16 %v514
        %v584 = vunpack.c.l.b16 %v515
        %v585 = vunpack.c.l.b16 %v516
        %v586 = vunpack.c.h.b16 %v516
        %v587 = vunpack.c.l.b16 %v517
        %v588 = vunpack.c.l.b16 %v518
        %v589 = vunpack.c.h.b16 %v518
        %v590 = vunpack.c.l.b16 %v519
        %v591 = vunpack.c.l.b16 %v520
        %v592 = vunpack.c.h.b16 %v520
        %v593 = vunpack.c.l.b16 %v521
        %v594 = vunpack.c.l.b16 %v522
        %v595 = vunpack.c.h.b16 %v522
        %v596 = vunpack.c.l.b16 %v523
        %v597 = vunpack.c.l.b16 %v524
        %v598 = vunpack.c.h.b16 %v524
        %v599 = vunpack.c.l.b16 %v525
        %v600 = vunpack.c.l.b16 %v526
        %v601 = vunpack.c.h.b16 %v526
        %v602 = vunpack.c.l.b16 %v527
        %v603 = vunpack.c.l.b16 %v528
        %v604 = vunpack.c.h.b16 %v528
        %v605 = vunpack.c.l.b16 %v529
        %v606 = vunpack.c.l.b16 %v530
        %v607 = vunpack.c.h.b16 %v530
        %v608 = vunpack.c.l.b16 %v531
        %v609 = vunpack.c.l.b16 %v532
        %v610 = vunpack.c.h.b16 %v532
        %v611 = vunpack.c.l.b16 %v533
        %v612 = vunpack.c.l.b16 %v534
        %v613 = vunpack.c.h.b16 %v534
        %v614 = vunpack.c.l.b16 %v535
        %v615 = vunpack.c.l.b16 %v536
        %v616 = vunpack.c.h.b16 %v536
        %v617 = vunpack.c.l.b16 %v537
        %v618 = vpack.c.b16 %v573, %v570
        %v619 = vpack.c.b16 %v574, %v571
        %v620 = vpack.c.b16 %v575, %v572
        %v621 = vpack.c.b16 %v579, %v576
        %v622 = vpack.c.b16 %v580, %v577
        %v623 = vpack.c.b16 %v581, %v578
        %v624 = vpack.c.b16 %v585, %v582
        %v625 = vpack.c.b16 %v586, %v583
        %v626 = vpack.c.b16 %v587, %v584
        %v627 = vpack.c.b16 %v591, %v588
        %v628 = vpack.c.b16 %v592, %v589
        %v629 = vpack.c.b16 %v593, %v590
        %v630 = vpack.c.b16 %v597, %v594
        %v631 = vpack.c.b16 %v598, %v595
        %v632 = vpack.c.b16 %v599, %v596
        %v633 = vpack.c.b16 %v603, %v600
        %v634 = vpack.c.b16 %v604, %v601
        %v635 = vpack.c.b16 %v605, %v602
        %v636 = vpack.c.b16 %v609, %v606
        %v637 = vpack.c.b16 %v610, %v607
        %v638 = vpack.c.b16 %v611, %v608
        %v639 = vpack.c.b16 %v615, %v612
        %v640 = vpack.c.b16 %v616, %v613
        %v641 = vpack.c.b16 %v617, %v614
        %666 = vmatprep.subr.bf16.mxu0 %v619
        %667 = vmatpush1.bf16.msra.mxu0 %v618
        %668 = vmatprep.subr.bf16.mxu0 %v622
        %669 = vmatpush1.bf16.msra.mxu0 %v621
        %670 = vmatprep.subr.bf16.mxu0 %v625
        %671 = vmatpush1.bf16.msra.mxu0 %v624
        %672 = vmatprep.subr.bf16.mxu0 %v628
        %673 = vmatpush1.bf16.msra.mxu0 %v627
        %674 = vmatprep.subr.bf16.mxu0 %v631
        %675 = vmatpush1.bf16.msra.mxu0 %v630
        %676 = vmatprep.subr.bf16.mxu0 %v634
        %677 = vmatpush1.bf16.msra.mxu0 %v633
        %678 = vmatprep.subr.bf16.mxu0 %v637
        %679 = vmatpush1.bf16.msra.mxu0 %v636
        %680 = vmatprep.subr.bf16.mxu0 %v640
        %681 = vmatpush1.bf16.msra.mxu0 %v639
        %682 = vmatprep.subr.bf16.mxu0 0
        %683 = vmatpush1.bf16.msra.mxu0 0
        %684 = vmatprep.subr.bf16.mxu0 0
        %685 = vmatpush1.bf16.msra.mxu0 0
        %686 = vmatprep.subr.bf16.mxu0 0
        %687 = vmatpush1.bf16.msra.mxu0 0
        %688 = vmatprep.subr.bf16.mxu0 0
        %689 = vmatpush1.bf16.msra.mxu0 0
        %690 = vmatprep.subr.bf16.mxu0 0
        %691 = vmatpush1.bf16.msra.mxu0 0
        %692 = vmatprep.subr.bf16.mxu0 0
        %693 = vmatpush1.bf16.msra.mxu0 0
        %694 = vmatprep.subr.bf16.mxu0 0
        %695 = vmatpush1.bf16.msra.mxu0 0
        %696 = vmatprep.subr.bf16.mxu0 0
        %697 = vmatpush1.bf16.msra.mxu0 0
        %698 = vmatprep.mubr.bf16.mxu0 0
        %699 = vmatmul.mubr.bf16.gmra.mrb[0].mxu0 %v502
        %v700 = vpop.f32.mrb[0].mxu0
        %v701 = vadd.f32 0.0, %v700
        %v702 = vpop.f32.mrb[0].mxu0
        %v703 = vadd.f32 0.0, %v702
        %v704 = vpop.f32.mrb[0].mxu0
        %v705 = vadd.f32 0.0, %v704
        %v706 = vpop.f32.mrb[0].mxu0
        %v707 = vadd.f32 0.0, %v706
        %708 = vmatprep.mubr.bf16.mxu0 0
        %709 = vmatmul.mubr.bf16.gmra.mrb[0].mxu0 %v503
        %v710 = vpop.f32.mrb[0].mxu0
        %v711 = vadd.f32 0.0, %v710
        %v712 = vpop.f32.mrb[0].mxu0
        %v713 = vadd.f32 0.0, %v712
        %v714 = vpop.f32.mrb[0].mxu0
        %v715 = vadd.f32 0.0, %v714
        %v716 = vpop.f32.mrb[0].mxu0
        %v717 = vadd.f32 0.0, %v716
        %718 = vmatprep.mubr.bf16.mxu0 0
        %719 = vmatmul.mubr.bf16.gmra.mrb[0].mxu0 %v504
        %v720 = vpop.f32.mrb[0].mxu0
        %v721 = vadd.f32 0.0, %v720
        %v722 = vpop.f32.mrb[0].mxu0
        %v723 = vadd.f32 0.0, %v722
        %v724 = vpop.f32.mrb[0].mxu0
        %v725 = vadd.f32 0.0, %v724
        %v726 = vpop.f32.mrb[0].mxu0
        %v727 = vadd.f32 0.0, %v726
        %728 = vmatprep.mubr.bf16.mxu0 0
        %729 = vmatmul.mubr.bf16.gmra.mrb[0].mxu0 %v505
        %v730 = vpop.f32.mrb[0].mxu0
        %v731 = vadd.f32 0.0, %v730
        %v732 = vpop.f32.mrb[0].mxu0
        %v733 = vadd.f32 0.0, %v732
        %v734 = vpop.f32.mrb[0].mxu0
        %v735 = vadd.f32 0.0, %v734
        %v736 = vpop.f32.mrb[0].mxu0
        %v737 = vadd.f32 0.0, %v736
        %738 = vdwg.mxu0
        %739 = vmatprep.subr.bf16.mxu0 0
        %740 = vmatpush1.bf16.msra.mxu0 %v620
        %741 = vmatprep.subr.bf16.mxu0 0
        %742 = vmatpush1.bf16.msra.mxu0 %v623
        %743 = vmatprep.subr.bf16.mxu0 0
        %744 = vmatpush1.bf16.msra.mxu0 %v626
        %745 = vmatprep.subr.bf16.mxu0 0
        %746 = vmatpush1.bf16.msra.mxu0 %v629
        %747 = vmatprep.subr.bf16.mxu0 0
        %748 = vmatpush1.bf16.msra.mxu0 %v632
        %749 = vmatprep.subr.bf16.mxu0 0
        %750 = vmatpush1.bf16.msra.mxu0 %v635
        %751 = vmatprep.subr.bf16.mxu0 0
        %752 = vmatpush1.bf16.msra.mxu0 %v638
        %753 = vmatprep.subr.bf16.mxu0 0
        %754 = vmatpush1.bf16.msra.mxu0 %v641
        %755 = vmatprep.subr.bf16.mxu0 0
        %756 = vmatpush1.bf16.msra.mxu0 0
        %757 = vmatprep.subr.bf16.mxu0 0
        %758 = vmatpush1.bf16.msra.mxu0 0
        %759 = vmatprep.subr.bf16.mxu0 0
        %760 = vmatpush1.bf16.msra.mxu0 0
        %761 = vmatprep.subr.bf16.mxu0 0
        %762 = vmatpush1.bf16.msra.mxu0 0
        %763 = vmatprep.subr.bf16.mxu0 0
        %764 = vmatpush1.bf16.msra.mxu0 0
        %765 = vmatprep.subr.bf16.mxu0 0
        %766 = vmatpush1.bf16.msra.mxu0 0
        %767 = vmatprep.subr.bf16.mxu0 0
        %768 = vmatpush1.bf16.msra.mxu0 0
        %769 = vmatprep.subr.bf16.mxu0 0
        %770 = vmatpush1.bf16.msra.mxu0 0
        %771 = vmatprep.mubr.bf16.mxu0 0
        %772 = vmatmul.mubr.bf16.gmra.mrb[0].mxu0 %v502
        %v773 = vpop.f32.mrb[0].mxu0
        %v774 = vadd.f32 0.0, %v773
        %v775 = vpop.f32.mrb[0].mxu0
        %v776 = vpop.f32.mrb[0].mxu0
        %v777 = vadd.f32 0.0, %v776
        %v778 = vpop.f32.mrb[0].mxu0
        %779 = vmatprep.mubr.bf16.mxu0 0
        %780 = vmatmul.mubr.bf16.gmra.mrb[0].mxu0 %v503
        %v781 = vpop.f32.mrb[0].mxu0
        %v782 = vadd.f32 0.0, %v781
        %v783 = vpop.f32.mrb[0].mxu0
        %v784 = vpop.f32.mrb[0].mxu0
        %v785 = vadd.f32 0.0, %v784
        %v786 = vpop.f32.mrb[0].mxu0
        %787 = vmatprep.mubr.bf16.mxu0 0
        %788 = vmatmul.mubr.bf16.gmra.mrb[0].mxu0 %v504
        %v789 = vpop.f32.mrb[0].mxu0
        %v790 = vadd.f32 0.0, %v789
        %v791 = vpop.f32.mrb[0].mxu0
        %v792 = vpop.f32.mrb[0].mxu0
        %v793 = vadd.f32 0.0, %v792
        %v794 = vpop.f32.mrb[0].mxu0
        %795 = vmatprep.mubr.bf16.mxu0 0
        %796 = vmatmul.mubr.bf16.gmra.mrb[0].mxu0 %v505
        %v797 = vpop.f32.mrb[0].mxu0
        %v798 = vadd.f32 0.0, %v797
        %v799 = vpop.f32.mrb[0].mxu0
        %v800 = vpop.f32.mrb[0].mxu0
        %v801 = vadd.f32 0.0, %v800
        %v802 = vpop.f32.mrb[0].mxu0
        %803 = vdwg.mxu0
        %812 = vrot.lane.b32.xlu0 %v701, 112
        %v813 = vpop.permute.xlu0 %812
        %814 = vrot.lane.b32.xlu0 %v705, 112
        %v815 = vpop.permute.xlu0 %814
        %816 = vrot.lane.b32.xlu0 %v711, 112
        %v817 = vpop.permute.xlu0 %816
        %818 = vrot.lane.b32.xlu0 %v715, 112
        %v819 = vpop.permute.xlu0 %818
        %820 = vrot.lane.b32.xlu0 %v721, 112
        %v821 = vpop.permute.xlu0 %820
        %822 = vrot.lane.b32.xlu0 %v725, 112
        %v823 = vpop.permute.xlu0 %822
        %824 = vrot.lane.b32.xlu0 %v731, 112
        %v825 = vpop.permute.xlu0 %824
        %826 = vrot.lane.b32.xlu0 %v735, 112
        %v827 = vpop.permute.xlu0 %826
        %836 = vrot.lane.b32.xlu0 %v701, 96
        %v837 = vpop.permute.xlu0 %836
        %838 = vrot.lane.b32.xlu0 %v705, 96
        %v839 = vpop.permute.xlu0 %838
        %840 = vrot.lane.b32.xlu0 %v711, 96
        %v841 = vpop.permute.xlu0 %840
        %842 = vrot.lane.b32.xlu0 %v715, 96
        %v843 = vpop.permute.xlu0 %842
        %844 = vrot.lane.b32.xlu0 %v721, 96
        %v845 = vpop.permute.xlu0 %844
        %846 = vrot.lane.b32.xlu0 %v725, 96
        %v847 = vpop.permute.xlu0 %846
        %848 = vrot.lane.b32.xlu0 %v731, 96
        %v849 = vpop.permute.xlu0 %848
        %850 = vrot.lane.b32.xlu0 %v735, 96
        %v851 = vpop.permute.xlu0 %850
        %860 = vrot.lane.b32.xlu0 %v701, 80
        %v861 = vpop.permute.xlu0 %860
        %862 = vrot.lane.b32.xlu0 %v705, 80
        %v863 = vpop.permute.xlu0 %862
        %864 = vrot.lane.b32.xlu0 %v711, 80
        %v865 = vpop.permute.xlu0 %864
        %866 = vrot.lane.b32.xlu0 %v715, 80
        %v867 = vpop.permute.xlu0 %866
        %868 = vrot.lane.b32.xlu0 %v721, 80
        %v869 = vpop.permute.xlu0 %868
        %870 = vrot.lane.b32.xlu0 %v725, 80
        %v871 = vpop.permute.xlu0 %870
        %872 = vrot.lane.b32.xlu0 %v731, 80
        %v873 = vpop.permute.xlu0 %872
        %874 = vrot.lane.b32.xlu0 %v735, 80
        %v875 = vpop.permute.xlu0 %874
        %884 = vrot.lane.b32.xlu0 %v701, 64
        %v885 = vpop.permute.xlu0 %884
        %886 = vrot.lane.b32.xlu0 %v705, 64
        %v887 = vpop.permute.xlu0 %886
        %888 = vrot.lane.b32.xlu0 %v711, 64
        %v889 = vpop.permute.xlu0 %888
        %890 = vrot.lane.b32.xlu0 %v715, 64
        %v891 = vpop.permute.xlu0 %890
        %892 = vrot.lane.b32.xlu0 %v721, 64
        %v893 = vpop.permute.xlu0 %892
        %894 = vrot.lane.b32.xlu0 %v725, 64
        %v895 = vpop.permute.xlu0 %894
        %896 = vrot.lane.b32.xlu0 %v731, 64
        %v897 = vpop.permute.xlu0 %896
        %898 = vrot.lane.b32.xlu0 %v735, 64
        %v899 = vpop.permute.xlu0 %898
        %908 = vrot.lane.b32.xlu0 %v701, 48
        %v909 = vpop.permute.xlu0 %908
        %910 = vrot.lane.b32.xlu0 %v705, 48
        %v911 = vpop.permute.xlu0 %910
        %912 = vrot.lane.b32.xlu0 %v711, 48
        %v913 = vpop.permute.xlu0 %912
        %914 = vrot.lane.b32.xlu0 %v715, 48
        %v915 = vpop.permute.xlu0 %914
        %916 = vrot.lane.b32.xlu0 %v721, 48
        %v917 = vpop.permute.xlu0 %916
        %918 = vrot.lane.b32.xlu0 %v725, 48
        %v919 = vpop.permute.xlu0 %918
        %920 = vrot.lane.b32.xlu0 %v731, 48
        %v921 = vpop.permute.xlu0 %920
        %922 = vrot.lane.b32.xlu0 %v735, 48
        %v923 = vpop.permute.xlu0 %922
        %932 = vrot.lane.b32.xlu0 %v701, 32
        %v933 = vpop.permute.xlu0 %932
        %934 = vrot.lane.b32.xlu0 %v705, 32
        %v935 = vpop.permute.xlu0 %934
        %936 = vrot.lane.b32.xlu0 %v711, 32
        %v937 = vpop.permute.xlu0 %936
        %938 = vrot.lane.b32.xlu0 %v715, 32
        %v939 = vpop.permute.xlu0 %938
        %940 = vrot.lane.b32.xlu0 %v721, 32
        %v941 = vpop.permute.xlu0 %940
        %942 = vrot.lane.b32.xlu0 %v725, 32
        %v943 = vpop.permute.xlu0 %942
        %944 = vrot.lane.b32.xlu0 %v731, 32
        %v945 = vpop.permute.xlu0 %944
        %946 = vrot.lane.b32.xlu0 %v735, 32
        %v947 = vpop.permute.xlu0 %946
        %956 = vrot.lane.b32.xlu0 %v701, 16
        %v957 = vpop.permute.xlu0 %956
        %958 = vrot.lane.b32.xlu0 %v705, 16
        %v959 = vpop.permute.xlu0 %958
        %960 = vrot.lane.b32.xlu0 %v711, 16
        %v961 = vpop.permute.xlu0 %960
        %962 = vrot.lane.b32.xlu0 %v715, 16
        %v963 = vpop.permute.xlu0 %962
        %964 = vrot.lane.b32.xlu0 %v721, 16
        %v965 = vpop.permute.xlu0 %964
        %966 = vrot.lane.b32.xlu0 %v725, 16
        %v967 = vpop.permute.xlu0 %966
        %968 = vrot.lane.b32.xlu0 %v731, 16
        %v969 = vpop.permute.xlu0 %968
        %970 = vrot.lane.b32.xlu0 %v735, 16
        %v971 = vpop.permute.xlu0 %970
        %v980 = vpack.c.bf16 %v705, %v701
        %v981 = vpack.c.bf16 %v715, %v711
        %v982 = vpack.c.bf16 %v725, %v721
        %v983 = vpack.c.bf16 %v735, %v731
        %v984 = vpack.c.bf16 %v815, %v813
        %v985 = vpack.c.bf16 %v819, %v817
        %v986 = vpack.c.bf16 %v823, %v821
        %v987 = vpack.c.bf16 %v827, %v825
        %v988 = vpack.c.bf16 %v839, %v837
        %v989 = vpack.c.bf16 %v843, %v841
        %v990 = vpack.c.bf16 %v847, %v845
        %v991 = vpack.c.bf16 %v851, %v849
        %v992 = vpack.c.bf16 %v863, %v861
        %v993 = vpack.c.bf16 %v867, %v865
        %v994 = vpack.c.bf16 %v871, %v869
        %v995 = vpack.c.bf16 %v875, %v873
        %v996 = vpack.c.bf16 %v887, %v885
        %v997 = vpack.c.bf16 %v891, %v889
        %v998 = vpack.c.bf16 %v895, %v893
        %v999 = vpack.c.bf16 %v899, %v897
        %v1000 = vpack.c.bf16 %v911, %v909
        %v1001 = vpack.c.bf16 %v915, %v913
        %v1002 = vpack.c.bf16 %v919, %v917
        %v1003 = vpack.c.bf16 %v923, %v921
        %v1004 = vpack.c.bf16 %v935, %v933
        %v1005 = vpack.c.bf16 %v939, %v937
        %v1006 = vpack.c.bf16 %v943, %v941
        %v1007 = vpack.c.bf16 %v947, %v945
        %v1008 = vpack.c.bf16 %v959, %v957
        %v1009 = vpack.c.bf16 %v963, %v961
        %v1010 = vpack.c.bf16 %v967, %v965
        %v1011 = vpack.c.bf16 %v971, %v969
        %1020 = vrot.lane.b32.xlu0 %v703, 112
        %v1021 = vpop.permute.xlu0 %1020
        %1022 = vrot.lane.b32.xlu0 %v707, 112
        %v1023 = vpop.permute.xlu0 %1022
        %1024 = vrot.lane.b32.xlu0 %v713, 112
        %v1025 = vpop.permute.xlu0 %1024
        %1026 = vrot.lane.b32.xlu0 %v717, 112
        %v1027 = vpop.permute.xlu0 %1026
        %1028 = vrot.lane.b32.xlu0 %v723, 112
        %v1029 = vpop.permute.xlu0 %1028
        %1030 = vrot.lane.b32.xlu0 %v727, 112
        %v1031 = vpop.permute.xlu0 %1030
        %1032 = vrot.lane.b32.xlu0 %v733, 112
        %v1033 = vpop.permute.xlu0 %1032
        %1034 = vrot.lane.b32.xlu0 %v737, 112
        %v1035 = vpop.permute.xlu0 %1034
        %1044 = vrot.lane.b32.xlu0 %v703, 96
        %v1045 = vpop.permute.xlu0 %1044
        %1046 = vrot.lane.b32.xlu0 %v707, 96
        %v1047 = vpop.permute.xlu0 %1046
        %1048 = vrot.lane.b32.xlu0 %v713, 96
        %v1049 = vpop.permute.xlu0 %1048
        %1050 = vrot.lane.b32.xlu0 %v717, 96
        %v1051 = vpop.permute.xlu0 %1050
        %1052 = vrot.lane.b32.xlu0 %v723, 96
        %v1053 = vpop.permute.xlu0 %1052
        %1054 = vrot.lane.b32.xlu0 %v727, 96
        %v1055 = vpop.permute.xlu0 %1054
        %1056 = vrot.lane.b32.xlu0 %v733, 96
        %v1057 = vpop.permute.xlu0 %1056
        %1058 = vrot.lane.b32.xlu0 %v737, 96
        %v1059 = vpop.permute.xlu0 %1058
        %1068 = vrot.lane.b32.xlu0 %v703, 80
        %v1069 = vpop.permute.xlu0 %1068
        %1070 = vrot.lane.b32.xlu0 %v707, 80
        %v1071 = vpop.permute.xlu0 %1070
        %1072 = vrot.lane.b32.xlu0 %v713, 80
        %v1073 = vpop.permute.xlu0 %1072
        %1074 = vrot.lane.b32.xlu0 %v717, 80
        %v1075 = vpop.permute.xlu0 %1074
        %1076 = vrot.lane.b32.xlu0 %v723, 80
        %v1077 = vpop.permute.xlu0 %1076
        %1078 = vrot.lane.b32.xlu0 %v727, 80
        %v1079 = vpop.permute.xlu0 %1078
        %1080 = vrot.lane.b32.xlu0 %v733, 80
        %v1081 = vpop.permute.xlu0 %1080
        %1082 = vrot.lane.b32.xlu0 %v737, 80
        %v1083 = vpop.permute.xlu0 %1082
        %1092 = vrot.lane.b32.xlu0 %v703, 64
        %v1093 = vpop.permute.xlu0 %1092
        %1094 = vrot.lane.b32.xlu0 %v707, 64
        %v1095 = vpop.permute.xlu0 %1094
        %1096 = vrot.lane.b32.xlu0 %v713, 64
        %v1097 = vpop.permute.xlu0 %1096
        %1098 = vrot.lane.b32.xlu0 %v717, 64
        %v1099 = vpop.permute.xlu0 %1098
        %1100 = vrot.lane.b32.xlu0 %v723, 64
        %v1101 = vpop.permute.xlu0 %1100
        %1102 = vrot.lane.b32.xlu0 %v727, 64
        %v1103 = vpop.permute.xlu0 %1102
        %1104 = vrot.lane.b32.xlu0 %v733, 64
        %v1105 = vpop.permute.xlu0 %1104
        %1106 = vrot.lane.b32.xlu0 %v737, 64
        %v1107 = vpop.permute.xlu0 %1106
        %1116 = vrot.lane.b32.xlu0 %v703, 48
        %v1117 = vpop.permute.xlu0 %1116
        %1118 = vrot.lane.b32.xlu0 %v707, 48
        %v1119 = vpop.permute.xlu0 %1118
        %1120 = vrot.lane.b32.xlu0 %v713, 48
        %v1121 = vpop.permute.xlu0 %1120
        %1122 = vrot.lane.b32.xlu0 %v717, 48
        %v1123 = vpop.permute.xlu0 %1122
        %1124 = vrot.lane.b32.xlu0 %v723, 48
        %v1125 = vpop.permute.xlu0 %1124
        %1126 = vrot.lane.b32.xlu0 %v727, 48
        %v1127 = vpop.permute.xlu0 %1126
        %1128 = vrot.lane.b32.xlu0 %v733, 48
        %v1129 = vpop.permute.xlu0 %1128
        %1130 = vrot.lane.b32.xlu0 %v737, 48
        %v1131 = vpop.permute.xlu0 %1130
        %1140 = vrot.lane.b32.xlu0 %v703, 32
        %v1141 = vpop.permute.xlu0 %1140
        %1142 = vrot.lane.b32.xlu0 %v707, 32
        %v1143 = vpop.permute.xlu0 %1142
        %1144 = vrot.lane.b32.xlu0 %v713, 32
        %v1145 = vpop.permute.xlu0 %1144
        %1146 = vrot.lane.b32.xlu0 %v717, 32
        %v1147 = vpop.permute.xlu0 %1146
        %1148 = vrot.lane.b32.xlu0 %v723, 32
        %v1149 = vpop.permute.xlu0 %1148
        %1150 = vrot.lane.b32.xlu0 %v727, 32
        %v1151 = vpop.permute.xlu0 %1150
        %1152 = vrot.lane.b32.xlu0 %v733, 32
        %v1153 = vpop.permute.xlu0 %1152
        %1154 = vrot.lane.b32.xlu0 %v737, 32
        %v1155 = vpop.permute.xlu0 %1154
        %1164 = vrot.lane.b32.xlu0 %v703, 16
        %v1165 = vpop.permute.xlu0 %1164
        %1166 = vrot.lane.b32.xlu0 %v707, 16
        %v1167 = vpop.permute.xlu0 %1166
        %1168 = vrot.lane.b32.xlu0 %v713, 16
        %v1169 = vpop.permute.xlu0 %1168
        %1170 = vrot.lane.b32.xlu0 %v717, 16
        %v1171 = vpop.permute.xlu0 %1170
        %1172 = vrot.lane.b32.xlu0 %v723, 16
        %v1173 = vpop.permute.xlu0 %1172
        %1174 = vrot.lane.b32.xlu0 %v727, 16
        %v1175 = vpop.permute.xlu0 %1174
        %1176 = vrot.lane.b32.xlu0 %v733, 16
        %v1177 = vpop.permute.xlu0 %1176
        %1178 = vrot.lane.b32.xlu0 %v737, 16
        %v1179 = vpop.permute.xlu0 %1178
        %v1188 = vpack.c.bf16 %v707, %v703
        %v1189 = vpack.c.bf16 %v717, %v713
        %v1190 = vpack.c.bf16 %v727, %v723
        %v1191 = vpack.c.bf16 %v737, %v733
        %v1192 = vpack.c.bf16 %v1023, %v1021
        %v1193 = vpack.c.bf16 %v1027, %v1025
        %v1194 = vpack.c.bf16 %v1031, %v1029
        %v1195 = vpack.c.bf16 %v1035, %v1033
        %v1196 = vpack.c.bf16 %v1047, %v1045
        %v1197 = vpack.c.bf16 %v1051, %v1049
        %v1198 = vpack.c.bf16 %v1055, %v1053
        %v1199 = vpack.c.bf16 %v1059, %v1057
        %v1200 = vpack.c.bf16 %v1071, %v1069
        %v1201 = vpack.c.bf16 %v1075, %v1073
        %v1202 = vpack.c.bf16 %v1079, %v1077
        %v1203 = vpack.c.bf16 %v1083, %v1081
        %v1204 = vpack.c.bf16 %v1095, %v1093
        %v1205 = vpack.c.bf16 %v1099, %v1097
        %v1206 = vpack.c.bf16 %v1103, %v1101
        %v1207 = vpack.c.bf16 %v1107, %v1105
        %v1208 = vpack.c.bf16 %v1119, %v1117
        %v1209 = vpack.c.bf16 %v1123, %v1121
        %v1210 = vpack.c.bf16 %v1127, %v1125
        %v1211 = vpack.c.bf16 %v1131, %v1129
        %v1212 = vpack.c.bf16 %v1143, %v1141
        %v1213 = vpack.c.bf16 %v1147, %v1145
        %v1214 = vpack.c.bf16 %v1151, %v1149
        %v1215 = vpack.c.bf16 %v1155, %v1153
        %v1216 = vpack.c.bf16 %v1167, %v1165
        %v1217 = vpack.c.bf16 %v1171, %v1169
        %v1218 = vpack.c.bf16 %v1175, %v1173
        %v1219 = vpack.c.bf16 %v1179, %v1177
        %1228 = vrot.lane.b32.xlu0 %v774, 112
        %v1229 = vpop.permute.xlu0 %1228
        %1230 = vrot.lane.b32.xlu0 %v777, 112
        %v1231 = vpop.permute.xlu0 %1230
        %1232 = vrot.lane.b32.xlu0 %v782, 112
        %v1233 = vpop.permute.xlu0 %1232
        %1234 = vrot.lane.b32.xlu0 %v785, 112
        %v1235 = vpop.permute.xlu0 %1234
        %1236 = vrot.lane.b32.xlu0 %v790, 112
        %v1237 = vpop.permute.xlu0 %1236
        %1238 = vrot.lane.b32.xlu0 %v793, 112
        %v1239 = vpop.permute.xlu0 %1238
        %1240 = vrot.lane.b32.xlu0 %v798, 112
        %v1241 = vpop.permute.xlu0 %1240
        %1242 = vrot.lane.b32.xlu0 %v801, 112
        %v1243 = vpop.permute.xlu0 %1242
        %1252 = vrot.lane.b32.xlu0 %v774, 96
        %v1253 = vpop.permute.xlu0 %1252
        %1254 = vrot.lane.b32.xlu0 %v777, 96
        %v1255 = vpop.permute.xlu0 %1254
        %1256 = vrot.lane.b32.xlu0 %v782, 96
        %v1257 = vpop.permute.xlu0 %1256
        %1258 = vrot.lane.b32.xlu0 %v785, 96
        %v1259 = vpop.permute.xlu0 %1258
        %1260 = vrot.lane.b32.xlu0 %v790, 96
        %v1261 = vpop.permute.xlu0 %1260
        %1262 = vrot.lane.b32.xlu0 %v793, 96
        %v1263 = vpop.permute.xlu0 %1262
        %1264 = vrot.lane.b32.xlu0 %v798, 96
        %v1265 = vpop.permute.xlu0 %1264
        %1266 = vrot.lane.b32.xlu0 %v801, 96
        %v1267 = vpop.permute.xlu0 %1266
        %1276 = vrot.lane.b32.xlu0 %v774, 80
        %v1277 = vpop.permute.xlu0 %1276
        %1278 = vrot.lane.b32.xlu0 %v777, 80
        %v1279 = vpop.permute.xlu0 %1278
        %1280 = vrot.lane.b32.xlu0 %v782, 80
        %v1281 = vpop.permute.xlu0 %1280
        %1282 = vrot.lane.b32.xlu0 %v785, 80
        %v1283 = vpop.permute.xlu0 %1282
        %1284 = vrot.lane.b32.xlu0 %v790, 80
        %v1285 = vpop.permute.xlu0 %1284
        %1286 = vrot.lane.b32.xlu0 %v793, 80
        %v1287 = vpop.permute.xlu0 %1286
        %1288 = vrot.lane.b32.xlu0 %v798, 80
        %v1289 = vpop.permute.xlu0 %1288
        %1290 = vrot.lane.b32.xlu0 %v801, 80
        %v1291 = vpop.permute.xlu0 %1290
        %1300 = vrot.lane.b32.xlu0 %v774, 64
        %v1301 = vpop.permute.xlu0 %1300
        %1302 = vrot.lane.b32.xlu0 %v777, 64
        %v1303 = vpop.permute.xlu0 %1302
        %1304 = vrot.lane.b32.xlu0 %v782, 64
        %v1305 = vpop.permute.xlu0 %1304
        %1306 = vrot.lane.b32.xlu0 %v785, 64
        %v1307 = vpop.permute.xlu0 %1306
        %1308 = vrot.lane.b32.xlu0 %v790, 64
        %v1309 = vpop.permute.xlu0 %1308
        %1310 = vrot.lane.b32.xlu0 %v793, 64
        %v1311 = vpop.permute.xlu0 %1310
        %1312 = vrot.lane.b32.xlu0 %v798, 64
        %v1313 = vpop.permute.xlu0 %1312
        %1314 = vrot.lane.b32.xlu0 %v801, 64
        %v1315 = vpop.permute.xlu0 %1314
        %1324 = vrot.lane.b32.xlu0 %v774, 48
        %v1325 = vpop.permute.xlu0 %1324
        %1326 = vrot.lane.b32.xlu0 %v777, 48
        %v1327 = vpop.permute.xlu0 %1326
        %1328 = vrot.lane.b32.xlu0 %v782, 48
        %v1329 = vpop.permute.xlu0 %1328
        %1330 = vrot.lane.b32.xlu0 %v785, 48
        %v1331 = vpop.permute.xlu0 %1330
        %1332 = vrot.lane.b32.xlu0 %v790, 48
        %v1333 = vpop.permute.xlu0 %1332
        %1334 = vrot.lane.b32.xlu0 %v793, 48
        %v1335 = vpop.permute.xlu0 %1334
        %1336 = vrot.lane.b32.xlu0 %v798, 48
        %v1337 = vpop.permute.xlu0 %1336
        %1338 = vrot.lane.b32.xlu0 %v801, 48
        %v1339 = vpop.permute.xlu0 %1338
        %1348 = vrot.lane.b32.xlu0 %v774, 32
        %v1349 = vpop.permute.xlu0 %1348
        %1350 = vrot.lane.b32.xlu0 %v777, 32
        %v1351 = vpop.permute.xlu0 %1350
        %1352 = vrot.lane.b32.xlu0 %v782, 32
        %v1353 = vpop.permute.xlu0 %1352
        %1354 = vrot.lane.b32.xlu0 %v785, 32
        %v1355 = vpop.permute.xlu0 %1354
        %1356 = vrot.lane.b32.xlu0 %v790, 32
        %v1357 = vpop.permute.xlu0 %1356
        %1358 = vrot.lane.b32.xlu0 %v793, 32
        %v1359 = vpop.permute.xlu0 %1358
        %1360 = vrot.lane.b32.xlu0 %v798, 32
        %v1361 = vpop.permute.xlu0 %1360
        %1362 = vrot.lane.b32.xlu0 %v801, 32
        %v1363 = vpop.permute.xlu0 %1362
        %1372 = vrot.lane.b32.xlu0 %v774, 16
        %v1373 = vpop.permute.xlu0 %1372
        %1374 = vrot.lane.b32.xlu0 %v777, 16
        %v1375 = vpop.permute.xlu0 %1374
        %1376 = vrot.lane.b32.xlu0 %v782, 16
        %v1377 = vpop.permute.xlu0 %1376
        %1378 = vrot.lane.b32.xlu0 %v785, 16
        %v1379 = vpop.permute.xlu0 %1378
        %1380 = vrot.lane.b32.xlu0 %v790, 16
        %v1381 = vpop.permute.xlu0 %1380
        %1382 = vrot.lane.b32.xlu0 %v793, 16
        %v1383 = vpop.permute.xlu0 %1382
        %1384 = vrot.lane.b32.xlu0 %v798, 16
        %v1385 = vpop.permute.xlu0 %1384
        %1386 = vrot.lane.b32.xlu0 %v801, 16
        %v1387 = vpop.permute.xlu0 %1386
        %v1396 = vpack.c.bf16 %v777, %v774
        %v1397 = vpack.c.bf16 %v785, %v782
        %v1398 = vpack.c.bf16 %v793, %v790
        %v1399 = vpack.c.bf16 %v801, %v798
        %v1400 = vpack.c.bf16 %v1231, %v1229
        %v1401 = vpack.c.bf16 %v1235, %v1233
        %v1402 = vpack.c.bf16 %v1239, %v1237
        %v1403 = vpack.c.bf16 %v1243, %v1241
        %v1404 = vpack.c.bf16 %v1255, %v1253
        %v1405 = vpack.c.bf16 %v1259, %v1257
        %v1406 = vpack.c.bf16 %v1263, %v1261
        %v1407 = vpack.c.bf16 %v1267, %v1265
        %v1408 = vpack.c.bf16 %v1279, %v1277
        %v1409 = vpack.c.bf16 %v1283, %v1281
        %v1410 = vpack.c.bf16 %v1287, %v1285
        %v1411 = vpack.c.bf16 %v1291, %v1289
        %v1412 = vpack.c.bf16 %v1303, %v1301
        %v1413 = vpack.c.bf16 %v1307, %v1305
        %v1414 = vpack.c.bf16 %v1311, %v1309
        %v1415 = vpack.c.bf16 %v1315, %v1313
        %v1416 = vpack.c.bf16 %v1327, %v1325
        %v1417 = vpack.c.bf16 %v1331, %v1329
        %v1418 = vpack.c.bf16 %v1335, %v1333
        %v1419 = vpack.c.bf16 %v1339, %v1337
        %v1420 = vpack.c.bf16 %v1351, %v1349
        %v1421 = vpack.c.bf16 %v1355, %v1353
        %v1422 = vpack.c.bf16 %v1359, %v1357
        %v1423 = vpack.c.bf16 %v1363, %v1361
        %v1424 = vpack.c.bf16 %v1375, %v1373
        %v1425 = vpack.c.bf16 %v1379, %v1377
        %v1426 = vpack.c.bf16 %v1383, %v1381
        %v1427 = vpack.c.bf16 %v1387, %v1385
        %vm1428 = vcmask 130048
        %v1430 = vsel %vm1428, %v980, 0
        %v1433 = vsel %vm1428, %v981, 0
        %v1436 = vsel %vm1428, %v1188, 0
        %v1439 = vsel %vm1428, %v1189, 0
        %1441 = vmatprep.subr.bf16.mxu0 0
        %1442 = vmatpush1.bf16.xpose.msra.mxu0 %v1436
        %1443 = vmatprep.subr.bf16.mxu0 0
        %1444 = vmatpush1.bf16.xpose.msra.mxu0 %v1439
        %1445 = vmatprep.subr.bf16.mxu0 0
        %1446 = vmatpush1.bf16.xpose.msra.mxu0 0
        %1447 = vmatprep.subr.bf16.mxu0 0
        %1448 = vmatpush1.bf16.xpose.msra.mxu0 0
        %1449 = vmatprep.subr.bf16.mxu0 0
        %1450 = vmatpush1.bf16.xpose.msra.mxu0 0
        %1451 = vmatprep.subr.bf16.mxu0 0
        %1452 = vmatpush1.bf16.xpose.msra.mxu0 0
        %1453 = vmatprep.subr.bf16.mxu0 0
        %1454 = vmatpush1.bf16.xpose.msra.mxu0 0
        %1455 = vmatprep.subr.bf16.mxu0 0
        %1456 = vmatpush1.bf16.xpose.msra.mxu0 0
        %1457 = vmatprep.subr.bf16.mxu0 0
        %1458 = vmatpush1.bf16.xpose.msra.mxu0 0
        %1459 = vmatprep.subr.bf16.mxu0 0
        %1460 = vmatpush1.bf16.xpose.msra.mxu0 0
        %1461 = vmatprep.subr.bf16.mxu0 0
        %1462 = vmatpush1.bf16.xpose.msra.mxu0 0
        %1463 = vmatprep.subr.bf16.mxu0 0
        %1464 = vmatpush1.bf16.xpose.msra.mxu0 0
        %1465 = vmatprep.subr.bf16.mxu0 0
        %1466 = vmatpush1.bf16.xpose.msra.mxu0 0
        %1467 = vmatprep.subr.bf16.mxu0 0
        %1468 = vmatpush1.bf16.xpose.msra.mxu0 0
        %1469 = vmatprep.subr.bf16.mxu0 0
        %1470 = vmatpush1.bf16.xpose.msra.mxu0 0
        %1471 = vmatprep.subr.bf16.mxu0 0
        %1472 = vmatpush1.bf16.xpose.msra.mxu0 0
        %1473 = vmatprep.mubr.bf16.mxu0 0
        %1474 = vmatmul.mubr.bf16.gmra.mrb[0].mxu0 %v1430
        %v1475 = vpop.f32.mrb[0].mxu0
        %v1476 = vadd.f32 0.0, %v1475
        %v1477 = vpop.f32.mrb[0].mxu0
        %v1478 = vpop.f32.mrb[0].mxu0
        %v1479 = vadd.f32 0.0, %v1478
        %v1480 = vpop.f32.mrb[0].mxu0
        %1481 = vmatprep.mubr.bf16.mxu0 0
        %1482 = vmatmul.mubr.bf16.gmra.mrb[0].mxu0 %v1433
        %v1483 = vpop.f32.mrb[0].mxu0
        %v1484 = vadd.f32 0.0, %v1483
        %v1485 = vpop.f32.mrb[0].mxu0
        %v1486 = vpop.f32.mrb[0].mxu0
        %v1487 = vadd.f32 0.0, %v1486
        %v1488 = vpop.f32.mrb[0].mxu0
        %1489 = vdwg.mxu0
        %v1491 = vsel %vm1428, %v982, 0
        %v1494 = vsel %vm1428, %v983, 0
        %v1497 = vsel %vm1428, %v1190, 0
        %v1500 = vsel %vm1428, %v1191, 0
        %1502 = vmatprep.subr.bf16.mxu0 0
        %1503 = vmatpush1.bf16.xpose.msra.mxu0 %v1497
        %1504 = vmatprep.subr.bf16.mxu0 0
        %1505 = vmatpush1.bf16.xpose.msra.mxu0 %v1500
        %1506 = vmatprep.subr.bf16.mxu0 0
        %1507 = vmatpush1.bf16.xpose.msra.mxu0 0
        %1508 = vmatprep.subr.bf16.mxu0 0
        %1509 = vmatpush1.bf16.xpose.msra.mxu0 0
        %1510 = vmatprep.subr.bf16.mxu0 0
        %1511 = vmatpush1.bf16.xpose.msra.mxu0 0
        %1512 = vmatprep.subr.bf16.mxu0 0
        %1513 = vmatpush1.bf16.xpose.msra.mxu0 0
        %1514 = vmatprep.subr.bf16.mxu0 0
        %1515 = vmatpush1.bf16.xpose.msra.mxu0 0
        %1516 = vmatprep.subr.bf16.mxu0 0
        %1517 = vmatpush1.bf16.xpose.msra.mxu0 0
        %1518 = vmatprep.subr.bf16.mxu0 0
        %1519 = vmatpush1.bf16.xpose.msra.mxu0 0
        %1520 = vmatprep.subr.bf16.mxu0 0
        %1521 = vmatpush1.bf16.xpose.msra.mxu0 0
        %1522 = vmatprep.subr.bf16.mxu0 0
        %1523 = vmatpush1.bf16.xpose.msra.mxu0 0
        %1524 = vmatprep.subr.bf16.mxu0 0
        %1525 = vmatpush1.bf16.xpose.msra.mxu0 0
        %1526 = vmatprep.subr.bf16.mxu0 0
        %1527 = vmatpush1.bf16.xpose.msra.mxu0 0
        %1528 = vmatprep.subr.bf16.mxu0 0
        %1529 = vmatpush1.bf16.xpose.msra.mxu0 0
        %1530 = vmatprep.subr.bf16.mxu0 0
        %1531 = vmatpush1.bf16.xpose.msra.mxu0 0
        %1532 = vmatprep.subr.bf16.mxu0 0
        %1533 = vmatpush1.bf16.xpose.msra.mxu0 0
        %1534 = vmatprep.mubr.bf16.mxu0 0
        %1535 = vmatmul.mubr.bf16.gmra.mrb[0].mxu0 %v1491
        %v1536 = vpop.f32.mrb[0].mxu0
        %v1537 = vadd.f32 0.0, %v1536
        %v1538 = vpop.f32.mrb[0].mxu0
        %v1539 = vpop.f32.mrb[0].mxu0
        %v1540 = vadd.f32 0.0, %v1539
        %v1541 = vpop.f32.mrb[0].mxu0
        %1542 = vmatprep.mubr.bf16.mxu0 0
        %1543 = vmatmul.mubr.bf16.gmra.mrb[0].mxu0 %v1494
        %v1544 = vpop.f32.mrb[0].mxu0
        %v1545 = vadd.f32 0.0, %v1544
        %v1546 = vpop.f32.mrb[0].mxu0
        %v1547 = vpop.f32.mrb[0].mxu0
        %v1548 = vadd.f32 0.0, %v1547
        %v1549 = vpop.f32.mrb[0].mxu0
        %1550 = vdwg.mxu0
        %v1552 = vsel %vm1428, %v984, 0
        %v1555 = vsel %vm1428, %v985, 0
        %v1558 = vsel %vm1428, %v1192, 0
        %v1561 = vsel %vm1428, %v1193, 0
        %1563 = vmatprep.subr.bf16.mxu0 0
        %1564 = vmatpush1.bf16.xpose.msra.mxu0 %v1558
        %1565 = vmatprep.subr.bf16.mxu0 0
        %1566 = vmatpush1.bf16.xpose.msra.mxu0 %v1561
        %1567 = vmatprep.subr.bf16.mxu0 0
        %1568 = vmatpush1.bf16.xpose.msra.mxu0 0
        %1569 = vmatprep.subr.bf16.mxu0 0
        %1570 = vmatpush1.bf16.xpose.msra.mxu0 0
        %1571 = vmatprep.subr.bf16.mxu0 0
        %1572 = vmatpush1.bf16.xpose.msra.mxu0 0
        %1573 = vmatprep.subr.bf16.mxu0 0
        %1574 = vmatpush1.bf16.xpose.msra.mxu0 0
        %1575 = vmatprep.subr.bf16.mxu0 0
        %1576 = vmatpush1.bf16.xpose.msra.mxu0 0
        %1577 = vmatprep.subr.bf16.mxu0 0
        %1578 = vmatpush1.bf16.xpose.msra.mxu0 0
        %1579 = vmatprep.subr.bf16.mxu0 0
        %1580 = vmatpush1.bf16.xpose.msra.mxu0 0
        %1581 = vmatprep.subr.bf16.mxu0 0
        %1582 = vmatpush1.bf16.xpose.msra.mxu0 0
        %1583 = vmatprep.subr.bf16.mxu0 0
        %1584 = vmatpush1.bf16.xpose.msra.mxu0 0
        %1585 = vmatprep.subr.bf16.mxu0 0
        %1586 = vmatpush1.bf16.xpose.msra.mxu0 0
        %1587 = vmatprep.subr.bf16.mxu0 0
        %1588 = vmatpush1.bf16.xpose.msra.mxu0 0
        %1589 = vmatprep.subr.bf16.mxu0 0
        %1590 = vmatpush1.bf16.xpose.msra.mxu0 0
        %1591 = vmatprep.subr.bf16.mxu0 0
        %1592 = vmatpush1.bf16.xpose.msra.mxu0 0
        %1593 = vmatprep.subr.bf16.mxu0 0
        %1594 = vmatpush1.bf16.xpose.msra.mxu0 0
        %1595 = vmatprep.mubr.bf16.mxu0 0
        %1596 = vmatmul.mubr.bf16.gmra.mrb[0].mxu0 %v1552
        %v1597 = vpop.f32.mrb[0].mxu0
        %v1598 = vadd.f32 0.0, %v1597
        %v1599 = vpop.f32.mrb[0].mxu0
        %v1600 = vpop.f32.mrb[0].mxu0
        %v1601 = vadd.f32 0.0, %v1600
        %v1602 = vpop.f32.mrb[0].mxu0
        %1603 = vmatprep.mubr.bf16.mxu0 0
        %1604 = vmatmul.mubr.bf16.gmra.mrb[0].mxu0 %v1555
        %v1605 = vpop.f32.mrb[0].mxu0
        %v1606 = vadd.f32 0.0, %v1605
        %v1607 = vpop.f32.mrb[0].mxu0
        %v1608 = vpop.f32.mrb[0].mxu0
        %v1609 = vadd.f32 0.0, %v1608
        %v1610 = vpop.f32.mrb[0].mxu0
        %1611 = vdwg.mxu0
        %v1613 = vsel %vm1428, %v986, 0
        %v1616 = vsel %vm1428, %v987, 0
        %v1619 = vsel %vm1428, %v1194, 0
        %v1622 = vsel %vm1428, %v1195, 0
        %1624 = vmatprep.subr.bf16.mxu0 0
        %1625 = vmatpush1.bf16.xpose.msra.mxu0 %v1619
        %1626 = vmatprep.subr.bf16.mxu0 0
        %1627 = vmatpush1.bf16.xpose.msra.mxu0 %v1622
        %1628 = vmatprep.subr.bf16.mxu0 0
        %1629 = vmatpush1.bf16.xpose.msra.mxu0 0
        %1630 = vmatprep.subr.bf16.mxu0 0
        %1631 = vmatpush1.bf16.xpose.msra.mxu0 0
        %1632 = vmatprep.subr.bf16.mxu0 0
        %1633 = vmatpush1.bf16.xpose.msra.mxu0 0
        %1634 = vmatprep.subr.bf16.mxu0 0
        %1635 = vmatpush1.bf16.xpose.msra.mxu0 0
        %1636 = vmatprep.subr.bf16.mxu0 0
        %1637 = vmatpush1.bf16.xpose.msra.mxu0 0
        %1638 = vmatprep.subr.bf16.mxu0 0
        %1639 = vmatpush1.bf16.xpose.msra.mxu0 0
        %1640 = vmatprep.subr.bf16.mxu0 0
        %1641 = vmatpush1.bf16.xpose.msra.mxu0 0
        %1642 = vmatprep.subr.bf16.mxu0 0
        %1643 = vmatpush1.bf16.xpose.msra.mxu0 0
        %1644 = vmatprep.subr.bf16.mxu0 0
        %1645 = vmatpush1.bf16.xpose.msra.mxu0 0
        %1646 = vmatprep.subr.bf16.mxu0 0
        %1647 = vmatpush1.bf16.xpose.msra.mxu0 0
        %1648 = vmatprep.subr.bf16.mxu0 0
        %1649 = vmatpush1.bf16.xpose.msra.mxu0 0
        %1650 = vmatprep.subr.bf16.mxu0 0
        %1651 = vmatpush1.bf16.xpose.msra.mxu0 0
        %1652 = vmatprep.subr.bf16.mxu0 0
        %1653 = vmatpush1.bf16.xpose.msra.mxu0 0
        %1654 = vmatprep.subr.bf16.mxu0 0
        %1655 = vmatpush1.bf16.xpose.msra.mxu0 0
        %1656 = vmatprep.mubr.bf16.mxu0 0
        %1657 = vmatmul.mubr.bf16.gmra.mrb[0].mxu0 %v1613
        %v1658 = vpop.f32.mrb[0].mxu0
        %v1659 = vadd.f32 0.0, %v1658
        %v1660 = vpop.f32.mrb[0].mxu0
        %v1661 = vpop.f32.mrb[0].mxu0
        %v1662 = vadd.f32 0.0, %v1661
        %v1663 = vpop.f32.mrb[0].mxu0
        %1664 = vmatprep.mubr.bf16.mxu0 0
        %1665 = vmatmul.mubr.bf16.gmra.mrb[0].mxu0 %v1616
        %v1666 = vpop.f32.mrb[0].mxu0
        %v1667 = vadd.f32 0.0, %v1666
        %v1668 = vpop.f32.mrb[0].mxu0
        %v1669 = vpop.f32.mrb[0].mxu0
        %v1670 = vadd.f32 0.0, %v1669
        %v1671 = vpop.f32.mrb[0].mxu0
        %1672 = vdwg.mxu0
        %v1674 = vsel %vm1428, %v988, 0
        %v1677 = vsel %vm1428, %v989, 0
        %v1680 = vsel %vm1428, %v1196, 0
        %v1683 = vsel %vm1428, %v1197, 0
        %1685 = vmatprep.subr.bf16.mxu0 0
        %1686 = vmatpush1.bf16.xpose.msra.mxu0 %v1680
        %1687 = vmatprep.subr.bf16.mxu0 0
        %1688 = vmatpush1.bf16.xpose.msra.mxu0 %v1683
        %1689 = vmatprep.subr.bf16.mxu0 0
        %1690 = vmatpush1.bf16.xpose.msra.mxu0 0
        %1691 = vmatprep.subr.bf16.mxu0 0
        %1692 = vmatpush1.bf16.xpose.msra.mxu0 0
        %1693 = vmatprep.subr.bf16.mxu0 0
        %1694 = vmatpush1.bf16.xpose.msra.mxu0 0
        %1695 = vmatprep.subr.bf16.mxu0 0
        %1696 = vmatpush1.bf16.xpose.msra.mxu0 0
        %1697 = vmatprep.subr.bf16.mxu0 0
        %1698 = vmatpush1.bf16.xpose.msra.mxu0 0
        %1699 = vmatprep.subr.bf16.mxu0 0
        %1700 = vmatpush1.bf16.xpose.msra.mxu0 0
        %1701 = vmatprep.subr.bf16.mxu0 0
        %1702 = vmatpush1.bf16.xpose.msra.mxu0 0
        %1703 = vmatprep.subr.bf16.mxu0 0
        %1704 = vmatpush1.bf16.xpose.msra.mxu0 0
        %1705 = vmatprep.subr.bf16.mxu0 0
        %1706 = vmatpush1.bf16.xpose.msra.mxu0 0
        %1707 = vmatprep.subr.bf16.mxu0 0
        %1708 = vmatpush1.bf16.xpose.msra.mxu0 0
        %1709 = vmatprep.subr.bf16.mxu0 0
        %1710 = vmatpush1.bf16.xpose.msra.mxu0 0
        %1711 = vmatprep.subr.bf16.mxu0 0
        %1712 = vmatpush1.bf16.xpose.msra.mxu0 0
        %1713 = vmatprep.subr.bf16.mxu0 0
        %1714 = vmatpush1.bf16.xpose.msra.mxu0 0
        %1715 = vmatprep.subr.bf16.mxu0 0
        %1716 = vmatpush1.bf16.xpose.msra.mxu0 0
        %1717 = vmatprep.mubr.bf16.mxu0 0
        %1718 = vmatmul.mubr.bf16.gmra.mrb[0].mxu0 %v1674
        %v1719 = vpop.f32.mrb[0].mxu0
        %v1720 = vadd.f32 0.0, %v1719
        %v1721 = vpop.f32.mrb[0].mxu0
        %v1722 = vpop.f32.mrb[0].mxu0
        %v1723 = vadd.f32 0.0, %v1722
        %v1724 = vpop.f32.mrb[0].mxu0
        %1725 = vmatprep.mubr.bf16.mxu0 0
        %1726 = vmatmul.mubr.bf16.gmra.mrb[0].mxu0 %v1677
        %v1727 = vpop.f32.mrb[0].mxu0
        %v1728 = vadd.f32 0.0, %v1727
        %v1729 = vpop.f32.mrb[0].mxu0
        %v1730 = vpop.f32.mrb[0].mxu0
        %v1731 = vadd.f32 0.0, %v1730
        %v1732 = vpop.f32.mrb[0].mxu0
        %1733 = vdwg.mxu0
        %v1735 = vsel %vm1428, %v990, 0
        %v1738 = vsel %vm1428, %v991, 0
        %v1741 = vsel %vm1428, %v1198, 0
        %v1744 = vsel %vm1428, %v1199, 0
        %1746 = vmatprep.subr.bf16.mxu0 0
        %1747 = vmatpush1.bf16.xpose.msra.mxu0 %v1741
        %1748 = vmatprep.subr.bf16.mxu0 0
        %1749 = vmatpush1.bf16.xpose.msra.mxu0 %v1744
        %1750 = vmatprep.subr.bf16.mxu0 0
        %1751 = vmatpush1.bf16.xpose.msra.mxu0 0
        %1752 = vmatprep.subr.bf16.mxu0 0
        %1753 = vmatpush1.bf16.xpose.msra.mxu0 0
        %1754 = vmatprep.subr.bf16.mxu0 0
        %1755 = vmatpush1.bf16.xpose.msra.mxu0 0
        %1756 = vmatprep.subr.bf16.mxu0 0
        %1757 = vmatpush1.bf16.xpose.msra.mxu0 0
        %1758 = vmatprep.subr.bf16.mxu0 0
        %1759 = vmatpush1.bf16.xpose.msra.mxu0 0
        %1760 = vmatprep.subr.bf16.mxu0 0
        %1761 = vmatpush1.bf16.xpose.msra.mxu0 0
        %1762 = vmatprep.subr.bf16.mxu0 0
        %1763 = vmatpush1.bf16.xpose.msra.mxu0 0
        %1764 = vmatprep.subr.bf16.mxu0 0
        %1765 = vmatpush1.bf16.xpose.msra.mxu0 0
        %1766 = vmatprep.subr.bf16.mxu0 0
        %1767 = vmatpush1.bf16.xpose.msra.mxu0 0
        %1768 = vmatprep.subr.bf16.mxu0 0
        %1769 = vmatpush1.bf16.xpose.msra.mxu0 0
        %1770 = vmatprep.subr.bf16.mxu0 0
        %1771 = vmatpush1.bf16.xpose.msra.mxu0 0
        %1772 = vmatprep.subr.bf16.mxu0 0
        %1773 = vmatpush1.bf16.xpose.msra.mxu0 0
        %1774 = vmatprep.subr.bf16.mxu0 0
        %1775 = vmatpush1.bf16.xpose.msra.mxu0 0
        %1776 = vmatprep.subr.bf16.mxu0 0
        %1777 = vmatpush1.bf16.xpose.msra.mxu0 0
        %1778 = vmatprep.mubr.bf16.mxu0 0
        %1779 = vmatmul.mubr.bf16.gmra.mrb[0].mxu0 %v1735
        %v1780 = vpop.f32.mrb[0].mxu0
        %v1781 = vadd.f32 0.0, %v1780
        %v1782 = vpop.f32.mrb[0].mxu0
        %v1783 = vpop.f32.mrb[0].mxu0
        %v1784 = vadd.f32 0.0, %v1783
        %v1785 = vpop.f32.mrb[0].mxu0
        %1786 = vmatprep.mubr.bf16.mxu0 0
        %1787 = vmatmul.mubr.bf16.gmra.mrb[0].mxu0 %v1738
        %v1788 = vpop.f32.mrb[0].mxu0
        %v1789 = vadd.f32 0.0, %v1788
        %v1790 = vpop.f32.mrb[0].mxu0
        %v1791 = vpop.f32.mrb[0].mxu0
        %v1792 = vadd.f32 0.0, %v1791
        %v1793 = vpop.f32.mrb[0].mxu0
        %1794 = vdwg.mxu0
        %v1796 = vsel %vm1428, %v992, 0
        %v1799 = vsel %vm1428, %v993, 0
        %v1802 = vsel %vm1428, %v1200, 0
        %v1805 = vsel %vm1428, %v1201, 0
        %1807 = vmatprep.subr.bf16.mxu0 0
        %1808 = vmatpush1.bf16.xpose.msra.mxu0 %v1802
        %1809 = vmatprep.subr.bf16.mxu0 0
        %1810 = vmatpush1.bf16.xpose.msra.mxu0 %v1805
        %1811 = vmatprep.subr.bf16.mxu0 0
        %1812 = vmatpush1.bf16.xpose.msra.mxu0 0
        %1813 = vmatprep.subr.bf16.mxu0 0
        %1814 = vmatpush1.bf16.xpose.msra.mxu0 0
        %1815 = vmatprep.subr.bf16.mxu0 0
        %1816 = vmatpush1.bf16.xpose.msra.mxu0 0
        %1817 = vmatprep.subr.bf16.mxu0 0
        %1818 = vmatpush1.bf16.xpose.msra.mxu0 0
        %1819 = vmatprep.subr.bf16.mxu0 0
        %1820 = vmatpush1.bf16.xpose.msra.mxu0 0
        %1821 = vmatprep.subr.bf16.mxu0 0
        %1822 = vmatpush1.bf16.xpose.msra.mxu0 0
        %1823 = vmatprep.subr.bf16.mxu0 0
        %1824 = vmatpush1.bf16.xpose.msra.mxu0 0
        %1825 = vmatprep.subr.bf16.mxu0 0
        %1826 = vmatpush1.bf16.xpose.msra.mxu0 0
        %1827 = vmatprep.subr.bf16.mxu0 0
        %1828 = vmatpush1.bf16.xpose.msra.mxu0 0
        %1829 = vmatprep.subr.bf16.mxu0 0
        %1830 = vmatpush1.bf16.xpose.msra.mxu0 0
        %1831 = vmatprep.subr.bf16.mxu0 0
        %1832 = vmatpush1.bf16.xpose.msra.mxu0 0
        %1833 = vmatprep.subr.bf16.mxu0 0
        %1834 = vmatpush1.bf16.xpose.msra.mxu0 0
        %1835 = vmatprep.subr.bf16.mxu0 0
        %1836 = vmatpush1.bf16.xpose.msra.mxu0 0
        %1837 = vmatprep.subr.bf16.mxu0 0
        %1838 = vmatpush1.bf16.xpose.msra.mxu0 0
        %1839 = vmatprep.mubr.bf16.mxu0 0
        %1840 = vmatmul.mubr.bf16.gmra.mrb[0].mxu0 %v1796
        %v1841 = vpop.f32.mrb[0].mxu0
        %v1842 = vadd.f32 0.0, %v1841
        %v1843 = vpop.f32.mrb[0].mxu0
        %v1844 = vpop.f32.mrb[0].mxu0
        %v1845 = vadd.f32 0.0, %v1844
        %v1846 = vpop.f32.mrb[0].mxu0
        %1847 = vmatprep.mubr.bf16.mxu0 0
        %1848 = vmatmul.mubr.bf16.gmra.mrb[0].mxu0 %v1799
        %v1849 = vpop.f32.mrb[0].mxu0
        %v1850 = vadd.f32 0.0, %v1849
        %v1851 = vpop.f32.mrb[0].mxu0
        %v1852 = vpop.f32.mrb[0].mxu0
        %v1853 = vadd.f32 0.0, %v1852
        %v1854 = vpop.f32.mrb[0].mxu0
        %1855 = vdwg.mxu0
        %v1857 = vsel %vm1428, %v994, 0
        %v1860 = vsel %vm1428, %v995, 0
        %v1863 = vsel %vm1428, %v1202, 0
        %v1866 = vsel %vm1428, %v1203, 0
        %1868 = vmatprep.subr.bf16.mxu0 0
        %1869 = vmatpush1.bf16.xpose.msra.mxu0 %v1863
        %1870 = vmatprep.subr.bf16.mxu0 0
        %1871 = vmatpush1.bf16.xpose.msra.mxu0 %v1866
        %1872 = vmatprep.subr.bf16.mxu0 0
        %1873 = vmatpush1.bf16.xpose.msra.mxu0 0
        %1874 = vmatprep.subr.bf16.mxu0 0
        %1875 = vmatpush1.bf16.xpose.msra.mxu0 0
        %1876 = vmatprep.subr.bf16.mxu0 0
        %1877 = vmatpush1.bf16.xpose.msra.mxu0 0
        %1878 = vmatprep.subr.bf16.mxu0 0
        %1879 = vmatpush1.bf16.xpose.msra.mxu0 0
        %1880 = vmatprep.subr.bf16.mxu0 0
        %1881 = vmatpush1.bf16.xpose.msra.mxu0 0
        %1882 = vmatprep.subr.bf16.mxu0 0
        %1883 = vmatpush1.bf16.xpose.msra.mxu0 0
        %1884 = vmatprep.subr.bf16.mxu0 0
        %1885 = vmatpush1.bf16.xpose.msra.mxu0 0
        %1886 = vmatprep.subr.bf16.mxu0 0
        %1887 = vmatpush1.bf16.xpose.msra.mxu0 0
        %1888 = vmatprep.subr.bf16.mxu0 0
        %1889 = vmatpush1.bf16.xpose.msra.mxu0 0
        %1890 = vmatprep.subr.bf16.mxu0 0
        %1891 = vmatpush1.bf16.xpose.msra.mxu0 0
        %1892 = vmatprep.subr.bf16.mxu0 0
        %1893 = vmatpush1.bf16.xpose.msra.mxu0 0
        %1894 = vmatprep.subr.bf16.mxu0 0
        %1895 = vmatpush1.bf16.xpose.msra.mxu0 0
        %1896 = vmatprep.subr.bf16.mxu0 0
        %1897 = vmatpush1.bf16.xpose.msra.mxu0 0
        %1898 = vmatprep.subr.bf16.mxu0 0
        %1899 = vmatpush1.bf16.xpose.msra.mxu0 0
        %1900 = vmatprep.mubr.bf16.mxu0 0
        %1901 = vmatmul.mubr.bf16.gmra.mrb[0].mxu0 %v1857
        %v1902 = vpop.f32.mrb[0].mxu0
        %v1903 = vadd.f32 0.0, %v1902
        %v1904 = vpop.f32.mrb[0].mxu0
        %v1905 = vpop.f32.mrb[0].mxu0
        %v1906 = vadd.f32 0.0, %v1905
        %v1907 = vpop.f32.mrb[0].mxu0
        %1908 = vmatprep.mubr.bf16.mxu0 0
        %1909 = vmatmul.mubr.bf16.gmra.mrb[0].mxu0 %v1860
        %v1910 = vpop.f32.mrb[0].mxu0
        %v1911 = vadd.f32 0.0, %v1910
        %v1912 = vpop.f32.mrb[0].mxu0
        %v1913 = vpop.f32.mrb[0].mxu0
        %v1914 = vadd.f32 0.0, %v1913
        %v1915 = vpop.f32.mrb[0].mxu0
        %1916 = vdwg.mxu0
        %v1918 = vsel %vm1428, %v996, 0
        %v1921 = vsel %vm1428, %v997, 0
        %v1924 = vsel %vm1428, %v1204, 0
        %v1927 = vsel %vm1428, %v1205, 0
        %1929 = vmatprep.subr.bf16.mxu0 0
        %1930 = vmatpush1.bf16.xpose.msra.mxu0 %v1924
        %1931 = vmatprep.subr.bf16.mxu0 0
        %1932 = vmatpush1.bf16.xpose.msra.mxu0 %v1927
        %1933 = vmatprep.subr.bf16.mxu0 0
        %1934 = vmatpush1.bf16.xpose.msra.mxu0 0
        %1935 = vmatprep.subr.bf16.mxu0 0
        %1936 = vmatpush1.bf16.xpose.msra.mxu0 0
        %1937 = vmatprep.subr.bf16.mxu0 0
        %1938 = vmatpush1.bf16.xpose.msra.mxu0 0
        %1939 = vmatprep.subr.bf16.mxu0 0
        %1940 = vmatpush1.bf16.xpose.msra.mxu0 0
        %1941 = vmatprep.subr.bf16.mxu0 0
        %1942 = vmatpush1.bf16.xpose.msra.mxu0 0
        %1943 = vmatprep.subr.bf16.mxu0 0
        %1944 = vmatpush1.bf16.xpose.msra.mxu0 0
        %1945 = vmatprep.subr.bf16.mxu0 0
        %1946 = vmatpush1.bf16.xpose.msra.mxu0 0
        %1947 = vmatprep.subr.bf16.mxu0 0
        %1948 = vmatpush1.bf16.xpose.msra.mxu0 0
        %1949 = vmatprep.subr.bf16.mxu0 0
        %1950 = vmatpush1.bf16.xpose.msra.mxu0 0
        %1951 = vmatprep.subr.bf16.mxu0 0
        %1952 = vmatpush1.bf16.xpose.msra.mxu0 0
        %1953 = vmatprep.subr.bf16.mxu0 0
        %1954 = vmatpush1.bf16.xpose.msra.mxu0 0
        %1955 = vmatprep.subr.bf16.mxu0 0
        %1956 = vmatpush1.bf16.xpose.msra.mxu0 0
        %1957 = vmatprep.subr.bf16.mxu0 0
        %1958 = vmatpush1.bf16.xpose.msra.mxu0 0
        %1959 = vmatprep.subr.bf16.mxu0 0
        %1960 = vmatpush1.bf16.xpose.msra.mxu0 0
        %1961 = vmatprep.mubr.bf16.mxu0 0
        %1962 = vmatmul.mubr.bf16.gmra.mrb[0].mxu0 %v1918
        %v1963 = vpop.f32.mrb[0].mxu0
        %v1964 = vadd.f32 0.0, %v1963
        %v1965 = vpop.f32.mrb[0].mxu0
        %v1966 = vpop.f32.mrb[0].mxu0
        %v1967 = vadd.f32 0.0, %v1966
        %v1968 = vpop.f32.mrb[0].mxu0
        %1969 = vmatprep.mubr.bf16.mxu0 0
        %1970 = vmatmul.mubr.bf16.gmra.mrb[0].mxu0 %v1921
        %v1971 = vpop.f32.mrb[0].mxu0
        %v1972 = vadd.f32 0.0, %v1971
        %v1973 = vpop.f32.mrb[0].mxu0
        %v1974 = vpop.f32.mrb[0].mxu0
        %v1975 = vadd.f32 0.0, %v1974
        %v1976 = vpop.f32.mrb[0].mxu0
        %1977 = vdwg.mxu0
        %v1979 = vsel %vm1428, %v998, 0
        %v1982 = vsel %vm1428, %v999, 0
        %v1985 = vsel %vm1428, %v1206, 0
        %v1988 = vsel %vm1428, %v1207, 0
        %1990 = vmatprep.subr.bf16.mxu0 0
        %1991 = vmatpush1.bf16.xpose.msra.mxu0 %v1985
        %1992 = vmatprep.subr.bf16.mxu0 0
        %1993 = vmatpush1.bf16.xpose.msra.mxu0 %v1988
        %1994 = vmatprep.subr.bf16.mxu0 0
        %1995 = vmatpush1.bf16.xpose.msra.mxu0 0
        %1996 = vmatprep.subr.bf16.mxu0 0
        %1997 = vmatpush1.bf16.xpose.msra.mxu0 0
        %1998 = vmatprep.subr.bf16.mxu0 0
        %1999 = vmatpush1.bf16.xpose.msra.mxu0 0
        %2000 = vmatprep.subr.bf16.mxu0 0
        %2001 = vmatpush1.bf16.xpose.msra.mxu0 0
        %2002 = vmatprep.subr.bf16.mxu0 0
        %2003 = vmatpush1.bf16.xpose.msra.mxu0 0
        %2004 = vmatprep.subr.bf16.mxu0 0
        %2005 = vmatpush1.bf16.xpose.msra.mxu0 0
        %2006 = vmatprep.subr.bf16.mxu0 0
        %2007 = vmatpush1.bf16.xpose.msra.mxu0 0
        %2008 = vmatprep.subr.bf16.mxu0 0
        %2009 = vmatpush1.bf16.xpose.msra.mxu0 0
        %2010 = vmatprep.subr.bf16.mxu0 0
        %2011 = vmatpush1.bf16.xpose.msra.mxu0 0
        %2012 = vmatprep.subr.bf16.mxu0 0
        %2013 = vmatpush1.bf16.xpose.msra.mxu0 0
        %2014 = vmatprep.subr.bf16.mxu0 0
        %2015 = vmatpush1.bf16.xpose.msra.mxu0 0
        %2016 = vmatprep.subr.bf16.mxu0 0
        %2017 = vmatpush1.bf16.xpose.msra.mxu0 0
        %2018 = vmatprep.subr.bf16.mxu0 0
        %2019 = vmatpush1.bf16.xpose.msra.mxu0 0
        %2020 = vmatprep.subr.bf16.mxu0 0
        %2021 = vmatpush1.bf16.xpose.msra.mxu0 0
        %2022 = vmatprep.mubr.bf16.mxu0 0
        %2023 = vmatmul.mubr.bf16.gmra.mrb[0].mxu0 %v1979
        %v2024 = vpop.f32.mrb[0].mxu0
        %v2025 = vadd.f32 0.0, %v2024
        %v2026 = vpop.f32.mrb[0].mxu0
        %v2027 = vpop.f32.mrb[0].mxu0
        %v2028 = vadd.f32 0.0, %v2027
        %v2029 = vpop.f32.mrb[0].mxu0
        %2030 = vmatprep.mubr.bf16.mxu0 0
        %2031 = vmatmul.mubr.bf16.gmra.mrb[0].mxu0 %v1982
        %v2032 = vpop.f32.mrb[0].mxu0
        %v2033 = vadd.f32 0.0, %v2032
        %v2034 = vpop.f32.mrb[0].mxu0
        %v2035 = vpop.f32.mrb[0].mxu0
        %v2036 = vadd.f32 0.0, %v2035
        %v2037 = vpop.f32.mrb[0].mxu0
        %2038 = vdwg.mxu0
        %v2040 = vsel %vm1428, %v1000, 0
        %v2043 = vsel %vm1428, %v1001, 0
        %v2046 = vsel %vm1428, %v1208, 0
        %v2049 = vsel %vm1428, %v1209, 0
        %2051 = vmatprep.subr.bf16.mxu0 0
        %2052 = vmatpush1.bf16.xpose.msra.mxu0 %v2046
        %2053 = vmatprep.subr.bf16.mxu0 0
        %2054 = vmatpush1.bf16.xpose.msra.mxu0 %v2049
        %2055 = vmatprep.subr.bf16.mxu0 0
        %2056 = vmatpush1.bf16.xpose.msra.mxu0 0
        %2057 = vmatprep.subr.bf16.mxu0 0
        %2058 = vmatpush1.bf16.xpose.msra.mxu0 0
        %2059 = vmatprep.subr.bf16.mxu0 0
        %2060 = vmatpush1.bf16.xpose.msra.mxu0 0
        %2061 = vmatprep.subr.bf16.mxu0 0
        %2062 = vmatpush1.bf16.xpose.msra.mxu0 0
        %2063 = vmatprep.subr.bf16.mxu0 0
        %2064 = vmatpush1.bf16.xpose.msra.mxu0 0
        %2065 = vmatprep.subr.bf16.mxu0 0
        %2066 = vmatpush1.bf16.xpose.msra.mxu0 0
        %2067 = vmatprep.subr.bf16.mxu0 0
        %2068 = vmatpush1.bf16.xpose.msra.mxu0 0
        %2069 = vmatprep.subr.bf16.mxu0 0
        %2070 = vmatpush1.bf16.xpose.msra.mxu0 0
        %2071 = vmatprep.subr.bf16.mxu0 0
        %2072 = vmatpush1.bf16.xpose.msra.mxu0 0
        %2073 = vmatprep.subr.bf16.mxu0 0
        %2074 = vmatpush1.bf16.xpose.msra.mxu0 0
        %2075 = vmatprep.subr.bf16.mxu0 0
        %2076 = vmatpush1.bf16.xpose.msra.mxu0 0
        %2077 = vmatprep.subr.bf16.mxu0 0
        %2078 = vmatpush1.bf16.xpose.msra.mxu0 0
        %2079 = vmatprep.subr.bf16.mxu0 0
        %2080 = vmatpush1.bf16.xpose.msra.mxu0 0
        %2081 = vmatprep.subr.bf16.mxu0 0
        %2082 = vmatpush1.bf16.xpose.msra.mxu0 0
        %2083 = vmatprep.mubr.bf16.mxu0 0
        %2084 = vmatmul.mubr.bf16.gmra.mrb[0].mxu0 %v2040
        %v2085 = vpop.f32.mrb[0].mxu0
        %v2086 = vadd.f32 0.0, %v2085
        %v2087 = vpop.f32.mrb[0].mxu0
        %v2088 = vpop.f32.mrb[0].mxu0
        %v2089 = vadd.f32 0.0, %v2088
        %v2090 = vpop.f32.mrb[0].mxu0
        %2091 = vmatprep.mubr.bf16.mxu0 0
        %2092 = vmatmul.mubr.bf16.gmra.mrb[0].mxu0 %v2043
        %v2093 = vpop.f32.mrb[0].mxu0
        %v2094 = vadd.f32 0.0, %v2093
        %v2095 = vpop.f32.mrb[0].mxu0
        %v2096 = vpop.f32.mrb[0].mxu0
        %v2097 = vadd.f32 0.0, %v2096
        %v2098 = vpop.f32.mrb[0].mxu0
        %2099 = vdwg.mxu0
        %v2101 = vsel %vm1428, %v1002, 0
        %v2104 = vsel %vm1428, %v1003, 0
        %v2107 = vsel %vm1428, %v1210, 0
        %v2110 = vsel %vm1428, %v1211, 0
        %2112 = vmatprep.subr.bf16.mxu0 0
        %2113 = vmatpush1.bf16.xpose.msra.mxu0 %v2107
        %2114 = vmatprep.subr.bf16.mxu0 0
        %2115 = vmatpush1.bf16.xpose.msra.mxu0 %v2110
        %2116 = vmatprep.subr.bf16.mxu0 0
        %2117 = vmatpush1.bf16.xpose.msra.mxu0 0
        %2118 = vmatprep.subr.bf16.mxu0 0
        %2119 = vmatpush1.bf16.xpose.msra.mxu0 0
        %2120 = vmatprep.subr.bf16.mxu0 0
        %2121 = vmatpush1.bf16.xpose.msra.mxu0 0
        %2122 = vmatprep.subr.bf16.mxu0 0
        %2123 = vmatpush1.bf16.xpose.msra.mxu0 0
        %2124 = vmatprep.subr.bf16.mxu0 0
        %2125 = vmatpush1.bf16.xpose.msra.mxu0 0
        %2126 = vmatprep.subr.bf16.mxu0 0
        %2127 = vmatpush1.bf16.xpose.msra.mxu0 0
        %2128 = vmatprep.subr.bf16.mxu0 0
        %2129 = vmatpush1.bf16.xpose.msra.mxu0 0
        %2130 = vmatprep.subr.bf16.mxu0 0
        %2131 = vmatpush1.bf16.xpose.msra.mxu0 0
        %2132 = vmatprep.subr.bf16.mxu0 0
        %2133 = vmatpush1.bf16.xpose.msra.mxu0 0
        %2134 = vmatprep.subr.bf16.mxu0 0
        %2135 = vmatpush1.bf16.xpose.msra.mxu0 0
        %2136 = vmatprep.subr.bf16.mxu0 0
        %2137 = vmatpush1.bf16.xpose.msra.mxu0 0
        %2138 = vmatprep.subr.bf16.mxu0 0
        %2139 = vmatpush1.bf16.xpose.msra.mxu0 0
        %2140 = vmatprep.subr.bf16.mxu0 0
        %2141 = vmatpush1.bf16.xpose.msra.mxu0 0
        %2142 = vmatprep.subr.bf16.mxu0 0
        %2143 = vmatpush1.bf16.xpose.msra.mxu0 0
        %2144 = vmatprep.mubr.bf16.mxu0 0
        %2145 = vmatmul.mubr.bf16.gmra.mrb[0].mxu0 %v2101
        %v2146 = vpop.f32.mrb[0].mxu0
        %v2147 = vadd.f32 0.0, %v2146
        %v2148 = vpop.f32.mrb[0].mxu0
        %v2149 = vpop.f32.mrb[0].mxu0
        %v2150 = vadd.f32 0.0, %v2149
        %v2151 = vpop.f32.mrb[0].mxu0
        %2152 = vmatprep.mubr.bf16.mxu0 0
        %2153 = vmatmul.mubr.bf16.gmra.mrb[0].mxu0 %v2104
        %v2154 = vpop.f32.mrb[0].mxu0
        %v2155 = vadd.f32 0.0, %v2154
        %v2156 = vpop.f32.mrb[0].mxu0
        %v2157 = vpop.f32.mrb[0].mxu0
        %v2158 = vadd.f32 0.0, %v2157
        %v2159 = vpop.f32.mrb[0].mxu0
        %2160 = vdwg.mxu0
        %v2162 = vsel %vm1428, %v1004, 0
        %v2165 = vsel %vm1428, %v1005, 0
        %v2168 = vsel %vm1428, %v1212, 0
        %v2171 = vsel %vm1428, %v1213, 0
        %2173 = vmatprep.subr.bf16.mxu0 0
        %2174 = vmatpush1.bf16.xpose.msra.mxu0 %v2168
        %2175 = vmatprep.subr.bf16.mxu0 0
        %2176 = vmatpush1.bf16.xpose.msra.mxu0 %v2171
        %2177 = vmatprep.subr.bf16.mxu0 0
        %2178 = vmatpush1.bf16.xpose.msra.mxu0 0
        %2179 = vmatprep.subr.bf16.mxu0 0
        %2180 = vmatpush1.bf16.xpose.msra.mxu0 0
        %2181 = vmatprep.subr.bf16.mxu0 0
        %2182 = vmatpush1.bf16.xpose.msra.mxu0 0
        %2183 = vmatprep.subr.bf16.mxu0 0
        %2184 = vmatpush1.bf16.xpose.msra.mxu0 0
        %2185 = vmatprep.subr.bf16.mxu0 0
        %2186 = vmatpush1.bf16.xpose.msra.mxu0 0
        %2187 = vmatprep.subr.bf16.mxu0 0
        %2188 = vmatpush1.bf16.xpose.msra.mxu0 0
        %2189 = vmatprep.subr.bf16.mxu0 0
        %2190 = vmatpush1.bf16.xpose.msra.mxu0 0
        %2191 = vmatprep.subr.bf16.mxu0 0
        %2192 = vmatpush1.bf16.xpose.msra.mxu0 0
        %2193 = vmatprep.subr.bf16.mxu0 0
        %2194 = vmatpush1.bf16.xpose.msra.mxu0 0
        %2195 = vmatprep.subr.bf16.mxu0 0
        %2196 = vmatpush1.bf16.xpose.msra.mxu0 0
        %2197 = vmatprep.subr.bf16.mxu0 0
        %2198 = vmatpush1.bf16.xpose.msra.mxu0 0
        %2199 = vmatprep.subr.bf16.mxu0 0
        %2200 = vmatpush1.bf16.xpose.msra.mxu0 0
        %2201 = vmatprep.subr.bf16.mxu0 0
        %2202 = vmatpush1.bf16.xpose.msra.mxu0 0
        %2203 = vmatprep.subr.bf16.mxu0 0
        %2204 = vmatpush1.bf16.xpose.msra.mxu0 0
        %2205 = vmatprep.mubr.bf16.mxu0 0
        %2206 = vmatmul.mubr.bf16.gmra.mrb[0].mxu0 %v2162
        %v2207 = vpop.f32.mrb[0].mxu0
        %v2208 = vadd.f32 0.0, %v2207
        %v2209 = vpop.f32.mrb[0].mxu0
        %v2210 = vpop.f32.mrb[0].mxu0
        %v2211 = vadd.f32 0.0, %v2210
        %v2212 = vpop.f32.mrb[0].mxu0
        %2213 = vmatprep.mubr.bf16.mxu0 0
        %2214 = vmatmul.mubr.bf16.gmra.mrb[0].mxu0 %v2165
        %v2215 = vpop.f32.mrb[0].mxu0
        %v2216 = vadd.f32 0.0, %v2215
        %v2217 = vpop.f32.mrb[0].mxu0
        %v2218 = vpop.f32.mrb[0].mxu0
        %v2219 = vadd.f32 0.0, %v2218
        %v2220 = vpop.f32.mrb[0].mxu0
        %2221 = vdwg.mxu0
        %v2223 = vsel %vm1428, %v1006, 0
        %v2226 = vsel %vm1428, %v1007, 0
        %v2229 = vsel %vm1428, %v1214, 0
        %v2232 = vsel %vm1428, %v1215, 0
        %2234 = vmatprep.subr.bf16.mxu0 0
        %2235 = vmatpush1.bf16.xpose.msra.mxu0 %v2229
        %2236 = vmatprep.subr.bf16.mxu0 0
        %2237 = vmatpush1.bf16.xpose.msra.mxu0 %v2232
        %2238 = vmatprep.subr.bf16.mxu0 0
        %2239 = vmatpush1.bf16.xpose.msra.mxu0 0
        %2240 = vmatprep.subr.bf16.mxu0 0
        %2241 = vmatpush1.bf16.xpose.msra.mxu0 0
        %2242 = vmatprep.subr.bf16.mxu0 0
        %2243 = vmatpush1.bf16.xpose.msra.mxu0 0
        %2244 = vmatprep.subr.bf16.mxu0 0
        %2245 = vmatpush1.bf16.xpose.msra.mxu0 0
        %2246 = vmatprep.subr.bf16.mxu0 0
        %2247 = vmatpush1.bf16.xpose.msra.mxu0 0
        %2248 = vmatprep.subr.bf16.mxu0 0
        %2249 = vmatpush1.bf16.xpose.msra.mxu0 0
        %2250 = vmatprep.subr.bf16.mxu0 0
        %2251 = vmatpush1.bf16.xpose.msra.mxu0 0
        %2252 = vmatprep.subr.bf16.mxu0 0
        %2253 = vmatpush1.bf16.xpose.msra.mxu0 0
        %2254 = vmatprep.subr.bf16.mxu0 0
        %2255 = vmatpush1.bf16.xpose.msra.mxu0 0
        %2256 = vmatprep.subr.bf16.mxu0 0
        %2257 = vmatpush1.bf16.xpose.msra.mxu0 0
        %2258 = vmatprep.subr.bf16.mxu0 0
        %2259 = vmatpush1.bf16.xpose.msra.mxu0 0
        %2260 = vmatprep.subr.bf16.mxu0 0
        %2261 = vmatpush1.bf16.xpose.msra.mxu0 0
        %2262 = vmatprep.subr.bf16.mxu0 0
        %2263 = vmatpush1.bf16.xpose.msra.mxu0 0
        %2264 = vmatprep.subr.bf16.mxu0 0
        %2265 = vmatpush1.bf16.xpose.msra.mxu0 0
        %2266 = vmatprep.mubr.bf16.mxu0 0
        %2267 = vmatmul.mubr.bf16.gmra.mrb[0].mxu0 %v2223
        %v2268 = vpop.f32.mrb[0].mxu0
        %v2269 = vadd.f32 0.0, %v2268
        %v2270 = vpop.f32.mrb[0].mxu0
        %v2271 = vpop.f32.mrb[0].mxu0
        %v2272 = vadd.f32 0.0, %v2271
        %v2273 = vpop.f32.mrb[0].mxu0
        %2274 = vmatprep.mubr.bf16.mxu0 0
        %2275 = vmatmul.mubr.bf16.gmra.mrb[0].mxu0 %v2226
        %v2276 = vpop.f32.mrb[0].mxu0
        %v2277 = vadd.f32 0.0, %v2276
        %v2278 = vpop.f32.mrb[0].mxu0
        %v2279 = vpop.f32.mrb[0].mxu0
        %v2280 = vadd.f32 0.0, %v2279
        %v2281 = vpop.f32.mrb[0].mxu0
        %2282 = vdwg.mxu0
        %v2284 = vsel %vm1428, %v1008, 0
        %v2287 = vsel %vm1428, %v1009, 0
        %v2290 = vsel %vm1428, %v1216, 0
        %v2293 = vsel %vm1428, %v1217, 0
        %2295 = vmatprep.subr.bf16.mxu0 0
        %2296 = vmatpush1.bf16.xpose.msra.mxu0 %v2290
        %2297 = vmatprep.subr.bf16.mxu0 0
        %2298 = vmatpush1.bf16.xpose.msra.mxu0 %v2293
        %2299 = vmatprep.subr.bf16.mxu0 0
        %2300 = vmatpush1.bf16.xpose.msra.mxu0 0
        %2301 = vmatprep.subr.bf16.mxu0 0
        %2302 = vmatpush1.bf16.xpose.msra.mxu0 0
        %2303 = vmatprep.subr.bf16.mxu0 0
        %2304 = vmatpush1.bf16.xpose.msra.mxu0 0
        %2305 = vmatprep.subr.bf16.mxu0 0
        %2306 = vmatpush1.bf16.xpose.msra.mxu0 0
        %2307 = vmatprep.subr.bf16.mxu0 0
        %2308 = vmatpush1.bf16.xpose.msra.mxu0 0
        %2309 = vmatprep.subr.bf16.mxu0 0
        %2310 = vmatpush1.bf16.xpose.msra.mxu0 0
        %2311 = vmatprep.subr.bf16.mxu0 0
        %2312 = vmatpush1.bf16.xpose.msra.mxu0 0
        %2313 = vmatprep.subr.bf16.mxu0 0
        %2314 = vmatpush1.bf16.xpose.msra.mxu0 0
        %2315 = vmatprep.subr.bf16.mxu0 0
        %2316 = vmatpush1.bf16.xpose.msra.mxu0 0
        %2317 = vmatprep.subr.bf16.mxu0 0
        %2318 = vmatpush1.bf16.xpose.msra.mxu0 0
        %2319 = vmatprep.subr.bf16.mxu0 0
        %2320 = vmatpush1.bf16.xpose.msra.mxu0 0
        %2321 = vmatprep.subr.bf16.mxu0 0
        %2322 = vmatpush1.bf16.xpose.msra.mxu0 0
        %2323 = vmatprep.subr.bf16.mxu0 0
        %2324 = vmatpush1.bf16.xpose.msra.mxu0 0
        %2325 = vmatprep.subr.bf16.mxu0 0
        %2326 = vmatpush1.bf16.xpose.msra.mxu0 0
        %2327 = vmatprep.mubr.bf16.mxu0 0
        %2328 = vmatmul.mubr.bf16.gmra.mrb[0].mxu0 %v2284
        %v2329 = vpop.f32.mrb[0].mxu0
        %v2330 = vadd.f32 0.0, %v2329
        %v2331 = vpop.f32.mrb[0].mxu0
        %v2332 = vpop.f32.mrb[0].mxu0
        %v2333 = vadd.f32 0.0, %v2332
        %v2334 = vpop.f32.mrb[0].mxu0
        %2335 = vmatprep.mubr.bf16.mxu0 0
        %2336 = vmatmul.mubr.bf16.gmra.mrb[0].mxu0 %v2287
        %v2337 = vpop.f32.mrb[0].mxu0
        %v2338 = vadd.f32 0.0, %v2337
        %v2339 = vpop.f32.mrb[0].mxu0
        %v2340 = vpop.f32.mrb[0].mxu0
        %v2341 = vadd.f32 0.0, %v2340
        %v2342 = vpop.f32.mrb[0].mxu0
        %2343 = vdwg.mxu0
        %v2345 = vsel %vm1428, %v1010, 0
        %v2348 = vsel %vm1428, %v1011, 0
        %v2351 = vsel %vm1428, %v1218, 0
        %v2354 = vsel %vm1428, %v1219, 0
        %2356 = vmatprep.subr.bf16.mxu0 0
        %2357 = vmatpush1.bf16.xpose.msra.mxu0 %v2351
        %2358 = vmatprep.subr.bf16.mxu0 0
        %2359 = vmatpush1.bf16.xpose.msra.mxu0 %v2354
        %2360 = vmatprep.subr.bf16.mxu0 0
        %2361 = vmatpush1.bf16.xpose.msra.mxu0 0
        %2362 = vmatprep.subr.bf16.mxu0 0
        %2363 = vmatpush1.bf16.xpose.msra.mxu0 0
        %2364 = vmatprep.subr.bf16.mxu0 0
        %2365 = vmatpush1.bf16.xpose.msra.mxu0 0
        %2366 = vmatprep.subr.bf16.mxu0 0
        %2367 = vmatpush1.bf16.xpose.msra.mxu0 0
        %2368 = vmatprep.subr.bf16.mxu0 0
        %2369 = vmatpush1.bf16.xpose.msra.mxu0 0
        %2370 = vmatprep.subr.bf16.mxu0 0
        %2371 = vmatpush1.bf16.xpose.msra.mxu0 0
        %2372 = vmatprep.subr.bf16.mxu0 0
        %2373 = vmatpush1.bf16.xpose.msra.mxu0 0
        %2374 = vmatprep.subr.bf16.mxu0 0
        %2375 = vmatpush1.bf16.xpose.msra.mxu0 0
        %2376 = vmatprep.subr.bf16.mxu0 0
        %2377 = vmatpush1.bf16.xpose.msra.mxu0 0
        %2378 = vmatprep.subr.bf16.mxu0 0
        %2379 = vmatpush1.bf16.xpose.msra.mxu0 0
        %2380 = vmatprep.subr.bf16.mxu0 0
        %2381 = vmatpush1.bf16.xpose.msra.mxu0 0
        %2382 = vmatprep.subr.bf16.mxu0 0
        %2383 = vmatpush1.bf16.xpose.msra.mxu0 0
        %2384 = vmatprep.subr.bf16.mxu0 0
        %2385 = vmatpush1.bf16.xpose.msra.mxu0 0
        %2386 = vmatprep.subr.bf16.mxu0 0
        %2387 = vmatpush1.bf16.xpose.msra.mxu0 0
        %2388 = vmatprep.mubr.bf16.mxu0 0
        %2389 = vmatmul.mubr.bf16.gmra.mrb[0].mxu0 %v2345
        %v2390 = vpop.f32.mrb[0].mxu0
        %v2391 = vadd.f32 0.0, %v2390
        %v2392 = vpop.f32.mrb[0].mxu0
        %v2393 = vpop.f32.mrb[0].mxu0
        %v2394 = vadd.f32 0.0, %v2393
        %v2395 = vpop.f32.mrb[0].mxu0
        %2396 = vmatprep.mubr.bf16.mxu0 0
        %2397 = vmatmul.mubr.bf16.gmra.mrb[0].mxu0 %v2348
        %v2398 = vpop.f32.mrb[0].mxu0
        %v2399 = vadd.f32 0.0, %v2398
        %v2400 = vpop.f32.mrb[0].mxu0
        %v2401 = vpop.f32.mrb[0].mxu0
        %v2402 = vadd.f32 0.0, %v2401
        %v2403 = vpop.f32.mrb[0].mxu0
        %2404 = vdwg.mxu0
        %vm2405 = vcmask 261120
        %v2406 = vsel %vm2405, %v1476, -inf
        %2407 = vmax.xlane.f32.xlu0 %v2406
        %v2408 = vpop.xlane.xlu0 %2407
        %v2409 = vsel %vm2405, %v1479, -inf
        %2410 = vmax.xlane.f32.xlu0 %v2409
        %v2411 = vpop.xlane.xlu0 %2410
        %v2412 = vsel %vm2405, %v1484, -inf
        %2413 = vmax.xlane.f32.xlu0 %v2412
        %v2414 = vpop.xlane.xlu0 %2413
        %v2415 = vsel %vm2405, %v1487, -inf
        %2416 = vmax.xlane.f32.xlu0 %v2415
        %v2417 = vpop.xlane.xlu0 %2416
        %v2418 = vsel %vm2405, %v1537, -inf
        %2419 = vmax.xlane.f32.xlu0 %v2418
        %v2420 = vpop.xlane.xlu0 %2419
        %v2421 = vsel %vm2405, %v1540, -inf
        %2422 = vmax.xlane.f32.xlu0 %v2421
        %v2423 = vpop.xlane.xlu0 %2422
        %v2424 = vsel %vm2405, %v1545, -inf
        %2425 = vmax.xlane.f32.xlu0 %v2424
        %v2426 = vpop.xlane.xlu0 %2425
        %v2427 = vsel %vm2405, %v1548, -inf
        %2428 = vmax.xlane.f32.xlu0 %v2427
        %v2429 = vpop.xlane.xlu0 %2428
        %v2430 = vsel %vm2405, %v1598, -inf
        %2431 = vmax.xlane.f32.xlu0 %v2430
        %v2432 = vpop.xlane.xlu0 %2431
        %v2433 = vsel %vm2405, %v1601, -inf
        %2434 = vmax.xlane.f32.xlu0 %v2433
        %v2435 = vpop.xlane.xlu0 %2434
        %v2436 = vsel %vm2405, %v1606, -inf
        %2437 = vmax.xlane.f32.xlu0 %v2436
        %v2438 = vpop.xlane.xlu0 %2437
        %v2439 = vsel %vm2405, %v1609, -inf
        %2440 = vmax.xlane.f32.xlu0 %v2439
        %v2441 = vpop.xlane.xlu0 %2440
        %v2442 = vsel %vm2405, %v1659, -inf
        %2443 = vmax.xlane.f32.xlu0 %v2442
        %v2444 = vpop.xlane.xlu0 %2443
        %v2445 = vsel %vm2405, %v1662, -inf
        %2446 = vmax.xlane.f32.xlu0 %v2445
        %v2447 = vpop.xlane.xlu0 %2446
        %v2448 = vsel %vm2405, %v1667, -inf
        %2449 = vmax.xlane.f32.xlu0 %v2448
        %v2450 = vpop.xlane.xlu0 %2449
        %v2451 = vsel %vm2405, %v1670, -inf
        %2452 = vmax.xlane.f32.xlu0 %v2451
        %v2453 = vpop.xlane.xlu0 %2452
        %v2454 = vsel %vm2405, %v1720, -inf
        %2455 = vmax.xlane.f32.xlu0 %v2454
        %v2456 = vpop.xlane.xlu0 %2455
        %v2457 = vsel %vm2405, %v1723, -inf
        %2458 = vmax.xlane.f32.xlu0 %v2457
        %v2459 = vpop.xlane.xlu0 %2458
        %v2460 = vsel %vm2405, %v1728, -inf
        %2461 = vmax.xlane.f32.xlu0 %v2460
        %v2462 = vpop.xlane.xlu0 %2461
        %v2463 = vsel %vm2405, %v1731, -inf
        %2464 = vmax.xlane.f32.xlu0 %v2463
        %v2465 = vpop.xlane.xlu0 %2464
        %v2466 = vsel %vm2405, %v1781, -inf
        %2467 = vmax.xlane.f32.xlu0 %v2466
        %v2468 = vpop.xlane.xlu0 %2467
        %v2469 = vsel %vm2405, %v1784, -inf
        %2470 = vmax.xlane.f32.xlu0 %v2469
        %v2471 = vpop.xlane.xlu0 %2470
        %v2472 = vsel %vm2405, %v1789, -inf
        %2473 = vmax.xlane.f32.xlu0 %v2472
        %v2474 = vpop.xlane.xlu0 %2473
        %v2475 = vsel %vm2405, %v1792, -inf
        %2476 = vmax.xlane.f32.xlu0 %v2475
        %v2477 = vpop.xlane.xlu0 %2476
        %v2478 = vsel %vm2405, %v1842, -inf
        %2479 = vmax.xlane.f32.xlu0 %v2478
        %v2480 = vpop.xlane.xlu0 %2479
        %v2481 = vsel %vm2405, %v1845, -inf
        %2482 = vmax.xlane.f32.xlu0 %v2481
        %v2483 = vpop.xlane.xlu0 %2482
        %v2484 = vsel %vm2405, %v1850, -inf
        %2485 = vmax.xlane.f32.xlu0 %v2484
        %v2486 = vpop.xlane.xlu0 %2485
        %v2487 = vsel %vm2405, %v1853, -inf
        %2488 = vmax.xlane.f32.xlu0 %v2487
        %v2489 = vpop.xlane.xlu0 %2488
        %v2490 = vsel %vm2405, %v1903, -inf
        %2491 = vmax.xlane.f32.xlu0 %v2490
        %v2492 = vpop.xlane.xlu0 %2491
        %v2493 = vsel %vm2405, %v1906, -inf
        %2494 = vmax.xlane.f32.xlu0 %v2493
        %v2495 = vpop.xlane.xlu0 %2494
        %v2496 = vsel %vm2405, %v1911, -inf
        %2497 = vmax.xlane.f32.xlu0 %v2496
        %v2498 = vpop.xlane.xlu0 %2497
        %v2499 = vsel %vm2405, %v1914, -inf
        %2500 = vmax.xlane.f32.xlu0 %v2499
        %v2501 = vpop.xlane.xlu0 %2500
        %v2502 = vsel %vm2405, %v1964, -inf
        %2503 = vmax.xlane.f32.xlu0 %v2502
        %v2504 = vpop.xlane.xlu0 %2503
        %v2505 = vsel %vm2405, %v1967, -inf
        %2506 = vmax.xlane.f32.xlu0 %v2505
        %v2507 = vpop.xlane.xlu0 %2506
        %v2508 = vsel %vm2405, %v1972, -inf
        %2509 = vmax.xlane.f32.xlu0 %v2508
        %v2510 = vpop.xlane.xlu0 %2509
        %v2511 = vsel %vm2405, %v1975, -inf
        %2512 = vmax.xlane.f32.xlu0 %v2511
        %v2513 = vpop.xlane.xlu0 %2512
        %v2514 = vsel %vm2405, %v2025, -inf
        %2515 = vmax.xlane.f32.xlu0 %v2514
        %v2516 = vpop.xlane.xlu0 %2515
        %v2517 = vsel %vm2405, %v2028, -inf
        %2518 = vmax.xlane.f32.xlu0 %v2517
        %v2519 = vpop.xlane.xlu0 %2518
        %v2520 = vsel %vm2405, %v2033, -inf
        %2521 = vmax.xlane.f32.xlu0 %v2520
        %v2522 = vpop.xlane.xlu0 %2521
        %v2523 = vsel %vm2405, %v2036, -inf
        %2524 = vmax.xlane.f32.xlu0 %v2523
        %v2525 = vpop.xlane.xlu0 %2524
        %v2526 = vsel %vm2405, %v2086, -inf
        %2527 = vmax.xlane.f32.xlu0 %v2526
        %v2528 = vpop.xlane.xlu0 %2527
        %v2529 = vsel %vm2405, %v2089, -inf
        %2530 = vmax.xlane.f32.xlu0 %v2529
        %v2531 = vpop.xlane.xlu0 %2530
        %v2532 = vsel %vm2405, %v2094, -inf
        %2533 = vmax.xlane.f32.xlu0 %v2532
        %v2534 = vpop.xlane.xlu0 %2533
        %v2535 = vsel %vm2405, %v2097, -inf
        %2536 = vmax.xlane.f32.xlu0 %v2535
        %v2537 = vpop.xlane.xlu0 %2536
        %v2538 = vsel %vm2405, %v2147, -inf
        %2539 = vmax.xlane.f32.xlu0 %v2538
        %v2540 = vpop.xlane.xlu0 %2539
        %v2541 = vsel %vm2405, %v2150, -inf
        %2542 = vmax.xlane.f32.xlu0 %v2541
        %v2543 = vpop.xlane.xlu0 %2542
        %v2544 = vsel %vm2405, %v2155, -inf
        %2545 = vmax.xlane.f32.xlu0 %v2544
        %v2546 = vpop.xlane.xlu0 %2545
        %v2547 = vsel %vm2405, %v2158, -inf
        %2548 = vmax.xlane.f32.xlu0 %v2547
        %v2549 = vpop.xlane.xlu0 %2548
        %v2550 = vsel %vm2405, %v2208, -inf
        %2551 = vmax.xlane.f32.xlu0 %v2550
        %v2552 = vpop.xlane.xlu0 %2551
        %v2553 = vsel %vm2405, %v2211, -inf
        %2554 = vmax.xlane.f32.xlu0 %v2553
        %v2555 = vpop.xlane.xlu0 %2554
        %v2556 = vsel %vm2405, %v2216, -inf
        %2557 = vmax.xlane.f32.xlu0 %v2556
        %v2558 = vpop.xlane.xlu0 %2557
        %v2559 = vsel %vm2405, %v2219, -inf
        %2560 = vmax.xlane.f32.xlu0 %v2559
        %v2561 = vpop.xlane.xlu0 %2560
        %v2562 = vsel %vm2405, %v2269, -inf
        %2563 = vmax.xlane.f32.xlu0 %v2562
        %v2564 = vpop.xlane.xlu0 %2563
        %v2565 = vsel %vm2405, %v2272, -inf
        %2566 = vmax.xlane.f32.xlu0 %v2565
        %v2567 = vpop.xlane.xlu0 %2566
        %v2568 = vsel %vm2405, %v2277, -inf
        %2569 = vmax.xlane.f32.xlu0 %v2568
        %v2570 = vpop.xlane.xlu0 %2569
        %v2571 = vsel %vm2405, %v2280, -inf
        %2572 = vmax.xlane.f32.xlu0 %v2571
        %v2573 = vpop.xlane.xlu0 %2572
        %v2574 = vsel %vm2405, %v2330, -inf
        %2575 = vmax.xlane.f32.xlu0 %v2574
        %v2576 = vpop.xlane.xlu0 %2575
        %v2577 = vsel %vm2405, %v2333, -inf
        %2578 = vmax.xlane.f32.xlu0 %v2577
        %v2579 = vpop.xlane.xlu0 %2578
        %v2580 = vsel %vm2405, %v2338, -inf
        %2581 = vmax.xlane.f32.xlu0 %v2580
        %v2582 = vpop.xlane.xlu0 %2581
        %v2583 = vsel %vm2405, %v2341, -inf
        %2584 = vmax.xlane.f32.xlu0 %v2583
        %v2585 = vpop.xlane.xlu0 %2584
        %v2586 = vsel %vm2405, %v2391, -inf
        %2587 = vmax.xlane.f32.xlu0 %v2586
        %v2588 = vpop.xlane.xlu0 %2587
        %v2589 = vsel %vm2405, %v2394, -inf
        %2590 = vmax.xlane.f32.xlu0 %v2589
        %v2591 = vpop.xlane.xlu0 %2590
        %v2592 = vsel %vm2405, %v2399, -inf
        %2593 = vmax.xlane.f32.xlu0 %v2592
        %v2594 = vpop.xlane.xlu0 %2593
        %v2595 = vsel %vm2405, %v2402, -inf
        %2596 = vmax.xlane.f32.xlu0 %v2595
        %v2597 = vpop.xlane.xlu0 %2596
        %v2598 = vsub.f32 %v1476, %v2408
        %v2599 = vsub.f32 %v1479, %v2411
        %v2600 = vsub.f32 %v1484, %v2414
        %v2601 = vsub.f32 %v1487, %v2417
        %v2602 = vsub.f32 %v1537, %v2420
        %v2603 = vsub.f32 %v1540, %v2423
        %v2604 = vsub.f32 %v1545, %v2426
        %v2605 = vsub.f32 %v1548, %v2429
        %v2606 = vsub.f32 %v1598, %v2432
        %v2607 = vsub.f32 %v1601, %v2435
        %v2608 = vsub.f32 %v1606, %v2438
        %v2609 = vsub.f32 %v1609, %v2441
        %v2610 = vsub.f32 %v1659, %v2444
        %v2611 = vsub.f32 %v1662, %v2447
        %v2612 = vsub.f32 %v1667, %v2450
        %v2613 = vsub.f32 %v1670, %v2453
        %v2614 = vsub.f32 %v1720, %v2456
        %v2615 = vsub.f32 %v1723, %v2459
        %v2616 = vsub.f32 %v1728, %v2462
        %v2617 = vsub.f32 %v1731, %v2465
        %v2618 = vsub.f32 %v1781, %v2468
        %v2619 = vsub.f32 %v1784, %v2471
        %v2620 = vsub.f32 %v1789, %v2474
        %v2621 = vsub.f32 %v1792, %v2477
        %v2622 = vsub.f32 %v1842, %v2480
        %v2623 = vsub.f32 %v1845, %v2483
        %v2624 = vsub.f32 %v1850, %v2486
        %v2625 = vsub.f32 %v1853, %v2489
        %v2626 = vsub.f32 %v1903, %v2492
        %v2627 = vsub.f32 %v1906, %v2495
        %v2628 = vsub.f32 %v1911, %v2498
        %v2629 = vsub.f32 %v1914, %v2501
        %v2630 = vsub.f32 %v1964, %v2504
        %v2631 = vsub.f32 %v1967, %v2507
        %v2632 = vsub.f32 %v1972, %v2510
        %v2633 = vsub.f32 %v1975, %v2513
        %v2634 = vsub.f32 %v2025, %v2516
        %v2635 = vsub.f32 %v2028, %v2519
        %v2636 = vsub.f32 %v2033, %v2522
        %v2637 = vsub.f32 %v2036, %v2525
        %v2638 = vsub.f32 %v2086, %v2528
        %v2639 = vsub.f32 %v2089, %v2531
        %v2640 = vsub.f32 %v2094, %v2534
        %v2641 = vsub.f32 %v2097, %v2537
        %v2642 = vsub.f32 %v2147, %v2540
        %v2643 = vsub.f32 %v2150, %v2543
        %v2644 = vsub.f32 %v2155, %v2546
        %v2645 = vsub.f32 %v2158, %v2549
        %v2646 = vsub.f32 %v2208, %v2552
        %v2647 = vsub.f32 %v2211, %v2555
        %v2648 = vsub.f32 %v2216, %v2558
        %v2649 = vsub.f32 %v2219, %v2561
        %v2650 = vsub.f32 %v2269, %v2564
        %v2651 = vsub.f32 %v2272, %v2567
        %v2652 = vsub.f32 %v2277, %v2570
        %v2653 = vsub.f32 %v2280, %v2573
        %v2654 = vsub.f32 %v2330, %v2576
        %v2655 = vsub.f32 %v2333, %v2579
        %v2656 = vsub.f32 %v2338, %v2582
        %v2657 = vsub.f32 %v2341, %v2585
        %v2658 = vsub.f32 %v2391, %v2588
        %v2659 = vsub.f32 %v2394, %v2591
        %v2660 = vsub.f32 %v2399, %v2594
        %v2661 = vsub.f32 %v2402, %v2597
        %v2662 = vmul.f32 %v2598, 1.442695
        %v2663 = vpow.pop %v2662
        %v2664 = vmul.f32 %v2599, 1.442695
        %v2665 = vpow.pop %v2664
        %v2666 = vmul.f32 %v2600, 1.442695
        %v2667 = vpow.pop %v2666
        %v2668 = vmul.f32 %v2601, 1.442695
        %v2669 = vpow.pop %v2668
        %v2670 = vmul.f32 %v2602, 1.442695
        %v2671 = vpow.pop %v2670
        %v2672 = vmul.f32 %v2603, 1.442695
        %v2673 = vpow.pop %v2672
        %v2674 = vmul.f32 %v2604, 1.442695
        %v2675 = vpow.pop %v2674
        %v2676 = vmul.f32 %v2605, 1.442695
        %v2677 = vpow.pop %v2676
        %v2678 = vmul.f32 %v2606, 1.442695
        %v2679 = vpow.pop %v2678
        %v2680 = vmul.f32 %v2607, 1.442695
        %v2681 = vpow.pop %v2680
        %v2682 = vmul.f32 %v2608, 1.442695
        %v2683 = vpow.pop %v2682
        %v2684 = vmul.f32 %v2609, 1.442695
        %v2685 = vpow.pop %v2684
        %v2686 = vmul.f32 %v2610, 1.442695
        %v2687 = vpow.pop %v2686
        %v2688 = vmul.f32 %v2611, 1.442695
        %v2689 = vpow.pop %v2688
        %v2690 = vmul.f32 %v2612, 1.442695
        %v2691 = vpow.pop %v2690
        %v2692 = vmul.f32 %v2613, 1.442695
        %v2693 = vpow.pop %v2692
        %v2694 = vmul.f32 %v2614, 1.442695
        %v2695 = vpow.pop %v2694
        %v2696 = vmul.f32 %v2615, 1.442695
        %v2697 = vpow.pop %v2696
        %v2698 = vmul.f32 %v2616, 1.442695
        %v2699 = vpow.pop %v2698
        %v2700 = vmul.f32 %v2617, 1.442695
        %v2701 = vpow.pop %v2700
        %v2702 = vmul.f32 %v2618, 1.442695
        %v2703 = vpow.pop %v2702
        %v2704 = vmul.f32 %v2619, 1.442695
        %v2705 = vpow.pop %v2704
        %v2706 = vmul.f32 %v2620, 1.442695
        %v2707 = vpow.pop %v2706
        %v2708 = vmul.f32 %v2621, 1.442695
        %v2709 = vpow.pop %v2708
        %v2710 = vmul.f32 %v2622, 1.442695
        %v2711 = vpow.pop %v2710
        %v2712 = vmul.f32 %v2623, 1.442695
        %v2713 = vpow.pop %v2712
        %v2714 = vmul.f32 %v2624, 1.442695
        %v2715 = vpow.pop %v2714
        %v2716 = vmul.f32 %v2625, 1.442695
        %v2717 = vpow.pop %v2716
        %v2718 = vmul.f32 %v2626, 1.442695
        %v2719 = vpow.pop %v2718
        %v2720 = vmul.f32 %v2627, 1.442695
        %v2721 = vpow.pop %v2720
        %v2722 = vmul.f32 %v2628, 1.442695
        %v2723 = vpow.pop %v2722
        %v2724 = vmul.f32 %v2629, 1.442695
        %v2725 = vpow.pop %v2724
        %v2726 = vmul.f32 %v2630, 1.442695
        %v2727 = vpow.pop %v2726
        %v2728 = vmul.f32 %v2631, 1.442695
        %v2729 = vpow.pop %v2728
        %v2730 = vmul.f32 %v2632, 1.442695
        %v2731 = vpow.pop %v2730
        %v2732 = vmul.f32 %v2633, 1.442695
        %v2733 = vpow.pop %v2732
        %v2734 = vmul.f32 %v2634, 1.442695
        %v2735 = vpow.pop %v2734
        %v2736 = vmul.f32 %v2635, 1.442695
        %v2737 = vpow.pop %v2736
        %v2738 = vmul.f32 %v2636, 1.442695
        %v2739 = vpow.pop %v2738
        %v2740 = vmul.f32 %v2637, 1.442695
        %v2741 = vpow.pop %v2740
        %v2742 = vmul.f32 %v2638, 1.442695
        %v2743 = vpow.pop %v2742
        %v2744 = vmul.f32 %v2639, 1.442695
        %v2745 = vpow.pop %v2744
        %v2746 = vmul.f32 %v2640, 1.442695
        %v2747 = vpow.pop %v2746
        %v2748 = vmul.f32 %v2641, 1.442695
        %v2749 = vpow.pop %v2748
        %v2750 = vmul.f32 %v2642, 1.442695
        %v2751 = vpow.pop %v2750
        %v2752 = vmul.f32 %v2643, 1.442695
        %v2753 = vpow.pop %v2752
        %v2754 = vmul.f32 %v2644, 1.442695
        %v2755 = vpow.pop %v2754
        %v2756 = vmul.f32 %v2645, 1.442695
        %v2757 = vpow.pop %v2756
        %v2758 = vmul.f32 %v2646, 1.442695
        %v2759 = vpow.pop %v2758
        %v2760 = vmul.f32 %v2647, 1.442695
        %v2761 = vpow.pop %v2760
        %v2762 = vmul.f32 %v2648, 1.442695
        %v2763 = vpow.pop %v2762
        %v2764 = vmul.f32 %v2649, 1.442695
        %v2765 = vpow.pop %v2764
        %v2766 = vmul.f32 %v2650, 1.442695
        %v2767 = vpow.pop %v2766
        %v2768 = vmul.f32 %v2651, 1.442695
        %v2769 = vpow.pop %v2768
        %v2770 = vmul.f32 %v2652, 1.442695
        %v2771 = vpow.pop %v2770
        %v2772 = vmul.f32 %v2653, 1.442695
        %v2773 = vpow.pop %v2772
        %v2774 = vmul.f32 %v2654, 1.442695
        %v2775 = vpow.pop %v2774
        %v2776 = vmul.f32 %v2655, 1.442695
        %v2777 = vpow.pop %v2776
        %v2778 = vmul.f32 %v2656, 1.442695
        %v2779 = vpow.pop %v2778
        %v2780 = vmul.f32 %v2657, 1.442695
        %v2781 = vpow.pop %v2780
        %v2782 = vmul.f32 %v2658, 1.442695
        %v2783 = vpow.pop %v2782
        %v2784 = vmul.f32 %v2659, 1.442695
        %v2785 = vpow.pop %v2784
        %v2786 = vmul.f32 %v2660, 1.442695
        %v2787 = vpow.pop %v2786
        %v2788 = vmul.f32 %v2661, 1.442695
        %v2789 = vpow.pop %v2788
        %v2790 = vsel %vm2405, %v2663, 0.0
        %2791 = vadd.xlane.f32.xlu0 %v2790
        %v2792 = vpop.xlane.xlu0 %2791
        %v2793 = vsel %vm2405, %v2665, 0.0
        %2794 = vadd.xlane.f32.xlu0 %v2793
        %v2795 = vpop.xlane.xlu0 %2794
        %v2796 = vsel %vm2405, %v2667, 0.0
        %2797 = vadd.xlane.f32.xlu0 %v2796
        %v2798 = vpop.xlane.xlu0 %2797
        %v2799 = vsel %vm2405, %v2669, 0.0
        %2800 = vadd.xlane.f32.xlu0 %v2799
        %v2801 = vpop.xlane.xlu0 %2800
        %v2802 = vsel %vm2405, %v2671, 0.0
        %2803 = vadd.xlane.f32.xlu0 %v2802
        %v2804 = vpop.xlane.xlu0 %2803
        %v2805 = vsel %vm2405, %v2673, 0.0
        %2806 = vadd.xlane.f32.xlu0 %v2805
        %v2807 = vpop.xlane.xlu0 %2806
        %v2808 = vsel %vm2405, %v2675, 0.0
        %2809 = vadd.xlane.f32.xlu0 %v2808
        %v2810 = vpop.xlane.xlu0 %2809
        %v2811 = vsel %vm2405, %v2677, 0.0
        %2812 = vadd.xlane.f32.xlu0 %v2811
        %v2813 = vpop.xlane.xlu0 %2812
        %v2814 = vsel %vm2405, %v2679, 0.0
        %2815 = vadd.xlane.f32.xlu0 %v2814
        %v2816 = vpop.xlane.xlu0 %2815
        %v2817 = vsel %vm2405, %v2681, 0.0
        %2818 = vadd.xlane.f32.xlu0 %v2817
        %v2819 = vpop.xlane.xlu0 %2818
        %v2820 = vsel %vm2405, %v2683, 0.0
        %2821 = vadd.xlane.f32.xlu0 %v2820
        %v2822 = vpop.xlane.xlu0 %2821
        %v2823 = vsel %vm2405, %v2685, 0.0
        %2824 = vadd.xlane.f32.xlu0 %v2823
        %v2825 = vpop.xlane.xlu0 %2824
        %v2826 = vsel %vm2405, %v2687, 0.0
        %2827 = vadd.xlane.f32.xlu0 %v2826
        %v2828 = vpop.xlane.xlu0 %2827
        %v2829 = vsel %vm2405, %v2689, 0.0
        %2830 = vadd.xlane.f32.xlu0 %v2829
        %v2831 = vpop.xlane.xlu0 %2830
        %v2832 = vsel %vm2405, %v2691, 0.0
        %2833 = vadd.xlane.f32.xlu0 %v2832
        %v2834 = vpop.xlane.xlu0 %2833
        %v2835 = vsel %vm2405, %v2693, 0.0
        %2836 = vadd.xlane.f32.xlu0 %v2835
        %v2837 = vpop.xlane.xlu0 %2836
        %v2838 = vsel %vm2405, %v2695, 0.0
        %2839 = vadd.xlane.f32.xlu0 %v2838
        %v2840 = vpop.xlane.xlu0 %2839
        %v2841 = vsel %vm2405, %v2697, 0.0
        %2842 = vadd.xlane.f32.xlu0 %v2841
        %v2843 = vpop.xlane.xlu0 %2842
        %v2844 = vsel %vm2405, %v2699, 0.0
        %2845 = vadd.xlane.f32.xlu0 %v2844
        %v2846 = vpop.xlane.xlu0 %2845
        %v2847 = vsel %vm2405, %v2701, 0.0
        %2848 = vadd.xlane.f32.xlu0 %v2847
        %v2849 = vpop.xlane.xlu0 %2848
        %v2850 = vsel %vm2405, %v2703, 0.0
        %2851 = vadd.xlane.f32.xlu0 %v2850
        %v2852 = vpop.xlane.xlu0 %2851
        %v2853 = vsel %vm2405, %v2705, 0.0
        %2854 = vadd.xlane.f32.xlu0 %v2853
        %v2855 = vpop.xlane.xlu0 %2854
        %v2856 = vsel %vm2405, %v2707, 0.0
        %2857 = vadd.xlane.f32.xlu0 %v2856
        %v2858 = vpop.xlane.xlu0 %2857
        %v2859 = vsel %vm2405, %v2709, 0.0
        %2860 = vadd.xlane.f32.xlu0 %v2859
        %v2861 = vpop.xlane.xlu0 %2860
        %v2862 = vsel %vm2405, %v2711, 0.0
        %2863 = vadd.xlane.f32.xlu0 %v2862
        %v2864 = vpop.xlane.xlu0 %2863
        %v2865 = vsel %vm2405, %v2713, 0.0
        %2866 = vadd.xlane.f32.xlu0 %v2865
        %v2867 = vpop.xlane.xlu0 %2866
        %v2868 = vsel %vm2405, %v2715, 0.0
        %2869 = vadd.xlane.f32.xlu0 %v2868
        %v2870 = vpop.xlane.xlu0 %2869
        %v2871 = vsel %vm2405, %v2717, 0.0
        %2872 = vadd.xlane.f32.xlu0 %v2871
        %v2873 = vpop.xlane.xlu0 %2872
        %v2874 = vsel %vm2405, %v2719, 0.0
        %2875 = vadd.xlane.f32.xlu0 %v2874
        %v2876 = vpop.xlane.xlu0 %2875
        %v2877 = vsel %vm2405, %v2721, 0.0
        %2878 = vadd.xlane.f32.xlu0 %v2877
        %v2879 = vpop.xlane.xlu0 %2878
        %v2880 = vsel %vm2405, %v2723, 0.0
        %2881 = vadd.xlane.f32.xlu0 %v2880
        %v2882 = vpop.xlane.xlu0 %2881
        %v2883 = vsel %vm2405, %v2725, 0.0
        %2884 = vadd.xlane.f32.xlu0 %v2883
        %v2885 = vpop.xlane.xlu0 %2884
        %v2886 = vsel %vm2405, %v2727, 0.0
        %2887 = vadd.xlane.f32.xlu0 %v2886
        %v2888 = vpop.xlane.xlu0 %2887
        %v2889 = vsel %vm2405, %v2729, 0.0
        %2890 = vadd.xlane.f32.xlu0 %v2889
        %v2891 = vpop.xlane.xlu0 %2890
        %v2892 = vsel %vm2405, %v2731, 0.0
        %2893 = vadd.xlane.f32.xlu0 %v2892
        %v2894 = vpop.xlane.xlu0 %2893
        %v2895 = vsel %vm2405, %v2733, 0.0
        %2896 = vadd.xlane.f32.xlu0 %v2895
        %v2897 = vpop.xlane.xlu0 %2896
        %v2898 = vsel %vm2405, %v2735, 0.0
        %2899 = vadd.xlane.f32.xlu0 %v2898
        %v2900 = vpop.xlane.xlu0 %2899
        %v2901 = vsel %vm2405, %v2737, 0.0
        %2902 = vadd.xlane.f32.xlu0 %v2901
        %v2903 = vpop.xlane.xlu0 %2902
        %v2904 = vsel %vm2405, %v2739, 0.0
        %2905 = vadd.xlane.f32.xlu0 %v2904
        %v2906 = vpop.xlane.xlu0 %2905
        %v2907 = vsel %vm2405, %v2741, 0.0
        %2908 = vadd.xlane.f32.xlu0 %v2907
        %v2909 = vpop.xlane.xlu0 %2908
        %v2910 = vsel %vm2405, %v2743, 0.0
        %2911 = vadd.xlane.f32.xlu0 %v2910
        %v2912 = vpop.xlane.xlu0 %2911
        %v2913 = vsel %vm2405, %v2745, 0.0
        %2914 = vadd.xlane.f32.xlu0 %v2913
        %v2915 = vpop.xlane.xlu0 %2914
        %v2916 = vsel %vm2405, %v2747, 0.0
        %2917 = vadd.xlane.f32.xlu0 %v2916
        %v2918 = vpop.xlane.xlu0 %2917
        %v2919 = vsel %vm2405, %v2749, 0.0
        %2920 = vadd.xlane.f32.xlu0 %v2919
        %v2921 = vpop.xlane.xlu0 %2920
        %v2922 = vsel %vm2405, %v2751, 0.0
        %2923 = vadd.xlane.f32.xlu0 %v2922
        %v2924 = vpop.xlane.xlu0 %2923
        %v2925 = vsel %vm2405, %v2753, 0.0
        %2926 = vadd.xlane.f32.xlu0 %v2925
        %v2927 = vpop.xlane.xlu0 %2926
        %v2928 = vsel %vm2405, %v2755, 0.0
        %2929 = vadd.xlane.f32.xlu0 %v2928
        %v2930 = vpop.xlane.xlu0 %2929
        %v2931 = vsel %vm2405, %v2757, 0.0
        %2932 = vadd.xlane.f32.xlu0 %v2931
        %v2933 = vpop.xlane.xlu0 %2932
        %v2934 = vsel %vm2405, %v2759, 0.0
        %2935 = vadd.xlane.f32.xlu0 %v2934
        %v2936 = vpop.xlane.xlu0 %2935
        %v2937 = vsel %vm2405, %v2761, 0.0
        %2938 = vadd.xlane.f32.xlu0 %v2937
        %v2939 = vpop.xlane.xlu0 %2938
        %v2940 = vsel %vm2405, %v2763, 0.0
        %2941 = vadd.xlane.f32.xlu0 %v2940
        %v2942 = vpop.xlane.xlu0 %2941
        %v2943 = vsel %vm2405, %v2765, 0.0
        %2944 = vadd.xlane.f32.xlu0 %v2943
        %v2945 = vpop.xlane.xlu0 %2944
        %v2946 = vsel %vm2405, %v2767, 0.0
        %2947 = vadd.xlane.f32.xlu0 %v2946
        %v2948 = vpop.xlane.xlu0 %2947
        %v2949 = vsel %vm2405, %v2769, 0.0
        %2950 = vadd.xlane.f32.xlu0 %v2949
        %v2951 = vpop.xlane.xlu0 %2950
        %v2952 = vsel %vm2405, %v2771, 0.0
        %2953 = vadd.xlane.f32.xlu0 %v2952
        %v2954 = vpop.xlane.xlu0 %2953
        %v2955 = vsel %vm2405, %v2773, 0.0
        %2956 = vadd.xlane.f32.xlu0 %v2955
        %v2957 = vpop.xlane.xlu0 %2956
        %v2958 = vsel %vm2405, %v2775, 0.0
        %2959 = vadd.xlane.f32.xlu0 %v2958
        %v2960 = vpop.xlane.xlu0 %2959
        %v2961 = vsel %vm2405, %v2777, 0.0
        %2962 = vadd.xlane.f32.xlu0 %v2961
        %v2963 = vpop.xlane.xlu0 %2962
        %v2964 = vsel %vm2405, %v2779, 0.0
        %2965 = vadd.xlane.f32.xlu0 %v2964
        %v2966 = vpop.xlane.xlu0 %2965
        %v2967 = vsel %vm2405, %v2781, 0.0
        %2968 = vadd.xlane.f32.xlu0 %v2967
        %v2969 = vpop.xlane.xlu0 %2968
        %v2970 = vsel %vm2405, %v2783, 0.0
        %2971 = vadd.xlane.f32.xlu0 %v2970
        %v2972 = vpop.xlane.xlu0 %2971
        %v2973 = vsel %vm2405, %v2785, 0.0
        %2974 = vadd.xlane.f32.xlu0 %v2973
        %v2975 = vpop.xlane.xlu0 %2974
        %v2976 = vsel %vm2405, %v2787, 0.0
        %2977 = vadd.xlane.f32.xlu0 %v2976
        %v2978 = vpop.xlane.xlu0 %2977
        %v2979 = vsel %vm2405, %v2789, 0.0
        %2980 = vadd.xlane.f32.xlu0 %v2979
        %v2981 = vpop.xlane.xlu0 %2980
        %v2982 = vpack.c.bf16 %v2665, %v2663
        %v2983 = vpack.c.bf16 %v2669, %v2667
        %v2984 = vpack.c.bf16 %v2673, %v2671
        %v2985 = vpack.c.bf16 %v2677, %v2675
        %v2986 = vpack.c.bf16 %v2681, %v2679
        %v2987 = vpack.c.bf16 %v2685, %v2683
        %v2988 = vpack.c.bf16 %v2689, %v2687
        %v2989 = vpack.c.bf16 %v2693, %v2691
        %v2990 = vpack.c.bf16 %v2697, %v2695
        %v2991 = vpack.c.bf16 %v2701, %v2699
        %v2992 = vpack.c.bf16 %v2705, %v2703
        %v2993 = vpack.c.bf16 %v2709, %v2707
        %v2994 = vpack.c.bf16 %v2713, %v2711
        %v2995 = vpack.c.bf16 %v2717, %v2715
        %v2996 = vpack.c.bf16 %v2721, %v2719
        %v2997 = vpack.c.bf16 %v2725, %v2723
        %v2998 = vpack.c.bf16 %v2729, %v2727
        %v2999 = vpack.c.bf16 %v2733, %v2731
        %v3000 = vpack.c.bf16 %v2737, %v2735
        %v3001 = vpack.c.bf16 %v2741, %v2739
        %v3002 = vpack.c.bf16 %v2745, %v2743
        %v3003 = vpack.c.bf16 %v2749, %v2747
        %v3004 = vpack.c.bf16 %v2753, %v2751
        %v3005 = vpack.c.bf16 %v2757, %v2755
        %v3006 = vpack.c.bf16 %v2761, %v2759
        %v3007 = vpack.c.bf16 %v2765, %v2763
        %v3008 = vpack.c.bf16 %v2769, %v2767
        %v3009 = vpack.c.bf16 %v2773, %v2771
        %v3010 = vpack.c.bf16 %v2777, %v2775
        %v3011 = vpack.c.bf16 %v2781, %v2779
        %v3012 = vpack.c.bf16 %v2785, %v2783
        %v3013 = vpack.c.bf16 %v2789, %v2787
        %v3015 = vsel %vm2405, %v2982, 0
        %v3018 = vsel %vm2405, %v2983, 0
        %3020 = vmatprep.subr.bf16.mxu0 0
        %3021 = vmatpush1.bf16.msra.mxu0 %v1396
        %3022 = vmatprep.subr.bf16.mxu0 0
        %3023 = vmatpush1.bf16.msra.mxu0 %v1397
        %3024 = vmatprep.subr.bf16.mxu0 0
        %3025 = vmatpush1.bf16.msra.mxu0 0
        %3026 = vmatprep.subr.bf16.mxu0 0
        %3027 = vmatpush1.bf16.msra.mxu0 0
        %3028 = vmatprep.subr.bf16.mxu0 0
        %3029 = vmatpush1.bf16.msra.mxu0 0
        %3030 = vmatprep.subr.bf16.mxu0 0
        %3031 = vmatpush1.bf16.msra.mxu0 0
        %3032 = vmatprep.subr.bf16.mxu0 0
        %3033 = vmatpush1.bf16.msra.mxu0 0
        %3034 = vmatprep.subr.bf16.mxu0 0
        %3035 = vmatpush1.bf16.msra.mxu0 0
        %3036 = vmatprep.subr.bf16.mxu0 0
        %3037 = vmatpush1.bf16.msra.mxu0 0
        %3038 = vmatprep.subr.bf16.mxu0 0
        %3039 = vmatpush1.bf16.msra.mxu0 0
        %3040 = vmatprep.subr.bf16.mxu0 0
        %3041 = vmatpush1.bf16.msra.mxu0 0
        %3042 = vmatprep.subr.bf16.mxu0 0
        %3043 = vmatpush1.bf16.msra.mxu0 0
        %3044 = vmatprep.subr.bf16.mxu0 0
        %3045 = vmatpush1.bf16.msra.mxu0 0
        %3046 = vmatprep.subr.bf16.mxu0 0
        %3047 = vmatpush1.bf16.msra.mxu0 0
        %3048 = vmatprep.subr.bf16.mxu0 0
        %3049 = vmatpush1.bf16.msra.mxu0 0
        %3050 = vmatprep.subr.bf16.mxu0 0
        %3051 = vmatpush1.bf16.msra.mxu0 0
        %3052 = vmatprep.mubr.bf16.mxu0 0
        %3053 = vmatmul.mubr.bf16.gmra.mrb[0].mxu0 %v3015
        %v3054 = vpop.f32.mrb[0].mxu0
        %v3055 = vadd.f32 0.0, %v3054
        %v3056 = vpop.f32.mrb[0].mxu0
        %v3057 = vpop.f32.mrb[0].mxu0
        %v3058 = vadd.f32 0.0, %v3057
        %v3059 = vpop.f32.mrb[0].mxu0
        %3060 = vmatprep.mubr.bf16.mxu0 0
        %3061 = vmatmul.mubr.bf16.gmra.mrb[0].mxu0 %v3018
        %v3062 = vpop.f32.mrb[0].mxu0
        %v3063 = vadd.f32 0.0, %v3062
        %v3064 = vpop.f32.mrb[0].mxu0
        %v3065 = vpop.f32.mrb[0].mxu0
        %v3066 = vadd.f32 0.0, %v3065
        %v3067 = vpop.f32.mrb[0].mxu0
        %3068 = vdwg.mxu0
        %v3070 = vsel %vm2405, %v2984, 0
        %v3073 = vsel %vm2405, %v2985, 0
        %3075 = vmatprep.subr.bf16.mxu0 0
        %3076 = vmatpush1.bf16.msra.mxu0 %v1398
        %3077 = vmatprep.subr.bf16.mxu0 0
        %3078 = vmatpush1.bf16.msra.mxu0 %v1399
        %3079 = vmatprep.subr.bf16.mxu0 0
        %3080 = vmatpush1.bf16.msra.mxu0 0
        %3081 = vmatprep.subr.bf16.mxu0 0
        %3082 = vmatpush1.bf16.msra.mxu0 0
        %3083 = vmatprep.subr.bf16.mxu0 0
        %3084 = vmatpush1.bf16.msra.mxu0 0
        %3085 = vmatprep.subr.bf16.mxu0 0
        %3086 = vmatpush1.bf16.msra.mxu0 0
        %3087 = vmatprep.subr.bf16.mxu0 0
        %3088 = vmatpush1.bf16.msra.mxu0 0
        %3089 = vmatprep.subr.bf16.mxu0 0
        %3090 = vmatpush1.bf16.msra.mxu0 0
        %3091 = vmatprep.subr.bf16.mxu0 0
        %3092 = vmatpush1.bf16.msra.mxu0 0
        %3093 = vmatprep.subr.bf16.mxu0 0
        %3094 = vmatpush1.bf16.msra.mxu0 0
        %3095 = vmatprep.subr.bf16.mxu0 0
        %3096 = vmatpush1.bf16.msra.mxu0 0
        %3097 = vmatprep.subr.bf16.mxu0 0
        %3098 = vmatpush1.bf16.msra.mxu0 0
        %3099 = vmatprep.subr.bf16.mxu0 0
        %3100 = vmatpush1.bf16.msra.mxu0 0
        %3101 = vmatprep.subr.bf16.mxu0 0
        %3102 = vmatpush1.bf16.msra.mxu0 0
        %3103 = vmatprep.subr.bf16.mxu0 0
        %3104 = vmatpush1.bf16.msra.mxu0 0
        %3105 = vmatprep.subr.bf16.mxu0 0
        %3106 = vmatpush1.bf16.msra.mxu0 0
        %3107 = vmatprep.mubr.bf16.mxu0 0
        %3108 = vmatmul.mubr.bf16.gmra.mrb[0].mxu0 %v3070
        %v3109 = vpop.f32.mrb[0].mxu0
        %v3110 = vadd.f32 0.0, %v3109
        %v3111 = vpop.f32.mrb[0].mxu0
        %v3112 = vpop.f32.mrb[0].mxu0
        %v3113 = vadd.f32 0.0, %v3112
        %v3114 = vpop.f32.mrb[0].mxu0
        %3115 = vmatprep.mubr.bf16.mxu0 0
        %3116 = vmatmul.mubr.bf16.gmra.mrb[0].mxu0 %v3073
        %v3117 = vpop.f32.mrb[0].mxu0
        %v3118 = vadd.f32 0.0, %v3117
        %v3119 = vpop.f32.mrb[0].mxu0
        %v3120 = vpop.f32.mrb[0].mxu0
        %v3121 = vadd.f32 0.0, %v3120
        %v3122 = vpop.f32.mrb[0].mxu0
        %3123 = vdwg.mxu0
        %v3125 = vsel %vm2405, %v2986, 0
        %v3128 = vsel %vm2405, %v2987, 0
        %3130 = vmatprep.subr.bf16.mxu0 0
        %3131 = vmatpush1.bf16.msra.mxu0 %v1400
        %3132 = vmatprep.subr.bf16.mxu0 0
        %3133 = vmatpush1.bf16.msra.mxu0 %v1401
        %3134 = vmatprep.subr.bf16.mxu0 0
        %3135 = vmatpush1.bf16.msra.mxu0 0
        %3136 = vmatprep.subr.bf16.mxu0 0
        %3137 = vmatpush1.bf16.msra.mxu0 0
        %3138 = vmatprep.subr.bf16.mxu0 0
        %3139 = vmatpush1.bf16.msra.mxu0 0
        %3140 = vmatprep.subr.bf16.mxu0 0
        %3141 = vmatpush1.bf16.msra.mxu0 0
        %3142 = vmatprep.subr.bf16.mxu0 0
        %3143 = vmatpush1.bf16.msra.mxu0 0
        %3144 = vmatprep.subr.bf16.mxu0 0
        %3145 = vmatpush1.bf16.msra.mxu0 0
        %3146 = vmatprep.subr.bf16.mxu0 0
        %3147 = vmatpush1.bf16.msra.mxu0 0
        %3148 = vmatprep.subr.bf16.mxu0 0
        %3149 = vmatpush1.bf16.msra.mxu0 0
        %3150 = vmatprep.subr.bf16.mxu0 0
        %3151 = vmatpush1.bf16.msra.mxu0 0
        %3152 = vmatprep.subr.bf16.mxu0 0
        %3153 = vmatpush1.bf16.msra.mxu0 0
        %3154 = vmatprep.subr.bf16.mxu0 0
        %3155 = vmatpush1.bf16.msra.mxu0 0
        %3156 = vmatprep.subr.bf16.mxu0 0
        %3157 = vmatpush1.bf16.msra.mxu0 0
        %3158 = vmatprep.subr.bf16.mxu0 0
        %3159 = vmatpush1.bf16.msra.mxu0 0
        %3160 = vmatprep.subr.bf16.mxu0 0
        %3161 = vmatpush1.bf16.msra.mxu0 0
        %3162 = vmatprep.mubr.bf16.mxu0 0
        %3163 = vmatmul.mubr.bf16.gmra.mrb[0].mxu0 %v3125
        %v3164 = vpop.f32.mrb[0].mxu0
        %v3165 = vadd.f32 0.0, %v3164
        %v3166 = vpop.f32.mrb[0].mxu0
        %v3167 = vpop.f32.mrb[0].mxu0
        %v3168 = vadd.f32 0.0, %v3167
        %v3169 = vpop.f32.mrb[0].mxu0
        %3170 = vmatprep.mubr.bf16.mxu0 0
        %3171 = vmatmul.mubr.bf16.gmra.mrb[0].mxu0 %v3128
        %v3172 = vpop.f32.mrb[0].mxu0
        %v3173 = vadd.f32 0.0, %v3172
        %v3174 = vpop.f32.mrb[0].mxu0
        %v3175 = vpop.f32.mrb[0].mxu0
        %v3176 = vadd.f32 0.0, %v3175
        %v3177 = vpop.f32.mrb[0].mxu0
        %3178 = vdwg.mxu0
        %v3180 = vsel %vm2405, %v2988, 0
        %v3183 = vsel %vm2405, %v2989, 0
        %3185 = vmatprep.subr.bf16.mxu0 0
        %3186 = vmatpush1.bf16.msra.mxu0 %v1402
        %3187 = vmatprep.subr.bf16.mxu0 0
        %3188 = vmatpush1.bf16.msra.mxu0 %v1403
        %3189 = vmatprep.subr.bf16.mxu0 0
        %3190 = vmatpush1.bf16.msra.mxu0 0
        %3191 = vmatprep.subr.bf16.mxu0 0
        %3192 = vmatpush1.bf16.msra.mxu0 0
        %3193 = vmatprep.subr.bf16.mxu0 0
        %3194 = vmatpush1.bf16.msra.mxu0 0
        %3195 = vmatprep.subr.bf16.mxu0 0
        %3196 = vmatpush1.bf16.msra.mxu0 0
        %3197 = vmatprep.subr.bf16.mxu0 0
        %3198 = vmatpush1.bf16.msra.mxu0 0
        %3199 = vmatprep.subr.bf16.mxu0 0
        %3200 = vmatpush1.bf16.msra.mxu0 0
        %3201 = vmatprep.subr.bf16.mxu0 0
        %3202 = vmatpush1.bf16.msra.mxu0 0
        %3203 = vmatprep.subr.bf16.mxu0 0
        %3204 = vmatpush1.bf16.msra.mxu0 0
        %3205 = vmatprep.subr.bf16.mxu0 0
        %3206 = vmatpush1.bf16.msra.mxu0 0
        %3207 = vmatprep.subr.bf16.mxu0 0
        %3208 = vmatpush1.bf16.msra.mxu0 0
        %3209 = vmatprep.subr.bf16.mxu0 0
        %3210 = vmatpush1.bf16.msra.mxu0 0
        %3211 = vmatprep.subr.bf16.mxu0 0
        %3212 = vmatpush1.bf16.msra.mxu0 0
        %3213 = vmatprep.subr.bf16.mxu0 0
        %3214 = vmatpush1.bf16.msra.mxu0 0
        %3215 = vmatprep.subr.bf16.mxu0 0
        %3216 = vmatpush1.bf16.msra.mxu0 0
        %3217 = vmatprep.mubr.bf16.mxu0 0
        %3218 = vmatmul.mubr.bf16.gmra.mrb[0].mxu0 %v3180
        %v3219 = vpop.f32.mrb[0].mxu0
        %v3220 = vadd.f32 0.0, %v3219
        %v3221 = vpop.f32.mrb[0].mxu0
        %v3222 = vpop.f32.mrb[0].mxu0
        %v3223 = vadd.f32 0.0, %v3222
        %v3224 = vpop.f32.mrb[0].mxu0
        %3225 = vmatprep.mubr.bf16.mxu0 0
        %3226 = vmatmul.mubr.bf16.gmra.mrb[0].mxu0 %v3183
        %v3227 = vpop.f32.mrb[0].mxu0
        %v3228 = vadd.f32 0.0, %v3227
        %v3229 = vpop.f32.mrb[0].mxu0
        %v3230 = vpop.f32.mrb[0].mxu0
        %v3231 = vadd.f32 0.0, %v3230
        %v3232 = vpop.f32.mrb[0].mxu0
        %3233 = vdwg.mxu0
        %v3235 = vsel %vm2405, %v2990, 0
        %v3238 = vsel %vm2405, %v2991, 0
        %3240 = vmatprep.subr.bf16.mxu0 0
        %3241 = vmatpush1.bf16.msra.mxu0 %v1404
        %3242 = vmatprep.subr.bf16.mxu0 0
        %3243 = vmatpush1.bf16.msra.mxu0 %v1405
        %3244 = vmatprep.subr.bf16.mxu0 0
        %3245 = vmatpush1.bf16.msra.mxu0 0
        %3246 = vmatprep.subr.bf16.mxu0 0
        %3247 = vmatpush1.bf16.msra.mxu0 0
        %3248 = vmatprep.subr.bf16.mxu0 0
        %3249 = vmatpush1.bf16.msra.mxu0 0
        %3250 = vmatprep.subr.bf16.mxu0 0
        %3251 = vmatpush1.bf16.msra.mxu0 0
        %3252 = vmatprep.subr.bf16.mxu0 0
        %3253 = vmatpush1.bf16.msra.mxu0 0
        %3254 = vmatprep.subr.bf16.mxu0 0
        %3255 = vmatpush1.bf16.msra.mxu0 0
        %3256 = vmatprep.subr.bf16.mxu0 0
        %3257 = vmatpush1.bf16.msra.mxu0 0
        %3258 = vmatprep.subr.bf16.mxu0 0
        %3259 = vmatpush1.bf16.msra.mxu0 0
        %3260 = vmatprep.subr.bf16.mxu0 0
        %3261 = vmatpush1.bf16.msra.mxu0 0
        %3262 = vmatprep.subr.bf16.mxu0 0
        %3263 = vmatpush1.bf16.msra.mxu0 0
        %3264 = vmatprep.subr.bf16.mxu0 0
        %3265 = vmatpush1.bf16.msra.mxu0 0
        %3266 = vmatprep.subr.bf16.mxu0 0
        %3267 = vmatpush1.bf16.msra.mxu0 0
        %3268 = vmatprep.subr.bf16.mxu0 0
        %3269 = vmatpush1.bf16.msra.mxu0 0
        %3270 = vmatprep.subr.bf16.mxu0 0
        %3271 = vmatpush1.bf16.msra.mxu0 0
        %3272 = vmatprep.mubr.bf16.mxu0 0
        %3273 = vmatmul.mubr.bf16.gmra.mrb[0].mxu0 %v3235
        %v3274 = vpop.f32.mrb[0].mxu0
        %v3275 = vadd.f32 0.0, %v3274
        %v3276 = vpop.f32.mrb[0].mxu0
        %v3277 = vpop.f32.mrb[0].mxu0
        %v3278 = vadd.f32 0.0, %v3277
        %v3279 = vpop.f32.mrb[0].mxu0
        %3280 = vmatprep.mubr.bf16.mxu0 0
        %3281 = vmatmul.mubr.bf16.gmra.mrb[0].mxu0 %v3238
        %v3282 = vpop.f32.mrb[0].mxu0
        %v3283 = vadd.f32 0.0, %v3282
        %v3284 = vpop.f32.mrb[0].mxu0
        %v3285 = vpop.f32.mrb[0].mxu0
        %v3286 = vadd.f32 0.0, %v3285
        %v3287 = vpop.f32.mrb[0].mxu0
        %3288 = vdwg.mxu0
        %v3290 = vsel %vm2405, %v2992, 0
        %v3293 = vsel %vm2405, %v2993, 0
        %3295 = vmatprep.subr.bf16.mxu0 0
        %3296 = vmatpush1.bf16.msra.mxu0 %v1406
        %3297 = vmatprep.subr.bf16.mxu0 0
        %3298 = vmatpush1.bf16.msra.mxu0 %v1407
        %3299 = vmatprep.subr.bf16.mxu0 0
        %3300 = vmatpush1.bf16.msra.mxu0 0
        %3301 = vmatprep.subr.bf16.mxu0 0
        %3302 = vmatpush1.bf16.msra.mxu0 0
        %3303 = vmatprep.subr.bf16.mxu0 0
        %3304 = vmatpush1.bf16.msra.mxu0 0
        %3305 = vmatprep.subr.bf16.mxu0 0
        %3306 = vmatpush1.bf16.msra.mxu0 0
        %3307 = vmatprep.subr.bf16.mxu0 0
        %3308 = vmatpush1.bf16.msra.mxu0 0
        %3309 = vmatprep.subr.bf16.mxu0 0
        %3310 = vmatpush1.bf16.msra.mxu0 0
        %3311 = vmatprep.subr.bf16.mxu0 0
        %3312 = vmatpush1.bf16.msra.mxu0 0
        %3313 = vmatprep.subr.bf16.mxu0 0
        %3314 = vmatpush1.bf16.msra.mxu0 0
        %3315 = vmatprep.subr.bf16.mxu0 0
        %3316 = vmatpush1.bf16.msra.mxu0 0
        %3317 = vmatprep.subr.bf16.mxu0 0
        %3318 = vmatpush1.bf16.msra.mxu0 0
        %3319 = vmatprep.subr.bf16.mxu0 0
        %3320 = vmatpush1.bf16.msra.mxu0 0
        %3321 = vmatprep.subr.bf16.mxu0 0
        %3322 = vmatpush1.bf16.msra.mxu0 0
        %3323 = vmatprep.subr.bf16.mxu0 0
        %3324 = vmatpush1.bf16.msra.mxu0 0
        %3325 = vmatprep.subr.bf16.mxu0 0
        %3326 = vmatpush1.bf16.msra.mxu0 0
        %3327 = vmatprep.mubr.bf16.mxu0 0
        %3328 = vmatmul.mubr.bf16.gmra.mrb[0].mxu0 %v3290
        %v3329 = vpop.f32.mrb[0].mxu0
        %v3330 = vadd.f32 0.0, %v3329
        %v3331 = vpop.f32.mrb[0].mxu0
        %v3332 = vpop.f32.mrb[0].mxu0
        %v3333 = vadd.f32 0.0, %v3332
        %v3334 = vpop.f32.mrb[0].mxu0
        %3335 = vmatprep.mubr.bf16.mxu0 0
        %3336 = vmatmul.mubr.bf16.gmra.mrb[0].mxu0 %v3293
        %v3337 = vpop.f32.mrb[0].mxu0
        %v3338 = vadd.f32 0.0, %v3337
        %v3339 = vpop.f32.mrb[0].mxu0
        %v3340 = vpop.f32.mrb[0].mxu0
        %v3341 = vadd.f32 0.0, %v3340
        %v3342 = vpop.f32.mrb[0].mxu0
        %3343 = vdwg.mxu0
        %v3345 = vsel %vm2405, %v2994, 0
        %v3348 = vsel %vm2405, %v2995, 0
        %3350 = vmatprep.subr.bf16.mxu0 0
        %3351 = vmatpush1.bf16.msra.mxu0 %v1408
        %3352 = vmatprep.subr.bf16.mxu0 0
        %3353 = vmatpush1.bf16.msra.mxu0 %v1409
        %3354 = vmatprep.subr.bf16.mxu0 0
        %3355 = vmatpush1.bf16.msra.mxu0 0
        %3356 = vmatprep.subr.bf16.mxu0 0
        %3357 = vmatpush1.bf16.msra.mxu0 0
        %3358 = vmatprep.subr.bf16.mxu0 0
        %3359 = vmatpush1.bf16.msra.mxu0 0
        %3360 = vmatprep.subr.bf16.mxu0 0
        %3361 = vmatpush1.bf16.msra.mxu0 0
        %3362 = vmatprep.subr.bf16.mxu0 0
        %3363 = vmatpush1.bf16.msra.mxu0 0
        %3364 = vmatprep.subr.bf16.mxu0 0
        %3365 = vmatpush1.bf16.msra.mxu0 0
        %3366 = vmatprep.subr.bf16.mxu0 0
        %3367 = vmatpush1.bf16.msra.mxu0 0
        %3368 = vmatprep.subr.bf16.mxu0 0
        %3369 = vmatpush1.bf16.msra.mxu0 0
        %3370 = vmatprep.subr.bf16.mxu0 0
        %3371 = vmatpush1.bf16.msra.mxu0 0
        %3372 = vmatprep.subr.bf16.mxu0 0
        %3373 = vmatpush1.bf16.msra.mxu0 0
        %3374 = vmatprep.subr.bf16.mxu0 0
        %3375 = vmatpush1.bf16.msra.mxu0 0
        %3376 = vmatprep.subr.bf16.mxu0 0
        %3377 = vmatpush1.bf16.msra.mxu0 0
        %3378 = vmatprep.subr.bf16.mxu0 0
        %3379 = vmatpush1.bf16.msra.mxu0 0
        %3380 = vmatprep.subr.bf16.mxu0 0
        %3381 = vmatpush1.bf16.msra.mxu0 0
        %3382 = vmatprep.mubr.bf16.mxu0 0
        %3383 = vmatmul.mubr.bf16.gmra.mrb[0].mxu0 %v3345
        %v3384 = vpop.f32.mrb[0].mxu0
        %v3385 = vadd.f32 0.0, %v3384
        %v3386 = vpop.f32.mrb[0].mxu0
        %v3387 = vpop.f32.mrb[0].mxu0
        %v3388 = vadd.f32 0.0, %v3387
        %v3389 = vpop.f32.mrb[0].mxu0
        %3390 = vmatprep.mubr.bf16.mxu0 0
        %3391 = vmatmul.mubr.bf16.gmra.mrb[0].mxu0 %v3348
        %v3392 = vpop.f32.mrb[0].mxu0
        %v3393 = vadd.f32 0.0, %v3392
        %v3394 = vpop.f32.mrb[0].mxu0
        %v3395 = vpop.f32.mrb[0].mxu0
        %v3396 = vadd.f32 0.0, %v3395
        %v3397 = vpop.f32.mrb[0].mxu0
        %3398 = vdwg.mxu0
        %v3400 = vsel %vm2405, %v2996, 0
        %v3403 = vsel %vm2405, %v2997, 0
        %3405 = vmatprep.subr.bf16.mxu0 0
        %3406 = vmatpush1.bf16.msra.mxu0 %v1410
        %3407 = vmatprep.subr.bf16.mxu0 0
        %3408 = vmatpush1.bf16.msra.mxu0 %v1411
        %3409 = vmatprep.subr.bf16.mxu0 0
        %3410 = vmatpush1.bf16.msra.mxu0 0
        %3411 = vmatprep.subr.bf16.mxu0 0
        %3412 = vmatpush1.bf16.msra.mxu0 0
        %3413 = vmatprep.subr.bf16.mxu0 0
        %3414 = vmatpush1.bf16.msra.mxu0 0
        %3415 = vmatprep.subr.bf16.mxu0 0
        %3416 = vmatpush1.bf16.msra.mxu0 0
        %3417 = vmatprep.subr.bf16.mxu0 0
        %3418 = vmatpush1.bf16.msra.mxu0 0
        %3419 = vmatprep.subr.bf16.mxu0 0
        %3420 = vmatpush1.bf16.msra.mxu0 0
        %3421 = vmatprep.subr.bf16.mxu0 0
        %3422 = vmatpush1.bf16.msra.mxu0 0
        %3423 = vmatprep.subr.bf16.mxu0 0
        %3424 = vmatpush1.bf16.msra.mxu0 0
        %3425 = vmatprep.subr.bf16.mxu0 0
        %3426 = vmatpush1.bf16.msra.mxu0 0
        %3427 = vmatprep.subr.bf16.mxu0 0
        %3428 = vmatpush1.bf16.msra.mxu0 0
        %3429 = vmatprep.subr.bf16.mxu0 0
        %3430 = vmatpush1.bf16.msra.mxu0 0
        %3431 = vmatprep.subr.bf16.mxu0 0
        %3432 = vmatpush1.bf16.msra.mxu0 0
        %3433 = vmatprep.subr.bf16.mxu0 0
        %3434 = vmatpush1.bf16.msra.mxu0 0
        %3435 = vmatprep.subr.bf16.mxu0 0
        %3436 = vmatpush1.bf16.msra.mxu0 0
        %3437 = vmatprep.mubr.bf16.mxu0 0
        %3438 = vmatmul.mubr.bf16.gmra.mrb[0].mxu0 %v3400
        %v3439 = vpop.f32.mrb[0].mxu0
        %v3440 = vadd.f32 0.0, %v3439
        %v3441 = vpop.f32.mrb[0].mxu0
        %v3442 = vpop.f32.mrb[0].mxu0
        %v3443 = vadd.f32 0.0, %v3442
        %v3444 = vpop.f32.mrb[0].mxu0
        %3445 = vmatprep.mubr.bf16.mxu0 0
        %3446 = vmatmul.mubr.bf16.gmra.mrb[0].mxu0 %v3403
        %v3447 = vpop.f32.mrb[0].mxu0
        %v3448 = vadd.f32 0.0, %v3447
        %v3449 = vpop.f32.mrb[0].mxu0
        %v3450 = vpop.f32.mrb[0].mxu0
        %v3451 = vadd.f32 0.0, %v3450
        %v3452 = vpop.f32.mrb[0].mxu0
        %3453 = vdwg.mxu0
        %v3455 = vsel %vm2405, %v2998, 0
        %v3458 = vsel %vm2405, %v2999, 0
        %3460 = vmatprep.subr.bf16.mxu0 0
        %3461 = vmatpush1.bf16.msra.mxu0 %v1412
        %3462 = vmatprep.subr.bf16.mxu0 0
        %3463 = vmatpush1.bf16.msra.mxu0 %v1413
        %3464 = vmatprep.subr.bf16.mxu0 0
        %3465 = vmatpush1.bf16.msra.mxu0 0
        %3466 = vmatprep.subr.bf16.mxu0 0
        %3467 = vmatpush1.bf16.msra.mxu0 0
        %3468 = vmatprep.subr.bf16.mxu0 0
        %3469 = vmatpush1.bf16.msra.mxu0 0
        %3470 = vmatprep.subr.bf16.mxu0 0
        %3471 = vmatpush1.bf16.msra.mxu0 0
        %3472 = vmatprep.subr.bf16.mxu0 0
        %3473 = vmatpush1.bf16.msra.mxu0 0
        %3474 = vmatprep.subr.bf16.mxu0 0
        %3475 = vmatpush1.bf16.msra.mxu0 0
        %3476 = vmatprep.subr.bf16.mxu0 0
        %3477 = vmatpush1.bf16.msra.mxu0 0
        %3478 = vmatprep.subr.bf16.mxu0 0
        %3479 = vmatpush1.bf16.msra.mxu0 0
        %3480 = vmatprep.subr.bf16.mxu0 0
        %3481 = vmatpush1.bf16.msra.mxu0 0
        %3482 = vmatprep.subr.bf16.mxu0 0
        %3483 = vmatpush1.bf16.msra.mxu0 0
        %3484 = vmatprep.subr.bf16.mxu0 0
        %3485 = vmatpush1.bf16.msra.mxu0 0
        %3486 = vmatprep.subr.bf16.mxu0 0
        %3487 = vmatpush1.bf16.msra.mxu0 0
        %3488 = vmatprep.subr.bf16.mxu0 0
        %3489 = vmatpush1.bf16.msra.mxu0 0
        %3490 = vmatprep.subr.bf16.mxu0 0
        %3491 = vmatpush1.bf16.msra.mxu0 0
        %3492 = vmatprep.mubr.bf16.mxu0 0
        %3493 = vmatmul.mubr.bf16.gmra.mrb[0].mxu0 %v3455
        %v3494 = vpop.f32.mrb[0].mxu0
        %v3495 = vadd.f32 0.0, %v3494
        %v3496 = vpop.f32.mrb[0].mxu0
        %v3497 = vpop.f32.mrb[0].mxu0
        %v3498 = vadd.f32 0.0, %v3497
        %v3499 = vpop.f32.mrb[0].mxu0
        %3500 = vmatprep.mubr.bf16.mxu0 0
        %3501 = vmatmul.mubr.bf16.gmra.mrb[0].mxu0 %v3458
        %v3502 = vpop.f32.mrb[0].mxu0
        %v3503 = vadd.f32 0.0, %v3502
        %v3504 = vpop.f32.mrb[0].mxu0
        %v3505 = vpop.f32.mrb[0].mxu0
        %v3506 = vadd.f32 0.0, %v3505
        %v3507 = vpop.f32.mrb[0].mxu0
        %3508 = vdwg.mxu0
        %v3510 = vsel %vm2405, %v3000, 0
        %v3513 = vsel %vm2405, %v3001, 0
        %3515 = vmatprep.subr.bf16.mxu0 0
        %3516 = vmatpush1.bf16.msra.mxu0 %v1414
        %3517 = vmatprep.subr.bf16.mxu0 0
        %3518 = vmatpush1.bf16.msra.mxu0 %v1415
        %3519 = vmatprep.subr.bf16.mxu0 0
        %3520 = vmatpush1.bf16.msra.mxu0 0
        %3521 = vmatprep.subr.bf16.mxu0 0
        %3522 = vmatpush1.bf16.msra.mxu0 0
        %3523 = vmatprep.subr.bf16.mxu0 0
        %3524 = vmatpush1.bf16.msra.mxu0 0
        %3525 = vmatprep.subr.bf16.mxu0 0
        %3526 = vmatpush1.bf16.msra.mxu0 0
        %3527 = vmatprep.subr.bf16.mxu0 0
        %3528 = vmatpush1.bf16.msra.mxu0 0
        %3529 = vmatprep.subr.bf16.mxu0 0
        %3530 = vmatpush1.bf16.msra.mxu0 0
        %3531 = vmatprep.subr.bf16.mxu0 0
        %3532 = vmatpush1.bf16.msra.mxu0 0
        %3533 = vmatprep.subr.bf16.mxu0 0
        %3534 = vmatpush1.bf16.msra.mxu0 0
        %3535 = vmatprep.subr.bf16.mxu0 0
        %3536 = vmatpush1.bf16.msra.mxu0 0
        %3537 = vmatprep.subr.bf16.mxu0 0
        %3538 = vmatpush1.bf16.msra.mxu0 0
        %3539 = vmatprep.subr.bf16.mxu0 0
        %3540 = vmatpush1.bf16.msra.mxu0 0
        %3541 = vmatprep.subr.bf16.mxu0 0
        %3542 = vmatpush1.bf16.msra.mxu0 0
        %3543 = vmatprep.subr.bf16.mxu0 0
        %3544 = vmatpush1.bf16.msra.mxu0 0
        %3545 = vmatprep.subr.bf16.mxu0 0
        %3546 = vmatpush1.bf16.msra.mxu0 0
        %3547 = vmatprep.mubr.bf16.mxu0 0
        %3548 = vmatmul.mubr.bf16.gmra.mrb[0].mxu0 %v3510
        %v3549 = vpop.f32.mrb[0].mxu0
        %v3550 = vadd.f32 0.0, %v3549
        %v3551 = vpop.f32.mrb[0].mxu0
        %v3552 = vpop.f32.mrb[0].mxu0
        %v3553 = vadd.f32 0.0, %v3552
        %v3554 = vpop.f32.mrb[0].mxu0
        %3555 = vmatprep.mubr.bf16.mxu0 0
        %3556 = vmatmul.mubr.bf16.gmra.mrb[0].mxu0 %v3513
        %v3557 = vpop.f32.mrb[0].mxu0
        %v3558 = vadd.f32 0.0, %v3557
        %v3559 = vpop.f32.mrb[0].mxu0
        %v3560 = vpop.f32.mrb[0].mxu0
        %v3561 = vadd.f32 0.0, %v3560
        %v3562 = vpop.f32.mrb[0].mxu0
        %3563 = vdwg.mxu0
        %v3565 = vsel %vm2405, %v3002, 0
        %v3568 = vsel %vm2405, %v3003, 0
        %3570 = vmatprep.subr.bf16.mxu0 0
        %3571 = vmatpush1.bf16.msra.mxu0 %v1416
        %3572 = vmatprep.subr.bf16.mxu0 0
        %3573 = vmatpush1.bf16.msra.mxu0 %v1417
        %3574 = vmatprep.subr.bf16.mxu0 0
        %3575 = vmatpush1.bf16.msra.mxu0 0
        %3576 = vmatprep.subr.bf16.mxu0 0
        %3577 = vmatpush1.bf16.msra.mxu0 0
        %3578 = vmatprep.subr.bf16.mxu0 0
        %3579 = vmatpush1.bf16.msra.mxu0 0
        %3580 = vmatprep.subr.bf16.mxu0 0
        %3581 = vmatpush1.bf16.msra.mxu0 0
        %3582 = vmatprep.subr.bf16.mxu0 0
        %3583 = vmatpush1.bf16.msra.mxu0 0
        %3584 = vmatprep.subr.bf16.mxu0 0
        %3585 = vmatpush1.bf16.msra.mxu0 0
        %3586 = vmatprep.subr.bf16.mxu0 0
        %3587 = vmatpush1.bf16.msra.mxu0 0
        %3588 = vmatprep.subr.bf16.mxu0 0
        %3589 = vmatpush1.bf16.msra.mxu0 0
        %3590 = vmatprep.subr.bf16.mxu0 0
        %3591 = vmatpush1.bf16.msra.mxu0 0
        %3592 = vmatprep.subr.bf16.mxu0 0
        %3593 = vmatpush1.bf16.msra.mxu0 0
        %3594 = vmatprep.subr.bf16.mxu0 0
        %3595 = vmatpush1.bf16.msra.mxu0 0
        %3596 = vmatprep.subr.bf16.mxu0 0
        %3597 = vmatpush1.bf16.msra.mxu0 0
        %3598 = vmatprep.subr.bf16.mxu0 0
        %3599 = vmatpush1.bf16.msra.mxu0 0
        %3600 = vmatprep.subr.bf16.mxu0 0
        %3601 = vmatpush1.bf16.msra.mxu0 0
        %3602 = vmatprep.mubr.bf16.mxu0 0
        %3603 = vmatmul.mubr.bf16.gmra.mrb[0].mxu0 %v3565
        %v3604 = vpop.f32.mrb[0].mxu0
        %v3605 = vadd.f32 0.0, %v3604
        %v3606 = vpop.f32.mrb[0].mxu0
        %v3607 = vpop.f32.mrb[0].mxu0
        %v3608 = vadd.f32 0.0, %v3607
        %v3609 = vpop.f32.mrb[0].mxu0
        %3610 = vmatprep.mubr.bf16.mxu0 0
        %3611 = vmatmul.mubr.bf16.gmra.mrb[0].mxu0 %v3568
        %v3612 = vpop.f32.mrb[0].mxu0
        %v3613 = vadd.f32 0.0, %v3612
        %v3614 = vpop.f32.mrb[0].mxu0
        %v3615 = vpop.f32.mrb[0].mxu0
        %v3616 = vadd.f32 0.0, %v3615
        %v3617 = vpop.f32.mrb[0].mxu0
        %3618 = vdwg.mxu0
        %v3620 = vsel %vm2405, %v3004, 0
        %v3623 = vsel %vm2405, %v3005, 0
        %3625 = vmatprep.subr.bf16.mxu0 0
        %3626 = vmatpush1.bf16.msra.mxu0 %v1418
        %3627 = vmatprep.subr.bf16.mxu0 0
        %3628 = vmatpush1.bf16.msra.mxu0 %v1419
        %3629 = vmatprep.subr.bf16.mxu0 0
        %3630 = vmatpush1.bf16.msra.mxu0 0
        %3631 = vmatprep.subr.bf16.mxu0 0
        %3632 = vmatpush1.bf16.msra.mxu0 0
        %3633 = vmatprep.subr.bf16.mxu0 0
        %3634 = vmatpush1.bf16.msra.mxu0 0
        %3635 = vmatprep.subr.bf16.mxu0 0
        %3636 = vmatpush1.bf16.msra.mxu0 0
        %3637 = vmatprep.subr.bf16.mxu0 0
        %3638 = vmatpush1.bf16.msra.mxu0 0
        %3639 = vmatprep.subr.bf16.mxu0 0
        %3640 = vmatpush1.bf16.msra.mxu0 0
        %3641 = vmatprep.subr.bf16.mxu0 0
        %3642 = vmatpush1.bf16.msra.mxu0 0
        %3643 = vmatprep.subr.bf16.mxu0 0
        %3644 = vmatpush1.bf16.msra.mxu0 0
        %3645 = vmatprep.subr.bf16.mxu0 0
        %3646 = vmatpush1.bf16.msra.mxu0 0
        %3647 = vmatprep.subr.bf16.mxu0 0
        %3648 = vmatpush1.bf16.msra.mxu0 0
        %3649 = vmatprep.subr.bf16.mxu0 0
        %3650 = vmatpush1.bf16.msra.mxu0 0
        %3651 = vmatprep.subr.bf16.mxu0 0
        %3652 = vmatpush1.bf16.msra.mxu0 0
        %3653 = vmatprep.subr.bf16.mxu0 0
        %3654 = vmatpush1.bf16.msra.mxu0 0
        %3655 = vmatprep.subr.bf16.mxu0 0
        %3656 = vmatpush1.bf16.msra.mxu0 0
        %3657 = vmatprep.mubr.bf16.mxu0 0
        %3658 = vmatmul.mubr.bf16.gmra.mrb[0].mxu0 %v3620
        %v3659 = vpop.f32.mrb[0].mxu0
        %v3660 = vadd.f32 0.0, %v3659
        %v3661 = vpop.f32.mrb[0].mxu0
        %v3662 = vpop.f32.mrb[0].mxu0
        %v3663 = vadd.f32 0.0, %v3662
        %v3664 = vpop.f32.mrb[0].mxu0
        %3665 = vmatprep.mubr.bf16.mxu0 0
        %3666 = vmatmul.mubr.bf16.gmra.mrb[0].mxu0 %v3623
        %v3667 = vpop.f32.mrb[0].mxu0
        %v3668 = vadd.f32 0.0, %v3667
        %v3669 = vpop.f32.mrb[0].mxu0
        %v3670 = vpop.f32.mrb[0].mxu0
        %v3671 = vadd.f32 0.0, %v3670
        %v3672 = vpop.f32.mrb[0].mxu0
        %3673 = vdwg.mxu0
        %v3675 = vsel %vm2405, %v3006, 0
        %v3678 = vsel %vm2405, %v3007, 0
        %3680 = vmatprep.subr.bf16.mxu0 0
        %3681 = vmatpush1.bf16.msra.mxu0 %v1420
        %3682 = vmatprep.subr.bf16.mxu0 0
        %3683 = vmatpush1.bf16.msra.mxu0 %v1421
        %3684 = vmatprep.subr.bf16.mxu0 0
        %3685 = vmatpush1.bf16.msra.mxu0 0
        %3686 = vmatprep.subr.bf16.mxu0 0
        %3687 = vmatpush1.bf16.msra.mxu0 0
        %3688 = vmatprep.subr.bf16.mxu0 0
        %3689 = vmatpush1.bf16.msra.mxu0 0
        %3690 = vmatprep.subr.bf16.mxu0 0
        %3691 = vmatpush1.bf16.msra.mxu0 0
        %3692 = vmatprep.subr.bf16.mxu0 0
        %3693 = vmatpush1.bf16.msra.mxu0 0
        %3694 = vmatprep.subr.bf16.mxu0 0
        %3695 = vmatpush1.bf16.msra.mxu0 0
        %3696 = vmatprep.subr.bf16.mxu0 0
        %3697 = vmatpush1.bf16.msra.mxu0 0
        %3698 = vmatprep.subr.bf16.mxu0 0
        %3699 = vmatpush1.bf16.msra.mxu0 0
        %3700 = vmatprep.subr.bf16.mxu0 0
        %3701 = vmatpush1.bf16.msra.mxu0 0
        %3702 = vmatprep.subr.bf16.mxu0 0
        %3703 = vmatpush1.bf16.msra.mxu0 0
        %3704 = vmatprep.subr.bf16.mxu0 0
        %3705 = vmatpush1.bf16.msra.mxu0 0
        %3706 = vmatprep.subr.bf16.mxu0 0
        %3707 = vmatpush1.bf16.msra.mxu0 0
        %3708 = vmatprep.subr.bf16.mxu0 0
        %3709 = vmatpush1.bf16.msra.mxu0 0
        %3710 = vmatprep.subr.bf16.mxu0 0
        %3711 = vmatpush1.bf16.msra.mxu0 0
        %3712 = vmatprep.mubr.bf16.mxu0 0
        %3713 = vmatmul.mubr.bf16.gmra.mrb[0].mxu0 %v3675
        %v3714 = vpop.f32.mrb[0].mxu0
        %v3715 = vadd.f32 0.0, %v3714
        %v3716 = vpop.f32.mrb[0].mxu0
        %v3717 = vpop.f32.mrb[0].mxu0
        %v3718 = vadd.f32 0.0, %v3717
        %v3719 = vpop.f32.mrb[0].mxu0
        %3720 = vmatprep.mubr.bf16.mxu0 0
        %3721 = vmatmul.mubr.bf16.gmra.mrb[0].mxu0 %v3678
        %v3722 = vpop.f32.mrb[0].mxu0
        %v3723 = vadd.f32 0.0, %v3722
        %v3724 = vpop.f32.mrb[0].mxu0
        %v3725 = vpop.f32.mrb[0].mxu0
        %v3726 = vadd.f32 0.0, %v3725
        %v3727 = vpop.f32.mrb[0].mxu0
        %3728 = vdwg.mxu0
        %v3730 = vsel %vm2405, %v3008, 0
        %v3733 = vsel %vm2405, %v3009, 0
        %3735 = vmatprep.subr.bf16.mxu0 0
        %3736 = vmatpush1.bf16.msra.mxu0 %v1422
        %3737 = vmatprep.subr.bf16.mxu0 0
        %3738 = vmatpush1.bf16.msra.mxu0 %v1423
        %3739 = vmatprep.subr.bf16.mxu0 0
        %3740 = vmatpush1.bf16.msra.mxu0 0
        %3741 = vmatprep.subr.bf16.mxu0 0
        %3742 = vmatpush1.bf16.msra.mxu0 0
        %3743 = vmatprep.subr.bf16.mxu0 0
        %3744 = vmatpush1.bf16.msra.mxu0 0
        %3745 = vmatprep.subr.bf16.mxu0 0
        %3746 = vmatpush1.bf16.msra.mxu0 0
        %3747 = vmatprep.subr.bf16.mxu0 0
        %3748 = vmatpush1.bf16.msra.mxu0 0
        %3749 = vmatprep.subr.bf16.mxu0 0
        %3750 = vmatpush1.bf16.msra.mxu0 0
        %3751 = vmatprep.subr.bf16.mxu0 0
        %3752 = vmatpush1.bf16.msra.mxu0 0
        %3753 = vmatprep.subr.bf16.mxu0 0
        %3754 = vmatpush1.bf16.msra.mxu0 0
        %3755 = vmatprep.subr.bf16.mxu0 0
        %3756 = vmatpush1.bf16.msra.mxu0 0
        %3757 = vmatprep.subr.bf16.mxu0 0
        %3758 = vmatpush1.bf16.msra.mxu0 0
        %3759 = vmatprep.subr.bf16.mxu0 0
        %3760 = vmatpush1.bf16.msra.mxu0 0
        %3761 = vmatprep.subr.bf16.mxu0 0
        %3762 = vmatpush1.bf16.msra.mxu0 0
        %3763 = vmatprep.subr.bf16.mxu0 0
        %3764 = vmatpush1.bf16.msra.mxu0 0
        %3765 = vmatprep.subr.bf16.mxu0 0
        %3766 = vmatpush1.bf16.msra.mxu0 0
        %3767 = vmatprep.mubr.bf16.mxu0 0
        %3768 = vmatmul.mubr.bf16.gmra.mrb[0].mxu0 %v3730
        %v3769 = vpop.f32.mrb[0].mxu0
        %v3770 = vadd.f32 0.0, %v3769
        %v3771 = vpop.f32.mrb[0].mxu0
        %v3772 = vpop.f32.mrb[0].mxu0
        %v3773 = vadd.f32 0.0, %v3772
        %v3774 = vpop.f32.mrb[0].mxu0
        %3775 = vmatprep.mubr.bf16.mxu0 0
        %3776 = vmatmul.mubr.bf16.gmra.mrb[0].mxu0 %v3733
        %v3777 = vpop.f32.mrb[0].mxu0
        %v3778 = vadd.f32 0.0, %v3777
        %v3779 = vpop.f32.mrb[0].mxu0
        %v3780 = vpop.f32.mrb[0].mxu0
        %v3781 = vadd.f32 0.0, %v3780
        %v3782 = vpop.f32.mrb[0].mxu0
        %3783 = vdwg.mxu0
        %v3785 = vsel %vm2405, %v3010, 0
        %v3788 = vsel %vm2405, %v3011, 0
        %3790 = vmatprep.subr.bf16.mxu0 0
        %3791 = vmatpush1.bf16.msra.mxu0 %v1424
        %3792 = vmatprep.subr.bf16.mxu0 0
        %3793 = vmatpush1.bf16.msra.mxu0 %v1425
        %3794 = vmatprep.subr.bf16.mxu0 0
        %3795 = vmatpush1.bf16.msra.mxu0 0
        %3796 = vmatprep.subr.bf16.mxu0 0
        %3797 = vmatpush1.bf16.msra.mxu0 0
        %3798 = vmatprep.subr.bf16.mxu0 0
        %3799 = vmatpush1.bf16.msra.mxu0 0
        %3800 = vmatprep.subr.bf16.mxu0 0
        %3801 = vmatpush1.bf16.msra.mxu0 0
        %3802 = vmatprep.subr.bf16.mxu0 0
        %3803 = vmatpush1.bf16.msra.mxu0 0
        %3804 = vmatprep.subr.bf16.mxu0 0
        %3805 = vmatpush1.bf16.msra.mxu0 0
        %3806 = vmatprep.subr.bf16.mxu0 0
        %3807 = vmatpush1.bf16.msra.mxu0 0
        %3808 = vmatprep.subr.bf16.mxu0 0
        %3809 = vmatpush1.bf16.msra.mxu0 0
        %3810 = vmatprep.subr.bf16.mxu0 0
        %3811 = vmatpush1.bf16.msra.mxu0 0
        %3812 = vmatprep.subr.bf16.mxu0 0
        %3813 = vmatpush1.bf16.msra.mxu0 0
        %3814 = vmatprep.subr.bf16.mxu0 0
        %3815 = vmatpush1.bf16.msra.mxu0 0
        %3816 = vmatprep.subr.bf16.mxu0 0
        %3817 = vmatpush1.bf16.msra.mxu0 0
        %3818 = vmatprep.subr.bf16.mxu0 0
        %3819 = vmatpush1.bf16.msra.mxu0 0
        %3820 = vmatprep.subr.bf16.mxu0 0
        %3821 = vmatpush1.bf16.msra.mxu0 0
        %3822 = vmatprep.mubr.bf16.mxu0 0
        %3823 = vmatmul.mubr.bf16.gmra.mrb[0].mxu0 %v3785
        %v3824 = vpop.f32.mrb[0].mxu0
        %v3825 = vadd.f32 0.0, %v3824
        %v3826 = vpop.f32.mrb[0].mxu0
        %v3827 = vpop.f32.mrb[0].mxu0
        %v3828 = vadd.f32 0.0, %v3827
        %v3829 = vpop.f32.mrb[0].mxu0
        %3830 = vmatprep.mubr.bf16.mxu0 0
        %3831 = vmatmul.mubr.bf16.gmra.mrb[0].mxu0 %v3788
        %v3832 = vpop.f32.mrb[0].mxu0
        %v3833 = vadd.f32 0.0, %v3832
        %v3834 = vpop.f32.mrb[0].mxu0
        %v3835 = vpop.f32.mrb[0].mxu0
        %v3836 = vadd.f32 0.0, %v3835
        %v3837 = vpop.f32.mrb[0].mxu0
        %3838 = vdwg.mxu0
        %v3840 = vsel %vm2405, %v3012, 0
        %v3843 = vsel %vm2405, %v3013, 0
        %3845 = vmatprep.subr.bf16.mxu0 0
        %3846 = vmatpush1.bf16.msra.mxu0 %v1426
        %3847 = vmatprep.subr.bf16.mxu0 0
        %3848 = vmatpush1.bf16.msra.mxu0 %v1427
        %3849 = vmatprep.subr.bf16.mxu0 0
        %3850 = vmatpush1.bf16.msra.mxu0 0
        %3851 = vmatprep.subr.bf16.mxu0 0
        %3852 = vmatpush1.bf16.msra.mxu0 0
        %3853 = vmatprep.subr.bf16.mxu0 0
        %3854 = vmatpush1.bf16.msra.mxu0 0
        %3855 = vmatprep.subr.bf16.mxu0 0
        %3856 = vmatpush1.bf16.msra.mxu0 0
        %3857 = vmatprep.subr.bf16.mxu0 0
        %3858 = vmatpush1.bf16.msra.mxu0 0
        %3859 = vmatprep.subr.bf16.mxu0 0
        %3860 = vmatpush1.bf16.msra.mxu0 0
        %3861 = vmatprep.subr.bf16.mxu0 0
        %3862 = vmatpush1.bf16.msra.mxu0 0
        %3863 = vmatprep.subr.bf16.mxu0 0
        %3864 = vmatpush1.bf16.msra.mxu0 0
        %3865 = vmatprep.subr.bf16.mxu0 0
        %3866 = vmatpush1.bf16.msra.mxu0 0
        %3867 = vmatprep.subr.bf16.mxu0 0
        %3868 = vmatpush1.bf16.msra.mxu0 0
        %3869 = vmatprep.subr.bf16.mxu0 0
        %3870 = vmatpush1.bf16.msra.mxu0 0
        %3871 = vmatprep.subr.bf16.mxu0 0
        %3872 = vmatpush1.bf16.msra.mxu0 0
        %3873 = vmatprep.subr.bf16.mxu0 0
        %3874 = vmatpush1.bf16.msra.mxu0 0
        %3875 = vmatprep.subr.bf16.mxu0 0
        %3876 = vmatpush1.bf16.msra.mxu0 0
        %3877 = vmatprep.mubr.bf16.mxu0 0
        %3878 = vmatmul.mubr.bf16.gmra.mrb[0].mxu0 %v3840
        %v3879 = vpop.f32.mrb[0].mxu0
        %v3880 = vadd.f32 0.0, %v3879
        %v3881 = vpop.f32.mrb[0].mxu0
        %v3882 = vpop.f32.mrb[0].mxu0
        %v3883 = vadd.f32 0.0, %v3882
        %v3884 = vpop.f32.mrb[0].mxu0
        %3885 = vmatprep.mubr.bf16.mxu0 0
        %3886 = vmatmul.mubr.bf16.gmra.mrb[0].mxu0 %v3843
        %v3887 = vpop.f32.mrb[0].mxu0
        %v3888 = vadd.f32 0.0, %v3887
        %v3889 = vpop.f32.mrb[0].mxu0
        %v3890 = vpop.f32.mrb[0].mxu0
        %v3891 = vadd.f32 0.0, %v3890
        %v3892 = vpop.f32.mrb[0].mxu0
        %3893 = vdwg.mxu0
        %v3894 = vrcp.pop %v2792
        %v3895 = vmul.f32 1.0, %v3894
        %v3896 = vrcp.pop %v2795
        %v3897 = vmul.f32 1.0, %v3896
        %v3898 = vrcp.pop %v2798
        %v3899 = vmul.f32 1.0, %v3898
        %v3900 = vrcp.pop %v2801
        %v3901 = vmul.f32 1.0, %v3900
        %v3902 = vrcp.pop %v2804
        %v3903 = vmul.f32 1.0, %v3902
        %v3904 = vrcp.pop %v2807
        %v3905 = vmul.f32 1.0, %v3904
        %v3906 = vrcp.pop %v2810
        %v3907 = vmul.f32 1.0, %v3906
        %v3908 = vrcp.pop %v2813
        %v3909 = vmul.f32 1.0, %v3908
        %v3910 = vrcp.pop %v2816
        %v3911 = vmul.f32 1.0, %v3910
        %v3912 = vrcp.pop %v2819
        %v3913 = vmul.f32 1.0, %v3912
        %v3914 = vrcp.pop %v2822
        %v3915 = vmul.f32 1.0, %v3914
        %v3916 = vrcp.pop %v2825
        %v3917 = vmul.f32 1.0, %v3916
        %v3918 = vrcp.pop %v2828
        %v3919 = vmul.f32 1.0, %v3918
        %v3920 = vrcp.pop %v2831
        %v3921 = vmul.f32 1.0, %v3920
        %v3922 = vrcp.pop %v2834
        %v3923 = vmul.f32 1.0, %v3922
        %v3924 = vrcp.pop %v2837
        %v3925 = vmul.f32 1.0, %v3924
        %v3926 = vrcp.pop %v2840
        %v3927 = vmul.f32 1.0, %v3926
        %v3928 = vrcp.pop %v2843
        %v3929 = vmul.f32 1.0, %v3928
        %v3930 = vrcp.pop %v2846
        %v3931 = vmul.f32 1.0, %v3930
        %v3932 = vrcp.pop %v2849
        %v3933 = vmul.f32 1.0, %v3932
        %v3934 = vrcp.pop %v2852
        %v3935 = vmul.f32 1.0, %v3934
        %v3936 = vrcp.pop %v2855
        %v3937 = vmul.f32 1.0, %v3936
        %v3938 = vrcp.pop %v2858
        %v3939 = vmul.f32 1.0, %v3938
        %v3940 = vrcp.pop %v2861
        %v3941 = vmul.f32 1.0, %v3940
        %v3942 = vrcp.pop %v2864
        %v3943 = vmul.f32 1.0, %v3942
        %v3944 = vrcp.pop %v2867
        %v3945 = vmul.f32 1.0, %v3944
        %v3946 = vrcp.pop %v2870
        %v3947 = vmul.f32 1.0, %v3946
        %v3948 = vrcp.pop %v2873
        %v3949 = vmul.f32 1.0, %v3948
        %v3950 = vrcp.pop %v2876
        %v3951 = vmul.f32 1.0, %v3950
        %v3952 = vrcp.pop %v2879
        %v3953 = vmul.f32 1.0, %v3952
        %v3954 = vrcp.pop %v2882
        %v3955 = vmul.f32 1.0, %v3954
        %v3956 = vrcp.pop %v2885
        %v3957 = vmul.f32 1.0, %v3956
        %v3958 = vrcp.pop %v2888
        %v3959 = vmul.f32 1.0, %v3958
        %v3960 = vrcp.pop %v2891
        %v3961 = vmul.f32 1.0, %v3960
        %v3962 = vrcp.pop %v2894
        %v3963 = vmul.f32 1.0, %v3962
        %v3964 = vrcp.pop %v2897
        %v3965 = vmul.f32 1.0, %v3964
        %v3966 = vrcp.pop %v2900
        %v3967 = vmul.f32 1.0, %v3966
        %v3968 = vrcp.pop %v2903
        %v3969 = vmul.f32 1.0, %v3968
        %v3970 = vrcp.pop %v2906
        %v3971 = vmul.f32 1.0, %v3970
        %v3972 = vrcp.pop %v2909
        %v3973 = vmul.f32 1.0, %v3972
        %v3974 = vrcp.pop %v2912
        %v3975 = vmul.f32 1.0, %v3974
        %v3976 = vrcp.pop %v2915
        %v3977 = vmul.f32 1.0, %v3976
        %v3978 = vrcp.pop %v2918
        %v3979 = vmul.f32 1.0, %v3978
        %v3980 = vrcp.pop %v2921
        %v3981 = vmul.f32 1.0, %v3980
        %v3982 = vrcp.pop %v2924
        %v3983 = vmul.f32 1.0, %v3982
        %v3984 = vrcp.pop %v2927
        %v3985 = vmul.f32 1.0, %v3984
        %v3986 = vrcp.pop %v2930
        %v3987 = vmul.f32 1.0, %v3986
        %v3988 = vrcp.pop %v2933
        %v3989 = vmul.f32 1.0, %v3988
        %v3990 = vrcp.pop %v2936
        %v3991 = vmul.f32 1.0, %v3990
        %v3992 = vrcp.pop %v2939
        %v3993 = vmul.f32 1.0, %v3992
        %v3994 = vrcp.pop %v2942
        %v3995 = vmul.f32 1.0, %v3994
        %v3996 = vrcp.pop %v2945
        %v3997 = vmul.f32 1.0, %v3996
        %v3998 = vrcp.pop %v2948
        %v3999 = vmul.f32 1.0, %v3998
        %v4000 = vrcp.pop %v2951
        %v4001 = vmul.f32 1.0, %v4000
        %v4002 = vrcp.pop %v2954
        %v4003 = vmul.f32 1.0, %v4002
        %v4004 = vrcp.pop %v2957
        %v4005 = vmul.f32 1.0, %v4004
        %v4006 = vrcp.pop %v2960
        %v4007 = vmul.f32 1.0, %v4006
        %v4008 = vrcp.pop %v2963
        %v4009 = vmul.f32 1.0, %v4008
        %v4010 = vrcp.pop %v2966
        %v4011 = vmul.f32 1.0, %v4010
        %v4012 = vrcp.pop %v2969
        %v4013 = vmul.f32 1.0, %v4012
        %v4014 = vrcp.pop %v2972
        %v4015 = vmul.f32 1.0, %v4014
        %v4016 = vrcp.pop %v2975
        %v4017 = vmul.f32 1.0, %v4016
        %v4018 = vrcp.pop %v2978
        %v4019 = vmul.f32 1.0, %v4018
        %v4020 = vrcp.pop %v2981
        %v4021 = vmul.f32 1.0, %v4020
        %v4022 = vmul.f32 %v3055, %v3895
        %v4023 = vmul.f32 %v3058, %v3897
        %v4024 = vmul.f32 %v3063, %v3899
        %v4025 = vmul.f32 %v3066, %v3901
        %v4026 = vmul.f32 %v3110, %v3903
        %v4027 = vmul.f32 %v3113, %v3905
        %v4028 = vmul.f32 %v3118, %v3907
        %v4029 = vmul.f32 %v3121, %v3909
        %v4030 = vmul.f32 %v3165, %v3911
        %v4031 = vmul.f32 %v3168, %v3913
        %v4032 = vmul.f32 %v3173, %v3915
        %v4033 = vmul.f32 %v3176, %v3917
        %v4034 = vmul.f32 %v3220, %v3919
        %v4035 = vmul.f32 %v3223, %v3921
        %v4036 = vmul.f32 %v3228, %v3923
        %v4037 = vmul.f32 %v3231, %v3925
        %v4038 = vmul.f32 %v3275, %v3927
        %v4039 = vmul.f32 %v3278, %v3929
        %v4040 = vmul.f32 %v3283, %v3931
        %v4041 = vmul.f32 %v3286, %v3933
        %v4042 = vmul.f32 %v3330, %v3935
        %v4043 = vmul.f32 %v3333, %v3937
        %v4044 = vmul.f32 %v3338, %v3939
        %v4045 = vmul.f32 %v3341, %v3941
        %v4046 = vmul.f32 %v3385, %v3943
        %v4047 = vmul.f32 %v3388, %v3945
        %v4048 = vmul.f32 %v3393, %v3947
        %v4049 = vmul.f32 %v3396, %v3949
        %v4050 = vmul.f32 %v3440, %v3951
        %v4051 = vmul.f32 %v3443, %v3953
        %v4052 = vmul.f32 %v3448, %v3955
        %v4053 = vmul.f32 %v3451, %v3957
        %v4054 = vmul.f32 %v3495, %v3959
        %v4055 = vmul.f32 %v3498, %v3961
        %v4056 = vmul.f32 %v3503, %v3963
        %v4057 = vmul.f32 %v3506, %v3965
        %v4058 = vmul.f32 %v3550, %v3967
        %v4059 = vmul.f32 %v3553, %v3969
        %v4060 = vmul.f32 %v3558, %v3971
        %v4061 = vmul.f32 %v3561, %v3973
        %v4062 = vmul.f32 %v3605, %v3975
        %v4063 = vmul.f32 %v3608, %v3977
        %v4064 = vmul.f32 %v3613, %v3979
        %v4065 = vmul.f32 %v3616, %v3981
        %v4066 = vmul.f32 %v3660, %v3983
        %v4067 = vmul.f32 %v3663, %v3985
        %v4068 = vmul.f32 %v3668, %v3987
        %v4069 = vmul.f32 %v3671, %v3989
        %v4070 = vmul.f32 %v3715, %v3991
        %v4071 = vmul.f32 %v3718, %v3993
        %v4072 = vmul.f32 %v3723, %v3995
        %v4073 = vmul.f32 %v3726, %v3997
        %v4074 = vmul.f32 %v3770, %v3999
        %v4075 = vmul.f32 %v3773, %v4001
        %v4076 = vmul.f32 %v3778, %v4003
        %v4077 = vmul.f32 %v3781, %v4005
        %v4078 = vmul.f32 %v3825, %v4007
        %v4079 = vmul.f32 %v3828, %v4009
        %v4080 = vmul.f32 %v3833, %v4011
        %v4081 = vmul.f32 %v3836, %v4013
        %v4082 = vmul.f32 %v3880, %v4015
        %v4083 = vmul.f32 %v3883, %v4017
        %v4084 = vmul.f32 %v3888, %v4019
        %v4085 = vmul.f32 %v3891, %v4021
        %4094 = vrot.lane.b32.xlu0 %v4030, 16
        %v4095 = vpop.permute.xlu0 %4094
        %4096 = vrot.lane.b32.xlu0 %v4031, 16
        %v4097 = vpop.permute.xlu0 %4096
        %4098 = vrot.lane.b32.xlu0 %v4032, 16
        %v4099 = vpop.permute.xlu0 %4098
        %4100 = vrot.lane.b32.xlu0 %v4033, 16
        %v4101 = vpop.permute.xlu0 %4100
        %4102 = vrot.lane.b32.xlu0 %v4034, 16
        %v4103 = vpop.permute.xlu0 %4102
        %4104 = vrot.lane.b32.xlu0 %v4035, 16
        %v4105 = vpop.permute.xlu0 %4104
        %4106 = vrot.lane.b32.xlu0 %v4036, 16
        %v4107 = vpop.permute.xlu0 %4106
        %4108 = vrot.lane.b32.xlu0 %v4037, 16
        %v4109 = vpop.permute.xlu0 %4108
        %4126 = vrot.lane.b32.xlu0 %v4038, 32
        %v4127 = vpop.permute.xlu0 %4126
        %4128 = vrot.lane.b32.xlu0 %v4039, 32
        %v4129 = vpop.permute.xlu0 %4128
        %4130 = vrot.lane.b32.xlu0 %v4040, 32
        %v4131 = vpop.permute.xlu0 %4130
        %4132 = vrot.lane.b32.xlu0 %v4041, 32
        %v4133 = vpop.permute.xlu0 %4132
        %4134 = vrot.lane.b32.xlu0 %v4042, 32
        %v4135 = vpop.permute.xlu0 %4134
        %4136 = vrot.lane.b32.xlu0 %v4043, 32
        %v4137 = vpop.permute.xlu0 %4136
        %4138 = vrot.lane.b32.xlu0 %v4044, 32
        %v4139 = vpop.permute.xlu0 %4138
        %4140 = vrot.lane.b32.xlu0 %v4045, 32
        %v4141 = vpop.permute.xlu0 %4140
        %4158 = vrot.lane.b32.xlu0 %v4046, 48
        %v4159 = vpop.permute.xlu0 %4158
        %4160 = vrot.lane.b32.xlu0 %v4047, 48
        %v4161 = vpop.permute.xlu0 %4160
        %4162 = vrot.lane.b32.xlu0 %v4048, 48
        %v4163 = vpop.permute.xlu0 %4162
        %4164 = vrot.lane.b32.xlu0 %v4049, 48
        %v4165 = vpop.permute.xlu0 %4164
        %4166 = vrot.lane.b32.xlu0 %v4050, 48
        %v4167 = vpop.permute.xlu0 %4166
        %4168 = vrot.lane.b32.xlu0 %v4051, 48
        %v4169 = vpop.permute.xlu0 %4168
        %4170 = vrot.lane.b32.xlu0 %v4052, 48
        %v4171 = vpop.permute.xlu0 %4170
        %4172 = vrot.lane.b32.xlu0 %v4053, 48
        %v4173 = vpop.permute.xlu0 %4172
        %4190 = vrot.lane.b32.xlu0 %v4054, 64
        %v4191 = vpop.permute.xlu0 %4190
        %4192 = vrot.lane.b32.xlu0 %v4055, 64
        %v4193 = vpop.permute.xlu0 %4192
        %4194 = vrot.lane.b32.xlu0 %v4056, 64
        %v4195 = vpop.permute.xlu0 %4194
        %4196 = vrot.lane.b32.xlu0 %v4057, 64
        %v4197 = vpop.permute.xlu0 %4196
        %4198 = vrot.lane.b32.xlu0 %v4058, 64
        %v4199 = vpop.permute.xlu0 %4198
        %4200 = vrot.lane.b32.xlu0 %v4059, 64
        %v4201 = vpop.permute.xlu0 %4200
        %4202 = vrot.lane.b32.xlu0 %v4060, 64
        %v4203 = vpop.permute.xlu0 %4202
        %4204 = vrot.lane.b32.xlu0 %v4061, 64
        %v4205 = vpop.permute.xlu0 %4204
        %4222 = vrot.lane.b32.xlu0 %v4062, 80
        %v4223 = vpop.permute.xlu0 %4222
        %4224 = vrot.lane.b32.xlu0 %v4063, 80
        %v4225 = vpop.permute.xlu0 %4224
        %4226 = vrot.lane.b32.xlu0 %v4064, 80
        %v4227 = vpop.permute.xlu0 %4226
        %4228 = vrot.lane.b32.xlu0 %v4065, 80
        %v4229 = vpop.permute.xlu0 %4228
        %4230 = vrot.lane.b32.xlu0 %v4066, 80
        %v4231 = vpop.permute.xlu0 %4230
        %4232 = vrot.lane.b32.xlu0 %v4067, 80
        %v4233 = vpop.permute.xlu0 %4232
        %4234 = vrot.lane.b32.xlu0 %v4068, 80
        %v4235 = vpop.permute.xlu0 %4234
        %4236 = vrot.lane.b32.xlu0 %v4069, 80
        %v4237 = vpop.permute.xlu0 %4236
        %4254 = vrot.lane.b32.xlu0 %v4070, 96
        %v4255 = vpop.permute.xlu0 %4254
        %4256 = vrot.lane.b32.xlu0 %v4071, 96
        %v4257 = vpop.permute.xlu0 %4256
        %4258 = vrot.lane.b32.xlu0 %v4072, 96
        %v4259 = vpop.permute.xlu0 %4258
        %4260 = vrot.lane.b32.xlu0 %v4073, 96
        %v4261 = vpop.permute.xlu0 %4260
        %4262 = vrot.lane.b32.xlu0 %v4074, 96
        %v4263 = vpop.permute.xlu0 %4262
        %4264 = vrot.lane.b32.xlu0 %v4075, 96
        %v4265 = vpop.permute.xlu0 %4264
        %4266 = vrot.lane.b32.xlu0 %v4076, 96
        %v4267 = vpop.permute.xlu0 %4266
        %4268 = vrot.lane.b32.xlu0 %v4077, 96
        %v4269 = vpop.permute.xlu0 %4268
        %4286 = vrot.lane.b32.xlu0 %v4078, 112
        %v4287 = vpop.permute.xlu0 %4286
        %4288 = vrot.lane.b32.xlu0 %v4079, 112
        %v4289 = vpop.permute.xlu0 %4288
        %4290 = vrot.lane.b32.xlu0 %v4080, 112
        %v4291 = vpop.permute.xlu0 %4290
        %4292 = vrot.lane.b32.xlu0 %v4081, 112
        %v4293 = vpop.permute.xlu0 %4292
        %4294 = vrot.lane.b32.xlu0 %v4082, 112
        %v4295 = vpop.permute.xlu0 %4294
        %4296 = vrot.lane.b32.xlu0 %v4083, 112
        %v4297 = vpop.permute.xlu0 %4296
        %4298 = vrot.lane.b32.xlu0 %v4084, 112
        %v4299 = vpop.permute.xlu0 %4298
        %4300 = vrot.lane.b32.xlu0 %v4085, 112
        %v4301 = vpop.permute.xlu0 %4300
        %v4310 = vsel %vm1428, %v4022, %v4095
        %v4311 = vsel %vm1428, %v4023, %v4097
        %v4312 = vsel %vm1428, %v4024, %v4099
        %v4313 = vsel %vm1428, %v4025, %v4101
        %v4314 = vsel %vm1428, %v4026, %v4103
        %v4315 = vsel %vm1428, %v4027, %v4105
        %v4316 = vsel %vm1428, %v4028, %v4107
        %v4317 = vsel %vm1428, %v4029, %v4109
        %v4318 = vsel %vm2405, %v4310, %v4127
        %v4319 = vsel %vm2405, %v4311, %v4129
        %v4320 = vsel %vm2405, %v4312, %v4131
        %v4321 = vsel %vm2405, %v4313, %v4133
        %v4322 = vsel %vm2405, %v4314, %v4135
        %v4323 = vsel %vm2405, %v4315, %v4137
        %v4324 = vsel %vm2405, %v4316, %v4139
        %v4325 = vsel %vm2405, %v4317, %v4141
        %vm4326 = vcmask 392192
        %v4327 = vsel %vm4326, %v4318, %v4159
        %v4328 = vsel %vm4326, %v4319, %v4161
        %v4329 = vsel %vm4326, %v4320, %v4163
        %v4330 = vsel %vm4326, %v4321, %v4165
        %v4331 = vsel %vm4326, %v4322, %v4167
        %v4332 = vsel %vm4326, %v4323, %v4169
        %v4333 = vsel %vm4326, %v4324, %v4171
        %v4334 = vsel %vm4326, %v4325, %v4173
        %vm4335 = vcmask 523264
        %v4336 = vsel %vm4335, %v4327, %v4191
        %v4337 = vsel %vm4335, %v4328, %v4193
        %v4338 = vsel %vm4335, %v4329, %v4195
        %v4339 = vsel %vm4335, %v4330, %v4197
        %v4340 = vsel %vm4335, %v4331, %v4199
        %v4341 = vsel %vm4335, %v4332, %v4201
        %v4342 = vsel %vm4335, %v4333, %v4203
        %v4343 = vsel %vm4335, %v4334, %v4205
        %vm4344 = vcmask 654336
        %v4345 = vsel %vm4344, %v4336, %v4223
        %v4346 = vsel %vm4344, %v4337, %v4225
        %v4347 = vsel %vm4344, %v4338, %v4227
        %v4348 = vsel %vm4344, %v4339, %v4229
        %v4349 = vsel %vm4344, %v4340, %v4231
        %v4350 = vsel %vm4344, %v4341, %v4233
        %v4351 = vsel %vm4344, %v4342, %v4235
        %v4352 = vsel %vm4344, %v4343, %v4237
        %vm4353 = vcmask 785408
        %v4354 = vsel %vm4353, %v4345, %v4255
        %v4355 = vsel %vm4353, %v4346, %v4257
        %v4356 = vsel %vm4353, %v4347, %v4259
        %v4357 = vsel %vm4353, %v4348, %v4261
        %v4358 = vsel %vm4353, %v4349, %v4263
        %v4359 = vsel %vm4353, %v4350, %v4265
        %v4360 = vsel %vm4353, %v4351, %v4267
        %v4361 = vsel %vm4353, %v4352, %v4269
        %vm4362 = vcmask 916480
        %v4363 = vsel %vm4362, %v4354, %v4287
        %v4364 = vsel %vm4362, %v4355, %v4289
        %v4365 = vsel %vm4362, %v4356, %v4291
        %v4366 = vsel %vm4362, %v4357, %v4293
        %v4367 = vsel %vm4362, %v4358, %v4295
        %v4368 = vsel %vm4362, %v4359, %v4297
        %v4369 = vsel %vm4362, %v4360, %v4299
        %v4370 = vsel %vm4362, %v4361, %v4301
        %v4371 = vpack.c.bf16 %v4364, %v4363
        %v4372 = vpack.c.bf16 %v4366, %v4365
        %v4373 = vpack.c.bf16 %v4368, %v4367
        %v4374 = vpack.c.bf16 %v4370, %v4369
        %v4375 = vld [vmem:[#allocation7] sm:$0xf]
        %v4376 = vld [vmem:[#allocation7 + $0x4] sm:$0xf]
        %v4377 = vld [vmem:[#allocation7 + $0x8] sm:$0xf]
        %v4378 = vld [vmem:[#allocation7 + $0xc] sm:$0xf]
        %v4379 = vld [vmem:[#allocation7 + $0x10] sm:$0xf]
        %v4380 = vld [vmem:[#allocation7 + $0x14] sm:$0xf]
        %v4381 = vld [vmem:[#allocation7 + $0x18] sm:$0xf]
        %v4382 = vld [vmem:[#allocation7 + $0x1c] sm:$0xf]
        %v4383 = vld [vmem:[#allocation7 + $0x20] sm:$0xf]
        %v4384 = vld [vmem:[#allocation7 + $0x24] sm:$0xf]
        %v4385 = vld [vmem:[#allocation7 + $0x28] sm:$0xf]
        %v4386 = vld [vmem:[#allocation7 + $0x2c] sm:$0xf]
        %v4387 = vld [vmem:[#allocation7 + $0x30] sm:$0xf]
        %v4388 = vld [vmem:[#allocation7 + $0x34] sm:$0xf]
        %v4389 = vld [vmem:[#allocation7 + $0x38] sm:$0xf]
        %v4390 = vld [vmem:[#allocation7 + $0x3c] sm:$0xf]
        %v4391 = vld [vmem:[%s3] sm:$0x1]
        %v4393 = vlaneseq
        %v4394 = vshrl.u32 %v4393, 7
        %v4395 = vsub.s32 0, %v4394
        %v4396 = vrot.slane %v4391, %v4395
        %v4414 = vunpack.c.l.b16 %v4375
        %v4415 = vunpack.c.l.b16 %v4376
        %v4416 = vunpack.c.l.b16 %v4377
        %v4417 = vunpack.c.l.b16 %v4378
        %v4418 = vunpack.c.l.b16 %v4379
        %v4419 = vunpack.c.l.b16 %v4380
        %v4420 = vunpack.c.l.b16 %v4381
        %v4421 = vunpack.c.l.b16 %v4382
        %v4422 = vunpack.c.l.b16 %v4383
        %v4423 = vunpack.c.l.b16 %v4384
        %v4424 = vunpack.c.l.b16 %v4385
        %v4425 = vunpack.c.l.b16 %v4386
        %v4426 = vunpack.c.l.b16 %v4387
        %v4427 = vunpack.c.l.b16 %v4388
        %v4428 = vunpack.c.l.b16 %v4389
        %v4429 = vunpack.c.l.b16 %v4390
        %v4430 = vpack.c.b16 %v4415, %v4414
        %v4431 = vpack.c.b16 %v4417, %v4416
        %v4432 = vpack.c.b16 %v4419, %v4418
        %v4433 = vpack.c.b16 %v4421, %v4420
        %v4434 = vpack.c.b16 %v4423, %v4422
        %v4435 = vpack.c.b16 %v4425, %v4424
        %v4436 = vpack.c.b16 %v4427, %v4426
        %v4437 = vpack.c.b16 %v4429, %v4428
        %4446 = vmatprep.subr.bf16.mxu0 0
        %4447 = vmatpush1.bf16.msra.mxu0 %v4430
        %4448 = vmatprep.subr.bf16.mxu0 0
        %4449 = vmatpush1.bf16.msra.mxu0 %v4431
        %4450 = vmatprep.subr.bf16.mxu0 0
        %4451 = vmatpush1.bf16.msra.mxu0 %v4432
        %4452 = vmatprep.subr.bf16.mxu0 0
        %4453 = vmatpush1.bf16.msra.mxu0 %v4433
        %4454 = vmatprep.subr.bf16.mxu0 0
        %4455 = vmatpush1.bf16.msra.mxu0 %v4434
        %4456 = vmatprep.subr.bf16.mxu0 0
        %4457 = vmatpush1.bf16.msra.mxu0 %v4435
        %4458 = vmatprep.subr.bf16.mxu0 0
        %4459 = vmatpush1.bf16.msra.mxu0 %v4436
        %4460 = vmatprep.subr.bf16.mxu0 0
        %4461 = vmatpush1.bf16.msra.mxu0 %v4437
        %4462 = vmatprep.subr.bf16.mxu0 0
        %4463 = vmatpush1.bf16.msra.mxu0 0
        %4464 = vmatprep.subr.bf16.mxu0 0
        %4465 = vmatpush1.bf16.msra.mxu0 0
        %4466 = vmatprep.subr.bf16.mxu0 0
        %4467 = vmatpush1.bf16.msra.mxu0 0
        %4468 = vmatprep.subr.bf16.mxu0 0
        %4469 = vmatpush1.bf16.msra.mxu0 0
        %4470 = vmatprep.subr.bf16.mxu0 0
        %4471 = vmatpush1.bf16.msra.mxu0 0
        %4472 = vmatprep.subr.bf16.mxu0 0
        %4473 = vmatpush1.bf16.msra.mxu0 0
        %4474 = vmatprep.subr.bf16.mxu0 0
        %4475 = vmatpush1.bf16.msra.mxu0 0
        %4476 = vmatprep.subr.bf16.mxu0 0
        %4477 = vmatpush1.bf16.msra.mxu0 0
        %4478 = vmatprep.mubr.bf16.mxu0 0
        %4479 = vmatmul.mubr.bf16.gmra.mrb[0].mxu0 %v4371
        %v4480 = vpop.f32.mrb[0].mxu0
        %v4481 = vadd.f32 %v4396, %v4480
        %v4482 = vpop.f32.mrb[0].mxu0
        %v4483 = vpop.f32.mrb[0].mxu0
        %v4484 = vadd.f32 %v4396, %v4483
        %v4485 = vpop.f32.mrb[0].mxu0
        %4486 = vmatprep.mubr.bf16.mxu0 0
        %4487 = vmatmul.mubr.bf16.gmra.mrb[0].mxu0 %v4372
        %v4488 = vpop.f32.mrb[0].mxu0
        %v4489 = vadd.f32 %v4396, %v4488
        %v4490 = vpop.f32.mrb[0].mxu0
        %v4491 = vpop.f32.mrb[0].mxu0
        %v4492 = vadd.f32 %v4396, %v4491
        %v4493 = vpop.f32.mrb[0].mxu0
        %4494 = vmatprep.mubr.bf16.mxu0 0
        %4495 = vmatmul.mubr.bf16.gmra.mrb[0].mxu0 %v4373
        %v4496 = vpop.f32.mrb[0].mxu0
        %v4497 = vadd.f32 %v4396, %v4496
        %v4498 = vpop.f32.mrb[0].mxu0
        %v4499 = vpop.f32.mrb[0].mxu0
        %v4500 = vadd.f32 %v4396, %v4499
        %v4501 = vpop.f32.mrb[0].mxu0
        %4502 = vmatprep.mubr.bf16.mxu0 0
        %4503 = vmatmul.mubr.bf16.gmra.mrb[0].mxu0 %v4374
        %v4504 = vpop.f32.mrb[0].mxu0
        %v4505 = vadd.f32 %v4396, %v4504
        %v4506 = vpop.f32.mrb[0].mxu0
        %v4507 = vpop.f32.mrb[0].mxu0
        %v4508 = vadd.f32 %v4396, %v4507
        %v4509 = vpop.f32.mrb[0].mxu0
        %4510 = vdwg.mxu0
        %v4511 = vld [vmem:[%s4] sm:$0x1]
        %v4512 = vld [vmem:[%s5] sm:$0x1]
        %v4513 = vadd.f32 %v494, %v4481
        %v4514 = vadd.f32 %v495, %v4484
        %v4515 = vadd.f32 %v496, %v4489
        %v4516 = vadd.f32 %v497, %v4492
        %v4517 = vadd.f32 %v498, %v4497
        %v4518 = vadd.f32 %v499, %v4500
        %v4519 = vadd.f32 %v500, %v4505
        %v4520 = vadd.f32 %v501, %v4508
        %v4521 = vadd.f32 %v4513, %v4514
        %v4522 = vadd.f32 %v4521, %v4515
        %v4523 = vadd.f32 %v4522, %v4516
        %v4524 = vrot.slane %v4523, 4
        %v4525 = vadd.f32 %v4523, %v4524
        %v4526 = vrot.slane %v4525, 2
        %v4527 = vadd.f32 %v4525, %v4526
        %v4528 = vrot.slane %v4527, 1
        %v4529 = vadd.f32 %v4527, %v4528
        %v4530 = vadd.f32 %v4517, %v4518
        %v4531 = vadd.f32 %v4530, %v4519
        %v4532 = vadd.f32 %v4531, %v4520
        %v4533 = vrot.slane %v4532, 4
        %v4534 = vadd.f32 %v4532, %v4533
        %v4535 = vrot.slane %v4534, 2
        %v4536 = vadd.f32 %v4534, %v4535
        %v4537 = vrot.slane %v4536, 1
        %v4538 = vadd.f32 %v4536, %v4537
        %v4539 = vrcp.pop 32.0
        %v4540 = vmul.f32 %v4529, %v4539
        %v4541 = vmul.f32 %v4538, %v4539
        %v4542 = vsub.f32 %v4513, %v4540
        %v4543 = vsub.f32 %v4514, %v4540
        %v4544 = vsub.f32 %v4515, %v4540
        %v4545 = vsub.f32 %v4516, %v4540
        %v4546 = vsub.f32 %v4517, %v4541
        %v4547 = vsub.f32 %v4518, %v4541
        %v4548 = vsub.f32 %v4519, %v4541
        %v4549 = vsub.f32 %v4520, %v4541
        %v4550 = vmul.f32 %v4542, %v4542
        %v4551 = vmul.f32 %v4543, %v4543
        %v4552 = vmul.f32 %v4544, %v4544
        %v4553 = vmul.f32 %v4545, %v4545
        %v4554 = vmul.f32 %v4546, %v4546
        %v4555 = vmul.f32 %v4547, %v4547
        %v4556 = vmul.f32 %v4548, %v4548
        %v4557 = vmul.f32 %v4549, %v4549
        %v4558 = vadd.f32 %v4550, %v4551
        %v4559 = vadd.f32 %v4558, %v4552
        %v4560 = vadd.f32 %v4559, %v4553
        %v4561 = vrot.slane %v4560, 4
        %v4562 = vadd.f32 %v4560, %v4561
        %v4563 = vrot.slane %v4562, 2
        %v4564 = vadd.f32 %v4562, %v4563
        %v4565 = vrot.slane %v4564, 1
        %v4566 = vadd.f32 %v4564, %v4565
        %v4567 = vadd.f32 %v4554, %v4555
        %v4568 = vadd.f32 %v4567, %v4556
        %v4569 = vadd.f32 %v4568, %v4557
        %v4570 = vrot.slane %v4569, 4
        %v4571 = vadd.f32 %v4569, %v4570
        %v4572 = vrot.slane %v4571, 2
        %v4573 = vadd.f32 %v4571, %v4572
        %v4574 = vrot.slane %v4573, 1
        %v4575 = vadd.f32 %v4573, %v4574
        %v4576 = vmul.f32 %v4566, %v4539
        %v4577 = vmul.f32 %v4575, %v4539
        %v4578 = vadd.f32 %v4576, 1e-05
        %v4579 = vadd.f32 %v4577, 1e-05
        %v4580 = vrsqrt.pop %v4578
        %v4581 = vrsqrt.pop %v4579
        %v4582 = vmul.f32 %v4542, %v4580
        %v4583 = vmul.f32 %v4543, %v4580
        %v4584 = vmul.f32 %v4544, %v4580
        %v4585 = vmul.f32 %v4545, %v4580
        %v4586 = vmul.f32 %v4546, %v4581
        %v4587 = vmul.f32 %v4547, %v4581
        %v4588 = vmul.f32 %v4548, %v4581
        %v4589 = vmul.f32 %v4549, %v4581
        %v4591 = vlaneseq
        %v4592 = vshrl.u32 %v4591, 7
        %v4593 = vsub.s32 0, %v4592
        %v4594 = vrot.slane %v4511, %v4593
        %v4596 = vmul.f32 %v4582, %v4594
        %v4597 = vmul.f32 %v4583, %v4594
        %v4598 = vmul.f32 %v4584, %v4594
        %v4599 = vmul.f32 %v4585, %v4594
        %v4600 = vmul.f32 %v4586, %v4594
        %v4601 = vmul.f32 %v4587, %v4594
        %v4602 = vmul.f32 %v4588, %v4594
        %v4603 = vmul.f32 %v4589, %v4594
        %v4605 = vlaneseq
        %v4606 = vshrl.u32 %v4605, 7
        %v4607 = vsub.s32 0, %v4606
        %v4608 = vrot.slane %v4512, %v4607
        %v4610 = vadd.f32 %v4596, %v4608
        %v4611 = vadd.f32 %v4597, %v4608
        %v4612 = vadd.f32 %v4598, %v4608
        %v4613 = vadd.f32 %v4599, %v4608
        %v4614 = vadd.f32 %v4600, %v4608
        %v4615 = vadd.f32 %v4601, %v4608
        %v4616 = vadd.f32 %v4602, %v4608
        %v4617 = vadd.f32 %v4603, %v4608
        %v4618 = vpack.c.bf16 %v4611, %v4610
        %v4619 = vpack.c.bf16 %v4613, %v4612
        %v4620 = vpack.c.bf16 %v4615, %v4614
        %v4621 = vpack.c.bf16 %v4617, %v4616
        %v4622 = vld [vmem:[#allocation8] sm:$0xff]
        %v4623 = vld [vmem:[#allocation8 + $0x8] sm:$0xff]
        %v4624 = vld [vmem:[#allocation8 + $0x10] sm:$0xff]
        %v4625 = vld [vmem:[#allocation8 + $0x18] sm:$0xff]
        %v4626 = vld [vmem:[#allocation8 + $0x20] sm:$0xff]
        %v4627 = vld [vmem:[#allocation8 + $0x28] sm:$0xff]
        %v4628 = vld [vmem:[#allocation8 + $0x30] sm:$0xff]
        %v4629 = vld [vmem:[#allocation8 + $0x38] sm:$0xff]
        %v4630 = vld [vmem:[#allocation8 + $0x40] sm:$0xff]
        %v4631 = vld [vmem:[#allocation8 + $0x48] sm:$0xff]
        %v4632 = vld [vmem:[#allocation8 + $0x50] sm:$0xff]
        %v4633 = vld [vmem:[#allocation8 + $0x58] sm:$0xff]
        %v4634 = vld [vmem:[#allocation8 + $0x60] sm:$0xff]
        %v4635 = vld [vmem:[#allocation8 + $0x68] sm:$0xff]
        %v4636 = vld [vmem:[#allocation8 + $0x70] sm:$0xff]
        %v4637 = vld [vmem:[#allocation8 + $0x78] sm:$0xff]
        %v4638 = vld [vmem:[#allocation8 + $0x80] sm:$0xff]
        %v4639 = vld [vmem:[#allocation8 + $0x88] sm:$0xff]
        %v4640 = vld [vmem:[#allocation8 + $0x90] sm:$0xff]
        %v4641 = vld [vmem:[#allocation8 + $0x98] sm:$0xff]
        %v4642 = vld [vmem:[#allocation8 + $0xa0] sm:$0xff]
        %v4643 = vld [vmem:[#allocation8 + $0xa8] sm:$0xff]
        %v4644 = vld [vmem:[#allocation8 + $0xb0] sm:$0xff]
        %v4645 = vld [vmem:[#allocation8 + $0xb8] sm:$0xff]
        %v4646 = vld [vmem:[#allocation8 + $0xc0] sm:$0xff]
        %v4647 = vld [vmem:[#allocation8 + $0xc8] sm:$0xff]
        %v4648 = vld [vmem:[#allocation8 + $0xd0] sm:$0xff]
        %v4649 = vld [vmem:[#allocation8 + $0xd8] sm:$0xff]
        %v4650 = vld [vmem:[#allocation8 + $0xe0] sm:$0xff]
        %v4651 = vld [vmem:[#allocation8 + $0xe8] sm:$0xff]
        %v4652 = vld [vmem:[#allocation8 + $0xf0] sm:$0xff]
        %v4653 = vld [vmem:[#allocation8 + $0xf8] sm:$0xff]
        %v4654 = vld [vmem:[%s7] sm:$0xf]
        %v4656 = vlaneseq
        %v4657 = vshrl.u32 %v4656, 7
        %v4658 = vsub.s32 0, %v4657
        %v4659 = vrot.slane %v4654, %v4658
        %v4660 = vlaneseq
        %v4661 = vshrl.u32 %v4660, 7
        %v4662 = vsub.s32 1, %v4661
        %v4663 = vrot.slane %v4654, %v4662
        %v4664 = vlaneseq
        %v4665 = vshrl.u32 %v4664, 7
        %v4666 = vsub.s32 2, %v4665
        %v4667 = vrot.slane %v4654, %v4666
        %v4668 = vlaneseq
        %v4669 = vshrl.u32 %v4668, 7
        %v4670 = vsub.s32 3, %v4669
        %v4671 = vrot.slane %v4654, %v4670
        %v4708 = vunpack.c.l.b16 %v4622
        %v4709 = vunpack.c.h.b16 %v4622
        %v4710 = vunpack.c.l.b16 %v4623
        %v4711 = vunpack.c.h.b16 %v4623
        %v4712 = vunpack.c.l.b16 %v4624
        %v4713 = vunpack.c.h.b16 %v4624
        %v4714 = vunpack.c.l.b16 %v4625
        %v4715 = vunpack.c.h.b16 %v4625
        %v4716 = vunpack.c.l.b16 %v4626
        %v4717 = vunpack.c.h.b16 %v4626
        %v4718 = vunpack.c.l.b16 %v4627
        %v4719 = vunpack.c.h.b16 %v4627
        %v4720 = vunpack.c.l.b16 %v4628
        %v4721 = vunpack.c.h.b16 %v4628
        %v4722 = vunpack.c.l.b16 %v4629
        %v4723 = vunpack.c.h.b16 %v4629
        %v4724 = vunpack.c.l.b16 %v4630
        %v4725 = vunpack.c.h.b16 %v4630
        %v4726 = vunpack.c.l.b16 %v4631
        %v4727 = vunpack.c.h.b16 %v4631
        %v4728 = vunpack.c.l.b16 %v4632
        %v4729 = vunpack.c.h.b16 %v4632
        %v4730 = vunpack.c.l.b16 %v4633
        %v4731 = vunpack.c.h.b16 %v4633
        %v4732 = vunpack.c.l.b16 %v4634
        %v4733 = vunpack.c.h.b16 %v4634
        %v4734 = vunpack.c.l.b16 %v4635
        %v4735 = vunpack.c.h.b16 %v4635
        %v4736 = vunpack.c.l.b16 %v4636
        %v4737 = vunpack.c.h.b16 %v4636
        %v4738 = vunpack.c.l.b16 %v4637
        %v4739 = vunpack.c.h.b16 %v4637
        %v4740 = vunpack.c.l.b16 %v4638
        %v4741 = vunpack.c.h.b16 %v4638
        %v4742 = vunpack.c.l.b16 %v4639
        %v4743 = vunpack.c.h.b16 %v4639
        %v4744 = vunpack.c.l.b16 %v4640
        %v4745 = vunpack.c.h.b16 %v4640
        %v4746 = vunpack.c.l.b16 %v4641
        %v4747 = vunpack.c.h.b16 %v4641
        %v4748 = vunpack.c.l.b16 %v4642
        %v4749 = vunpack.c.h.b16 %v4642
        %v4750 = vunpack.c.l.b16 %v4643
        %v4751 = vunpack.c.h.b16 %v4643
        %v4752 = vunpack.c.l.b16 %v4644
        %v4753 = vunpack.c.h.b16 %v4644
        %v4754 = vunpack.c.l.b16 %v4645
        %v4755 = vunpack.c.h.b16 %v4645
        %v4756 = vunpack.c.l.b16 %v4646
        %v4757 = vunpack.c.h.b16 %v4646
        %v4758 = vunpack.c.l.b16 %v4647
        %v4759 = vunpack.c.h.b16 %v4647
        %v4760 = vunpack.c.l.b16 %v4648
        %v4761 = vunpack.c.h.b16 %v4648
        %v4762 = vunpack.c.l.b16 %v4649
        %v4763 = vunpack.c.h.b16 %v4649
        %v4764 = vunpack.c.l.b16 %v4650
        %v4765 = vunpack.c.h.b16 %v4650
        %v4766 = vunpack.c.l.b16 %v4651
        %v4767 = vunpack.c.h.b16 %v4651
        %v4768 = vunpack.c.l.b16 %v4652
        %v4769 = vunpack.c.h.b16 %v4652
        %v4770 = vunpack.c.l.b16 %v4653
        %v4771 = vunpack.c.h.b16 %v4653
        %v4772 = vpack.c.b16 %v4712, %v4708
        %v4773 = vpack.c.b16 %v4713, %v4709
        %v4774 = vpack.c.b16 %v4714, %v4710
        %v4775 = vpack.c.b16 %v4715, %v4711
        %v4776 = vpack.c.b16 %v4720, %v4716
        %v4777 = vpack.c.b16 %v4721, %v4717
        %v4778 = vpack.c.b16 %v4722, %v4718
        %v4779 = vpack.c.b16 %v4723, %v4719
        %v4780 = vpack.c.b16 %v4728, %v4724
        %v4781 = vpack.c.b16 %v4729, %v4725
        %v4782 = vpack.c.b16 %v4730, %v4726
        %v4783 = vpack.c.b16 %v4731, %v4727
        %v4784 = vpack.c.b16 %v4736, %v4732
        %v4785 = vpack.c.b16 %v4737, %v4733
        %v4786 = vpack.c.b16 %v4738, %v4734
        %v4787 = vpack.c.b16 %v4739, %v4735
        %v4788 = vpack.c.b16 %v4744, %v4740
        %v4789 = vpack.c.b16 %v4745, %v4741
        %v4790 = vpack.c.b16 %v4746, %v4742
        %v4791 = vpack.c.b16 %v4747, %v4743
        %v4792 = vpack.c.b16 %v4752, %v4748
        %v4793 = vpack.c.b16 %v4753, %v4749
        %v4794 = vpack.c.b16 %v4754, %v4750
        %v4795 = vpack.c.b16 %v4755, %v4751
        %v4796 = vpack.c.b16 %v4760, %v4756
        %v4797 = vpack.c.b16 %v4761, %v4757
        %v4798 = vpack.c.b16 %v4762, %v4758
        %v4799 = vpack.c.b16 %v4763, %v4759
        %v4800 = vpack.c.b16 %v4768, %v4764
        %v4801 = vpack.c.b16 %v4769, %v4765
        %v4802 = vpack.c.b16 %v4770, %v4766
        %v4803 = vpack.c.b16 %v4771, %v4767
        %4836 = vmatprep.subr.bf16.mxu0 %v4773
        %4837 = vmatpush1.bf16.msra.mxu0 %v4772
        %4838 = vmatprep.subr.bf16.mxu0 %v4777
        %4839 = vmatpush1.bf16.msra.mxu0 %v4776
        %4840 = vmatprep.subr.bf16.mxu0 %v4781
        %4841 = vmatpush1.bf16.msra.mxu0 %v4780
        %4842 = vmatprep.subr.bf16.mxu0 %v4785
        %4843 = vmatpush1.bf16.msra.mxu0 %v4784
        %4844 = vmatprep.subr.bf16.mxu0 %v4789
        %4845 = vmatpush1.bf16.msra.mxu0 %v4788
        %4846 = vmatprep.subr.bf16.mxu0 %v4793
        %4847 = vmatpush1.bf16.msra.mxu0 %v4792
        %4848 = vmatprep.subr.bf16.mxu0 %v4797
        %4849 = vmatpush1.bf16.msra.mxu0 %v4796
        %4850 = vmatprep.subr.bf16.mxu0 %v4801
        %4851 = vmatpush1.bf16.msra.mxu0 %v4800
        %4852 = vmatprep.subr.bf16.mxu0 0
        %4853 = vmatpush1.bf16.msra.mxu0 0
        %4854 = vmatprep.subr.bf16.mxu0 0
        %4855 = vmatpush1.bf16.msra.mxu0 0
        %4856 = vmatprep.subr.bf16.mxu0 0
        %4857 = vmatpush1.bf16.msra.mxu0 0
        %4858 = vmatprep.subr.bf16.mxu0 0
        %4859 = vmatpush1.bf16.msra.mxu0 0
        %4860 = vmatprep.subr.bf16.mxu0 0
        %4861 = vmatpush1.bf16.msra.mxu0 0
        %4862 = vmatprep.subr.bf16.mxu0 0
        %4863 = vmatpush1.bf16.msra.mxu0 0
        %4864 = vmatprep.subr.bf16.mxu0 0
        %4865 = vmatpush1.bf16.msra.mxu0 0
        %4866 = vmatprep.subr.bf16.mxu0 0
        %4867 = vmatpush1.bf16.msra.mxu0 0
        %4868 = vmatprep.mubr.bf16.mxu0 0
        %4869 = vmatmul.mubr.bf16.gmra.mrb[0].mxu0 %v4618
        %v4870 = vpop.f32.mrb[0].mxu0
        %v4871 = vadd.f32 %v4659, %v4870
        %v4872 = vpop.f32.mrb[0].mxu0
        %v4873 = vadd.f32 %v4663, %v4872
        %v4874 = vpop.f32.mrb[0].mxu0
        %v4875 = vadd.f32 %v4659, %v4874
        %v4876 = vpop.f32.mrb[0].mxu0
        %v4877 = vadd.f32 %v4663, %v4876
        %4878 = vmatprep.mubr.bf16.mxu0 0
        %4879 = vmatmul.mubr.bf16.gmra.mrb[0].mxu0 %v4619
        %v4880 = vpop.f32.mrb[0].mxu0
        %v4881 = vadd.f32 %v4659, %v4880
        %v4882 = vpop.f32.mrb[0].mxu0
        %v4883 = vadd.f32 %v4663, %v4882
        %v4884 = vpop.f32.mrb[0].mxu0
        %v4885 = vadd.f32 %v4659, %v4884
        %v4886 = vpop.f32.mrb[0].mxu0
        %v4887 = vadd.f32 %v4663, %v4886
        %4888 = vmatprep.mubr.bf16.mxu0 0
        %4889 = vmatmul.mubr.bf16.gmra.mrb[0].mxu0 %v4620
        %v4890 = vpop.f32.mrb[0].mxu0
        %v4891 = vadd.f32 %v4659, %v4890
        %v4892 = vpop.f32.mrb[0].mxu0
        %v4893 = vadd.f32 %v4663, %v4892
        %v4894 = vpop.f32.mrb[0].mxu0
        %v4895 = vadd.f32 %v4659, %v4894
        %v4896 = vpop.f32.mrb[0].mxu0
        %v4897 = vadd.f32 %v4663, %v4896
        %4898 = vmatprep.mubr.bf16.mxu0 0
        %4899 = vmatmul.mubr.bf16.gmra.mrb[0].mxu0 %v4621
        %v4900 = vpop.f32.mrb[0].mxu0
        %v4901 = vadd.f32 %v4659, %v4900
        %v4902 = vpop.f32.mrb[0].mxu0
        %v4903 = vadd.f32 %v4663, %v4902
        %v4904 = vpop.f32.mrb[0].mxu0
        %v4905 = vadd.f32 %v4659, %v4904
        %v4906 = vpop.f32.mrb[0].mxu0
        %v4907 = vadd.f32 %v4663, %v4906
        %4908 = vdwg.mxu0
        %4909 = vmatprep.subr.bf16.mxu0 %v4775
        %4910 = vmatpush1.bf16.msra.mxu0 %v4774
        %4911 = vmatprep.subr.bf16.mxu0 %v4779
        %4912 = vmatpush1.bf16.msra.mxu0 %v4778
        %4913 = vmatprep.subr.bf16.mxu0 %v4783
        %4914 = vmatpush1.bf16.msra.mxu0 %v4782
        %4915 = vmatprep.subr.bf16.mxu0 %v4787
        %4916 = vmatpush1.bf16.msra.mxu0 %v4786
        %4917 = vmatprep.subr.bf16.mxu0 %v4791
        %4918 = vmatpush1.bf16.msra.mxu0 %v4790
        %4919 = vmatprep.subr.bf16.mxu0 %v4795
        %4920 = vmatpush1.bf16.msra.mxu0 %v4794
        %4921 = vmatprep.subr.bf16.mxu0 %v4799
        %4922 = vmatpush1.bf16.msra.mxu0 %v4798
        %4923 = vmatprep.subr.bf16.mxu0 %v4803
        %4924 = vmatpush1.bf16.msra.mxu0 %v4802
        %4925 = vmatprep.subr.bf16.mxu0 0
        %4926 = vmatpush1.bf16.msra.mxu0 0
        %4927 = vmatprep.subr.bf16.mxu0 0
        %4928 = vmatpush1.bf16.msra.mxu0 0
        %4929 = vmatprep.subr.bf16.mxu0 0
        %4930 = vmatpush1.bf16.msra.mxu0 0
        %4931 = vmatprep.subr.bf16.mxu0 0
        %4932 = vmatpush1.bf16.msra.mxu0 0
        %4933 = vmatprep.subr.bf16.mxu0 0
        %4934 = vmatpush1.bf16.msra.mxu0 0
        %4935 = vmatprep.subr.bf16.mxu0 0
        %4936 = vmatpush1.bf16.msra.mxu0 0
        %4937 = vmatprep.subr.bf16.mxu0 0
        %4938 = vmatpush1.bf16.msra.mxu0 0
        %4939 = vmatprep.subr.bf16.mxu0 0
        %4940 = vmatpush1.bf16.msra.mxu0 0
        %4941 = vmatprep.mubr.bf16.mxu0 0
        %4942 = vmatmul.mubr.bf16.gmra.mrb[0].mxu0 %v4618
        %v4943 = vpop.f32.mrb[0].mxu0
        %v4944 = vadd.f32 %v4667, %v4943
        %v4945 = vpop.f32.mrb[0].mxu0
        %v4946 = vadd.f32 %v4671, %v4945
        %v4947 = vpop.f32.mrb[0].mxu0
        %v4948 = vadd.f32 %v4667, %v4947
        %v4949 = vpop.f32.mrb[0].mxu0
        %v4950 = vadd.f32 %v4671, %v4949
        %4951 = vmatprep.mubr.bf16.mxu0 0
        %4952 = vmatmul.mubr.bf16.gmra.mrb[0].mxu0 %v4619
        %v4953 = vpop.f32.mrb[0].mxu0
        %v4954 = vadd.f32 %v4667, %v4953
        %v4955 = vpop.f32.mrb[0].mxu0
        %v4956 = vadd.f32 %v4671, %v4955
        %v4957 = vpop.f32.mrb[0].mxu0
        %v4958 = vadd.f32 %v4667, %v4957
        %v4959 = vpop.f32.mrb[0].mxu0
        %v4960 = vadd.f32 %v4671, %v4959
        %4961 = vmatprep.mubr.bf16.mxu0 0
        %4962 = vmatmul.mubr.bf16.gmra.mrb[0].mxu0 %v4620
        %v4963 = vpop.f32.mrb[0].mxu0
        %v4964 = vadd.f32 %v4667, %v4963
        %v4965 = vpop.f32.mrb[0].mxu0
        %v4966 = vadd.f32 %v4671, %v4965
        %v4967 = vpop.f32.mrb[0].mxu0
        %v4968 = vadd.f32 %v4667, %v4967
        %v4969 = vpop.f32.mrb[0].mxu0
        %v4970 = vadd.f32 %v4671, %v4969
        %4971 = vmatprep.mubr.bf16.mxu0 0
        %4972 = vmatmul.mubr.bf16.gmra.mrb[0].mxu0 %v4621
        %v4973 = vpop.f32.mrb[0].mxu0
        %v4974 = vadd.f32 %v4667, %v4973
        %v4975 = vpop.f32.mrb[0].mxu0
        %v4976 = vadd.f32 %v4671, %v4975
        %v4977 = vpop.f32.mrb[0].mxu0
        %v4978 = vadd.f32 %v4667, %v4977
        %v4979 = vpop.f32.mrb[0].mxu0
        %v4980 = vadd.f32 %v4671, %v4979
        %4981 = vdwg.mxu0
        %v4982 = vmax.f32 %v4871, 0.0
        %v4983 = vmax.f32 %v4873, 0.0
        %v4984 = vmax.f32 %v4944, 0.0
        %v4985 = vmax.f32 %v4946, 0.0
        %v4986 = vmax.f32 %v4875, 0.0
        %v4987 = vmax.f32 %v4877, 0.0
        %v4988 = vmax.f32 %v4948, 0.0
        %v4989 = vmax.f32 %v4950, 0.0
        %v4990 = vmax.f32 %v4881, 0.0
        %v4991 = vmax.f32 %v4883, 0.0
        %v4992 = vmax.f32 %v4954, 0.0
        %v4993 = vmax.f32 %v4956, 0.0
        %v4994 = vmax.f32 %v4885, 0.0
        %v4995 = vmax.f32 %v4887, 0.0
        %v4996 = vmax.f32 %v4958, 0.0
        %v4997 = vmax.f32 %v4960, 0.0
        %v4998 = vmax.f32 %v4891, 0.0
        %v4999 = vmax.f32 %v4893, 0.0
        %v5000 = vmax.f32 %v4964, 0.0
        %v5001 = vmax.f32 %v4966, 0.0
        %v5002 = vmax.f32 %v4895, 0.0
        %v5003 = vmax.f32 %v4897, 0.0
        %v5004 = vmax.f32 %v4968, 0.0
        %v5005 = vmax.f32 %v4970, 0.0
        %v5006 = vmax.f32 %v4901, 0.0
        %v5007 = vmax.f32 %v4903, 0.0
        %v5008 = vmax.f32 %v4974, 0.0
        %v5009 = vmax.f32 %v4976, 0.0
        %v5010 = vmax.f32 %v4905, 0.0
        %v5011 = vmax.f32 %v4907, 0.0
        %v5012 = vmax.f32 %v4978, 0.0
        %v5013 = vmax.f32 %v4980, 0.0
        %v5014 = vpack.c.bf16 %v4986, %v4982
        %v5015 = vpack.c.bf16 %v4987, %v4983
        %v5016 = vpack.c.bf16 %v4988, %v4984
        %v5017 = vpack.c.bf16 %v4989, %v4985
        %v5018 = vpack.c.bf16 %v4994, %v4990
        %v5019 = vpack.c.bf16 %v4995, %v4991
        %v5020 = vpack.c.bf16 %v4996, %v4992
        %v5021 = vpack.c.bf16 %v4997, %v4993
        %v5022 = vpack.c.bf16 %v5002, %v4998
        %v5023 = vpack.c.bf16 %v5003, %v4999
        %v5024 = vpack.c.bf16 %v5004, %v5000
        %v5025 = vpack.c.bf16 %v5005, %v5001
        %v5026 = vpack.c.bf16 %v5010, %v5006
        %v5027 = vpack.c.bf16 %v5011, %v5007
        %v5028 = vpack.c.bf16 %v5012, %v5008
        %v5029 = vpack.c.bf16 %v5013, %v5009
        %v5030 = vld [vmem:[#allocation10] sm:$0xf]
        %v5031 = vld [vmem:[#allocation10 + $0x4] sm:$0xf]
        %v5032 = vld [vmem:[#allocation10 + $0x8] sm:$0xf]
        %v5033 = vld [vmem:[#allocation10 + $0xc] sm:$0xf]
        %v5034 = vld [vmem:[#allocation10 + $0x10] sm:$0xf]
        %v5035 = vld [vmem:[#allocation10 + $0x14] sm:$0xf]
        %v5036 = vld [vmem:[#allocation10 + $0x18] sm:$0xf]
        %v5037 = vld [vmem:[#allocation10 + $0x1c] sm:$0xf]
        %v5038 = vld [vmem:[#allocation10 + $0x20] sm:$0xf]
        %v5039 = vld [vmem:[#allocation10 + $0x24] sm:$0xf]
        %v5040 = vld [vmem:[#allocation10 + $0x28] sm:$0xf]
        %v5041 = vld [vmem:[#allocation10 + $0x2c] sm:$0xf]
        %v5042 = vld [vmem:[#allocation10 + $0x30] sm:$0xf]
        %v5043 = vld [vmem:[#allocation10 + $0x34] sm:$0xf]
        %v5044 = vld [vmem:[#allocation10 + $0x38] sm:$0xf]
        %v5045 = vld [vmem:[#allocation10 + $0x3c] sm:$0xf]
        %v5046 = vld [vmem:[#allocation10 + $0x40] sm:$0xf]
        %v5047 = vld [vmem:[#allocation10 + $0x44] sm:$0xf]
        %v5048 = vld [vmem:[#allocation10 + $0x48] sm:$0xf]
        %v5049 = vld [vmem:[#allocation10 + $0x4c] sm:$0xf]
        %v5050 = vld [vmem:[#allocation10 + $0x50] sm:$0xf]
        %v5051 = vld [vmem:[#allocation10 + $0x54] sm:$0xf]
        %v5052 = vld [vmem:[#allocation10 + $0x58] sm:$0xf]
        %v5053 = vld [vmem:[#allocation10 + $0x5c] sm:$0xf]
        %v5054 = vld [vmem:[#allocation10 + $0x60] sm:$0xf]
        %v5055 = vld [vmem:[#allocation10 + $0x64] sm:$0xf]
        %v5056 = vld [vmem:[#allocation10 + $0x68] sm:$0xf]
        %v5057 = vld [vmem:[#allocation10 + $0x6c] sm:$0xf]
        %v5058 = vld [vmem:[#allocation10 + $0x70] sm:$0xf]
        %v5059 = vld [vmem:[#allocation10 + $0x74] sm:$0xf]
        %v5060 = vld [vmem:[#allocation10 + $0x78] sm:$0xf]
        %v5061 = vld [vmem:[#allocation10 + $0x7c] sm:$0xf]
        %v5062 = vld [vmem:[#allocation10 + $0x80] sm:$0xf]
        %v5063 = vld [vmem:[#allocation10 + $0x84] sm:$0xf]
        %v5064 = vld [vmem:[#allocation10 + $0x88] sm:$0xf]
        %v5065 = vld [vmem:[#allocation10 + $0x8c] sm:$0xf]
        %v5066 = vld [vmem:[#allocation10 + $0x90] sm:$0xf]
        %v5067 = vld [vmem:[#allocation10 + $0x94] sm:$0xf]
        %v5068 = vld [vmem:[#allocation10 + $0x98] sm:$0xf]
        %v5069 = vld [vmem:[#allocation10 + $0x9c] sm:$0xf]
        %v5070 = vld [vmem:[#allocation10 + $0xa0] sm:$0xf]
        %v5071 = vld [vmem:[#allocation10 + $0xa4] sm:$0xf]
        %v5072 = vld [vmem:[#allocation10 + $0xa8] sm:$0xf]
        %v5073 = vld [vmem:[#allocation10 + $0xac] sm:$0xf]
        %v5074 = vld [vmem:[#allocation10 + $0xb0] sm:$0xf]
        %v5075 = vld [vmem:[#allocation10 + $0xb4] sm:$0xf]
        %v5076 = vld [vmem:[#allocation10 + $0xb8] sm:$0xf]
        %v5077 = vld [vmem:[#allocation10 + $0xbc] sm:$0xf]
        %v5078 = vld [vmem:[#allocation10 + $0xc0] sm:$0xf]
        %v5079 = vld [vmem:[#allocation10 + $0xc4] sm:$0xf]
        %v5080 = vld [vmem:[#allocation10 + $0xc8] sm:$0xf]
        %v5081 = vld [vmem:[#allocation10 + $0xcc] sm:$0xf]
        %v5082 = vld [vmem:[#allocation10 + $0xd0] sm:$0xf]
        %v5083 = vld [vmem:[#allocation10 + $0xd4] sm:$0xf]
        %v5084 = vld [vmem:[#allocation10 + $0xd8] sm:$0xf]
        %v5085 = vld [vmem:[#allocation10 + $0xdc] sm:$0xf]
        %v5086 = vld [vmem:[#allocation10 + $0xe0] sm:$0xf]
        %v5087 = vld [vmem:[#allocation10 + $0xe4] sm:$0xf]
        %v5088 = vld [vmem:[#allocation10 + $0xe8] sm:$0xf]
        %v5089 = vld [vmem:[#allocation10 + $0xec] sm:$0xf]
        %v5090 = vld [vmem:[#allocation10 + $0xf0] sm:$0xf]
        %v5091 = vld [vmem:[#allocation10 + $0xf4] sm:$0xf]
        %v5092 = vld [vmem:[#allocation10 + $0xf8] sm:$0xf]
        %v5093 = vld [vmem:[#allocation10 + $0xfc] sm:$0xf]
        %v5094 = vld [vmem:[%s9] sm:$0x1]
        %v5096 = vlaneseq
        %v5097 = vshrl.u32 %v5096, 7
        %v5098 = vsub.s32 0, %v5097
        %v5099 = vrot.slane %v5094, %v5098
        %v5165 = vunpack.c.l.b16 %v5030
        %v5166 = vunpack.c.l.b16 %v5031
        %v5167 = vunpack.c.l.b16 %v5032
        %v5168 = vunpack.c.l.b16 %v5033
        %v5169 = vunpack.c.l.b16 %v5034
        %v5170 = vunpack.c.l.b16 %v5035
        %v5171 = vunpack.c.l.b16 %v5036
        %v5172 = vunpack.c.l.b16 %v5037
        %v5173 = vunpack.c.l.b16 %v5038
        %v5174 = vunpack.c.l.b16 %v5039
        %v5175 = vunpack.c.l.b16 %v5040
        %v5176 = vunpack.c.l.b16 %v5041
        %v5177 = vunpack.c.l.b16 %v5042
        %v5178 = vunpack.c.l.b16 %v5043
        %v5179 = vunpack.c.l.b16 %v5044
        %v5180 = vunpack.c.l.b16 %v5045
        %v5181 = vunpack.c.l.b16 %v5046
        %v5182 = vunpack.c.l.b16 %v5047
        %v5183 = vunpack.c.l.b16 %v5048
        %v5184 = vunpack.c.l.b16 %v5049
        %v5185 = vunpack.c.l.b16 %v5050
        %v5186 = vunpack.c.l.b16 %v5051
        %v5187 = vunpack.c.l.b16 %v5052
        %v5188 = vunpack.c.l.b16 %v5053
        %v5189 = vunpack.c.l.b16 %v5054
        %v5190 = vunpack.c.l.b16 %v5055
        %v5191 = vunpack.c.l.b16 %v5056
        %v5192 = vunpack.c.l.b16 %v5057
        %v5193 = vunpack.c.l.b16 %v5058
        %v5194 = vunpack.c.l.b16 %v5059
        %v5195 = vunpack.c.l.b16 %v5060
        %v5196 = vunpack.c.l.b16 %v5061
        %v5197 = vunpack.c.l.b16 %v5062
        %v5198 = vunpack.c.l.b16 %v5063
        %v5199 = vunpack.c.l.b16 %v5064
        %v5200 = vunpack.c.l.b16 %v5065
        %v5201 = vunpack.c.l.b16 %v5066
        %v5202 = vunpack.c.l.b16 %v5067
        %v5203 = vunpack.c.l.b16 %v5068
        %v5204 = vunpack.c.l.b16 %v5069
        %v5205 = vunpack.c.l.b16 %v5070
        %v5206 = vunpack.c.l.b16 %v5071
        %v5207 = vunpack.c.l.b16 %v5072
        %v5208 = vunpack.c.l.b16 %v5073
        %v5209 = vunpack.c.l.b16 %v5074
        %v5210 = vunpack.c.l.b16 %v5075
        %v5211 = vunpack.c.l.b16 %v5076
        %v5212 = vunpack.c.l.b16 %v5077
        %v5213 = vunpack.c.l.b16 %v5078
        %v5214 = vunpack.c.l.b16 %v5079
        %v5215 = vunpack.c.l.b16 %v5080
        %v5216 = vunpack.c.l.b16 %v5081
        %v5217 = vunpack.c.l.b16 %v5082
        %v5218 = vunpack.c.l.b16 %v5083
        %v5219 = vunpack.c.l.b16 %v5084
        %v5220 = vunpack.c.l.b16 %v5085
        %v5221 = vunpack.c.l.b16 %v5086
        %v5222 = vunpack.c.l.b16 %v5087
        %v5223 = vunpack.c.l.b16 %v5088
        %v5224 = vunpack.c.l.b16 %v5089
        %v5225 = vunpack.c.l.b16 %v5090
        %v5226 = vunpack.c.l.b16 %v5091
        %v5227 = vunpack.c.l.b16 %v5092
        %v5228 = vunpack.c.l.b16 %v5093
        %v5229 = vpack.c.b16 %v5166, %v5165
        %v5230 = vpack.c.b16 %v5168, %v5167
        %v5231 = vpack.c.b16 %v5170, %v5169
        %v5232 = vpack.c.b16 %v5172, %v5171
        %v5233 = vpack.c.b16 %v5174, %v5173
        %v5234 = vpack.c.b16 %v5176, %v5175
        %v5235 = vpack.c.b16 %v5178, %v5177
        %v5236 = vpack.c.b16 %v5180, %v5179
        %v5237 = vpack.c.b16 %v5182, %v5181
        %v5238 = vpack.c.b16 %v5184, %v5183
        %v5239 = vpack.c.b16 %v5186, %v5185
        %v5240 = vpack.c.b16 %v5188, %v5187
        %v5241 = vpack.c.b16 %v5190, %v5189
        %v5242 = vpack.c.b16 %v5192, %v5191
        %v5243 = vpack.c.b16 %v5194, %v5193
        %v5244 = vpack.c.b16 %v5196, %v5195
        %v5245 = vpack.c.b16 %v5198, %v5197
        %v5246 = vpack.c.b16 %v5200, %v5199
        %v5247 = vpack.c.b16 %v5202, %v5201
        %v5248 = vpack.c.b16 %v5204, %v5203
        %v5249 = vpack.c.b16 %v5206, %v5205
        %v5250 = vpack.c.b16 %v5208, %v5207
        %v5251 = vpack.c.b16 %v5210, %v5209
        %v5252 = vpack.c.b16 %v5212, %v5211
        %v5253 = vpack.c.b16 %v5214, %v5213
        %v5254 = vpack.c.b16 %v5216, %v5215
        %v5255 = vpack.c.b16 %v5218, %v5217
        %v5256 = vpack.c.b16 %v5220, %v5219
        %v5257 = vpack.c.b16 %v5222, %v5221
        %v5258 = vpack.c.b16 %v5224, %v5223
        %v5259 = vpack.c.b16 %v5226, %v5225
        %v5260 = vpack.c.b16 %v5228, %v5227
        %5293 = vmatprep.subr.bf16.mxu0 0
        %5294 = vmatpush1.bf16.msra.mxu0 %v5229
        %5295 = vmatprep.subr.bf16.mxu0 0
        %5296 = vmatpush1.bf16.msra.mxu0 %v5230
        %5297 = vmatprep.subr.bf16.mxu0 0
        %5298 = vmatpush1.bf16.msra.mxu0 %v5231
        %5299 = vmatprep.subr.bf16.mxu0 0
        %5300 = vmatpush1.bf16.msra.mxu0 %v5232
        %5301 = vmatprep.subr.bf16.mxu0 0
        %5302 = vmatpush1.bf16.msra.mxu0 %v5233
        %5303 = vmatprep.subr.bf16.mxu0 0
        %5304 = vmatpush1.bf16.msra.mxu0 %v5234
        %5305 = vmatprep.subr.bf16.mxu0 0
        %5306 = vmatpush1.bf16.msra.mxu0 %v5235
        %5307 = vmatprep.subr.bf16.mxu0 0
        %5308 = vmatpush1.bf16.msra.mxu0 %v5236
        %5309 = vmatprep.subr.bf16.mxu0 0
        %5310 = vmatpush1.bf16.msra.mxu0 %v5237
        %5311 = vmatprep.subr.bf16.mxu0 0
        %5312 = vmatpush1.bf16.msra.mxu0 %v5238
        %5313 = vmatprep.subr.bf16.mxu0 0
        %5314 = vmatpush1.bf16.msra.mxu0 %v5239
        %5315 = vmatprep.subr.bf16.mxu0 0
        %5316 = vmatpush1.bf16.msra.mxu0 %v5240
        %5317 = vmatprep.subr.bf16.mxu0 0
        %5318 = vmatpush1.bf16.msra.mxu0 %v5241
        %5319 = vmatprep.subr.bf16.mxu0 0
        %5320 = vmatpush1.bf16.msra.mxu0 %v5242
        %5321 = vmatprep.subr.bf16.mxu0 0
        %5322 = vmatpush1.bf16.msra.mxu0 %v5243
        %5323 = vmatprep.subr.bf16.mxu0 0
        %5324 = vmatpush1.bf16.msra.mxu0 %v5244
        %5325 = vmatprep.mubr.bf16.mxu0 %v5015
        %5326 = vmatmul.mubr.bf16.gmra.mrb[0].mxu0 %v5014
        %v5327 = vpop.f32.mrb[0].mxu0
        %v5328 = vadd.f32 %v5099, %v5327
        %v5329 = vpop.f32.mrb[0].mxu0
        %v5330 = vpop.f32.mrb[0].mxu0
        %v5331 = vadd.f32 %v5099, %v5330
        %v5332 = vpop.f32.mrb[0].mxu0
        %5333 = vmatprep.mubr.bf16.mxu0 %v5019
        %5334 = vmatmul.mubr.bf16.gmra.mrb[0].mxu0 %v5018
        %v5335 = vpop.f32.mrb[0].mxu0
        %v5336 = vadd.f32 %v5099, %v5335
        %v5337 = vpop.f32.mrb[0].mxu0
        %v5338 = vpop.f32.mrb[0].mxu0
        %v5339 = vadd.f32 %v5099, %v5338
        %v5340 = vpop.f32.mrb[0].mxu0
        %5341 = vmatprep.mubr.bf16.mxu0 %v5023
        %5342 = vmatmul.mubr.bf16.gmra.mrb[0].mxu0 %v5022
        %v5343 = vpop.f32.mrb[0].mxu0
        %v5344 = vadd.f32 %v5099, %v5343
        %v5345 = vpop.f32.mrb[0].mxu0
        %v5346 = vpop.f32.mrb[0].mxu0
        %v5347 = vadd.f32 %v5099, %v5346
        %v5348 = vpop.f32.mrb[0].mxu0
        %5349 = vmatprep.mubr.bf16.mxu0 %v5027
        %5350 = vmatmul.mubr.bf16.gmra.mrb[0].mxu0 %v5026
        %v5351 = vpop.f32.mrb[0].mxu0
        %v5352 = vadd.f32 %v5099, %v5351
        %v5353 = vpop.f32.mrb[0].mxu0
        %v5354 = vpop.f32.mrb[0].mxu0
        %v5355 = vadd.f32 %v5099, %v5354
        %v5356 = vpop.f32.mrb[0].mxu0
        %5357 = vdwg.mxu0
        %5358 = vmatprep.subr.bf16.mxu0 0
        %5359 = vmatpush1.bf16.msra.mxu0 %v5245
        %5360 = vmatprep.subr.bf16.mxu0 0
        %5361 = vmatpush1.bf16.msra.mxu0 %v5246
        %5362 = vmatprep.subr.bf16.mxu0 0
        %5363 = vmatpush1.bf16.msra.mxu0 %v5247
        %5364 = vmatprep.subr.bf16.mxu0 0
        %5365 = vmatpush1.bf16.msra.mxu0 %v5248
        %5366 = vmatprep.subr.bf16.mxu0 0
        %5367 = vmatpush1.bf16.msra.mxu0 %v5249
        %5368 = vmatprep.subr.bf16.mxu0 0
        %5369 = vmatpush1.bf16.msra.mxu0 %v5250
        %5370 = vmatprep.subr.bf16.mxu0 0
        %5371 = vmatpush1.bf16.msra.mxu0 %v5251
        %5372 = vmatprep.subr.bf16.mxu0 0
        %5373 = vmatpush1.bf16.msra.mxu0 %v5252
        %5374 = vmatprep.subr.bf16.mxu0 0
        %5375 = vmatpush1.bf16.msra.mxu0 %v5253
        %5376 = vmatprep.subr.bf16.mxu0 0
        %5377 = vmatpush1.bf16.msra.mxu0 %v5254
        %5378 = vmatprep.subr.bf16.mxu0 0
        %5379 = vmatpush1.bf16.msra.mxu0 %v5255
        %5380 = vmatprep.subr.bf16.mxu0 0
        %5381 = vmatpush1.bf16.msra.mxu0 %v5256
        %5382 = vmatprep.subr.bf16.mxu0 0
        %5383 = vmatpush1.bf16.msra.mxu0 %v5257
        %5384 = vmatprep.subr.bf16.mxu0 0
        %5385 = vmatpush1.bf16.msra.mxu0 %v5258
        %5386 = vmatprep.subr.bf16.mxu0 0
        %5387 = vmatpush1.bf16.msra.mxu0 %v5259
        %5388 = vmatprep.subr.bf16.mxu0 0
        %5389 = vmatpush1.bf16.msra.mxu0 %v5260
        %5390 = vmatprep.mubr.bf16.mxu0 %v5017
        %5391 = vmatmul.mubr.bf16.gmra.mrb[0].mxu0 %v5016
        %v5392 = vpop.f32.mrb[0].mxu0
        %v5393 = vadd.f32 %v5328, %v5392
        %v5394 = vpop.f32.mrb[0].mxu0
        %v5395 = vpop.f32.mrb[0].mxu0
        %v5396 = vadd.f32 %v5331, %v5395
        %v5397 = vpop.f32.mrb[0].mxu0
        %5398 = vmatprep.mubr.bf16.mxu0 %v5021
        %5399 = vmatmul.mubr.bf16.gmra.mrb[0].mxu0 %v5020
        %v5400 = vpop.f32.mrb[0].mxu0
        %v5401 = vadd.f32 %v5336, %v5400
        %v5402 = vpop.f32.mrb[0].mxu0
        %v5403 = vpop.f32.mrb[0].mxu0
        %v5404 = vadd.f32 %v5339, %v5403
        %v5405 = vpop.f32.mrb[0].mxu0
        %5406 = vmatprep.mubr.bf16.mxu0 %v5025
        %5407 = vmatmul.mubr.bf16.gmra.mrb[0].mxu0 %v5024
        %v5408 = vpop.f32.mrb[0].mxu0
        %v5409 = vadd.f32 %v5344, %v5408
        %v5410 = vpop.f32.mrb[0].mxu0
        %v5411 = vpop.f32.mrb[0].mxu0
        %v5412 = vadd.f32 %v5347, %v5411
        %v5413 = vpop.f32.mrb[0].mxu0
        %5414 = vmatprep.mubr.bf16.mxu0 %v5029
        %5415 = vmatmul.mubr.bf16.gmra.mrb[0].mxu0 %v5028
        %v5416 = vpop.f32.mrb[0].mxu0
        %v5417 = vadd.f32 %v5352, %v5416
        %v5418 = vpop.f32.mrb[0].mxu0
        %v5419 = vpop.f32.mrb[0].mxu0
        %v5420 = vadd.f32 %v5355, %v5419
        %v5421 = vpop.f32.mrb[0].mxu0
        %5422 = vdwg.mxu0
        %v5423 = vld [vmem:[%s10] sm:$0x1]
        %v5424 = vld [vmem:[%s11] sm:$0x1]
        %v5425 = vadd.f32 %v4610, %v5393
        %v5426 = vadd.f32 %v4611, %v5396
        %v5427 = vadd.f32 %v4612, %v5401
        %v5428 = vadd.f32 %v4613, %v5404
        %v5429 = vadd.f32 %v4614, %v5409
        %v5430 = vadd.f32 %v4615, %v5412
        %v5431 = vadd.f32 %v4616, %v5417
        %v5432 = vadd.f32 %v4617, %v5420
        %v5433 = vadd.f32 %v5425, %v5426
        %v5434 = vadd.f32 %v5433, %v5427
        %v5435 = vadd.f32 %v5434, %v5428
        %v5436 = vrot.slane %v5435, 4
        %v5437 = vadd.f32 %v5435, %v5436
        %v5438 = vrot.slane %v5437, 2
        %v5439 = vadd.f32 %v5437, %v5438
        %v5440 = vrot.slane %v5439, 1
        %v5441 = vadd.f32 %v5439, %v5440
        %v5442 = vadd.f32 %v5429, %v5430
        %v5443 = vadd.f32 %v5442, %v5431
        %v5444 = vadd.f32 %v5443, %v5432
        %v5445 = vrot.slane %v5444, 4
        %v5446 = vadd.f32 %v5444, %v5445
        %v5447 = vrot.slane %v5446, 2
        %v5448 = vadd.f32 %v5446, %v5447
        %v5449 = vrot.slane %v5448, 1
        %v5450 = vadd.f32 %v5448, %v5449
        %v5451 = vmul.f32 %v5441, %v4539
        %v5452 = vmul.f32 %v5450, %v4539
        %v5453 = vsub.f32 %v5425, %v5451
        %v5454 = vsub.f32 %v5426, %v5451
        %v5455 = vsub.f32 %v5427, %v5451
        %v5456 = vsub.f32 %v5428, %v5451
        %v5457 = vsub.f32 %v5429, %v5452
        %v5458 = vsub.f32 %v5430, %v5452
        %v5459 = vsub.f32 %v5431, %v5452
        %v5460 = vsub.f32 %v5432, %v5452
        %v5461 = vmul.f32 %v5453, %v5453
        %v5462 = vmul.f32 %v5454, %v5454
        %v5463 = vmul.f32 %v5455, %v5455
        %v5464 = vmul.f32 %v5456, %v5456
        %v5465 = vmul.f32 %v5457, %v5457
        %v5466 = vmul.f32 %v5458, %v5458
        %v5467 = vmul.f32 %v5459, %v5459
        %v5468 = vmul.f32 %v5460, %v5460
        %v5469 = vadd.f32 %v5461, %v5462
        %v5470 = vadd.f32 %v5469, %v5463
        %v5471 = vadd.f32 %v5470, %v5464
        %v5472 = vrot.slane %v5471, 4
        %v5473 = vadd.f32 %v5471, %v5472
        %v5474 = vrot.slane %v5473, 2
        %v5475 = vadd.f32 %v5473, %v5474
        %v5476 = vrot.slane %v5475, 1
        %v5477 = vadd.f32 %v5475, %v5476
        %v5478 = vadd.f32 %v5465, %v5466
        %v5479 = vadd.f32 %v5478, %v5467
        %v5480 = vadd.f32 %v5479, %v5468
        %v5481 = vrot.slane %v5480, 4
        %v5482 = vadd.f32 %v5480, %v5481
        %v5483 = vrot.slane %v5482, 2
        %v5484 = vadd.f32 %v5482, %v5483
        %v5485 = vrot.slane %v5484, 1
        %v5486 = vadd.f32 %v5484, %v5485
        %v5487 = vmul.f32 %v5477, %v4539
        %v5488 = vmul.f32 %v5486, %v4539
        %v5489 = vadd.f32 %v5487, 1e-05
        %v5490 = vadd.f32 %v5488, 1e-05
        %v5491 = vrsqrt.pop %v5489
        %v5492 = vrsqrt.pop %v5490
        %v5493 = vmul.f32 %v5453, %v5491
        %v5494 = vmul.f32 %v5454, %v5491
        %v5495 = vmul.f32 %v5455, %v5491
        %v5496 = vmul.f32 %v5456, %v5491
        %v5497 = vmul.f32 %v5457, %v5492
        %v5498 = vmul.f32 %v5458, %v5492
        %v5499 = vmul.f32 %v5459, %v5492
        %v5500 = vmul.f32 %v5460, %v5492
        %v5502 = vlaneseq
        %v5503 = vshrl.u32 %v5502, 7
        %v5504 = vsub.s32 0, %v5503
        %v5505 = vrot.slane %v5423, %v5504
        %v5507 = vmul.f32 %v5493, %v5505
        %v5508 = vmul.f32 %v5494, %v5505
        %v5509 = vmul.f32 %v5495, %v5505
        %v5510 = vmul.f32 %v5496, %v5505
        %v5511 = vmul.f32 %v5497, %v5505
        %v5512 = vmul.f32 %v5498, %v5505
        %v5513 = vmul.f32 %v5499, %v5505
        %v5514 = vmul.f32 %v5500, %v5505
        %v5516 = vlaneseq
        %v5517 = vshrl.u32 %v5516, 7
        %v5518 = vsub.s32 0, %v5517
        %v5519 = vrot.slane %v5424, %v5518
        %v5521 = vadd.f32 %v5507, %v5519
        %v5522 = vadd.f32 %v5508, %v5519
        %v5523 = vadd.f32 %v5509, %v5519
        %v5524 = vadd.f32 %v5510, %v5519
        %v5525 = vadd.f32 %v5511, %v5519
        %v5526 = vadd.f32 %v5512, %v5519
        %v5527 = vadd.f32 %v5513, %v5519
        %v5528 = vadd.f32 %v5514, %v5519
        %5529 = vst [vmem:[%s490] sm:$0xff] %v5521
        %5530 = vst [vmem:[%s490 + $0x8] sm:$0xff] %v5522
        %5531 = vst [vmem:[%s490 + $0x10] sm:$0xff] %v5523
        %5532 = vst [vmem:[%s490 + $0x18] sm:$0xff] %v5524
        %5533 = vst [vmem:[%s490 + $0x20] sm:$0xff] %v5525
        %5534 = vst [vmem:[%s490 + $0x28] sm:$0xff] %v5526
        %5535 = vst [vmem:[%s490 + $0x30] sm:$0xff] %v5527
        %5536 = vst [vmem:[%s490 + $0x38] sm:$0xff] %v5528
        %s5537 = sand.u32 %s296, 1
        %s5538 = scalar_lea.sflag [#allocation4], %s5537
        %s5539 = sand.u32 %s296, 1
        %s5540 = smul.addr %s5539, 64
        %s5541 = scalar_lea.vmem [#allocation11], %s5540
        // Predicated region
        $region89: #{tpu_custom_call.1} parent=67 // pred_check
          %p5542 = pneg %p306
        $region90: #{tpu_custom_call.1} parent=67 // pred_check_branch
          %5544 = sbr.rel (%p5542) target = $region92
        $region91: #{tpu_custom_call.1} parent=67 // pred_region
          %s5545 = smul.u32 2, %s31
          %s5547 = ssub.s32 1024, 1024
          %5548 = vsyncadd %s5538, %s5547
          %s5549 = smul.addr %s5545, 4
          %s5550 = smul.addr %s5549, 128
          %s5551 = scalar_lea.hbm %s12, %s5550
          %s5552 = sshll.u32 %s5541, 4
          %s5553 = int_to_ptr.vmem [resolvable:$true] %s5552
          %5558 = dma.vmem_to_hbm [thread:$0]  %s5553, 1024, %s5551, %s5538, 128, 128, 8
        $region92: #{tpu_custom_call.1} parent=67 // pred_fallthru
          _
      $region68: #{tpu_custom_call.1} parent=5 // pred_fallthru
        _
      %p5559 = scmp.le.s32.totalorder 2, %s26
      // Predicated region
      $region93: #{tpu_custom_call.1} parent=5 // pred_check
        %p5560 = pneg %p5559
      $region94: #{tpu_custom_call.1} parent=5 // pred_check_branch
        %5562 = sbr.rel (%p5560) target = $region96
      $region95: #{tpu_custom_call.1} parent=5 // pred_region
        %s5563 = ssub.s32 %s26, 2
        // Predicated region
        $region97: #{tpu_custom_call.1} parent=95 // pred_check
          %p5564 = pneg %p312
        $region98: #{tpu_custom_call.1} parent=95 // pred_check_branch
          %5566 = sbr.rel (%p5564) target = $region100
        $region99: #{tpu_custom_call.1} parent=95 // pred_region
          %s5567 = sand.u32 %s297, 1
          %s5568 = scalar_lea.sflag [#allocation4], %s5567
          %s5569 = sand.u32 %s297, 1
          %s5570 = smul.addr %s5569, 64
          %s5571 = scalar_lea.vmem [#allocation11], %s5570
          %5572 = dma.done %s5568, 1024
        $region100: #{tpu_custom_call.1} parent=95 // pred_fallthru
          _
      $region96: #{tpu_custom_call.1} parent=5 // pred_fallthru
        _
    $region6: #{tpu_custom_call.1} parent=1 // loop_footer
      %s30 = sadd.s32 1, %s26
    $region7: #{tpu_custom_call.1} parent=1 // loop_footer_branch
      %25 = sbr.rel target = $region3
    $region8: #{tpu_custom_call.1} parent=1 // loop_exit
      _
    %5573 = vsyncpa [#allocation3], 1
    %s5574 = scalar_lea.sflag [#allocation3], 1
    %5575 = vsyncpa %s5574, 1
    %5576 = vsyncpa [#allocation6], 1
    %5577 = vsyncpa [#allocation9], 1
    %5578 = vsyncpa [#allocation4], 1
    %s5579 = scalar_lea.sflag [#allocation4], 1
    %5580 = vsyncpa %s5579, 1

</llo_original>
